<compile_context>
chip_gen: v7x
topology: tpu7x:2x2x1
jax: 0.10.0
libtpu: 0.0.40
codegen_flags: <defaults>
</compile_context>

<pallas_src>
import functools

import jax
import jax.numpy as jnp
from jax.experimental import pallas as pl
from jax.experimental.pallas import tpu as pltpu

CHANNELS = 3
LEAK = 0.1
W_G = 3


def _round_up(x, m):
    return (x + m - 1) // m * m


# ----------------------------------------------------------------------------
# Pallas kernel: fused (bf16 matmul -> f32 acc -> +bias -> LeakyReLU)
# ----------------------------------------------------------------------------
def _matmul_bias_act_kernel(x_ref, w_ref, b_ref, o_ref, *, leak):
    acc = jnp.dot(x_ref[...], w_ref[...], preferred_element_type=jnp.float32)
    acc = acc + b_ref[...]
    if leak is not None:
        acc = jnp.where(acc >= 0, acc, jnp.float32(leak) * acc)
    o_ref[...] = acc.astype(o_ref.dtype)


def _pick_tm(M, K):
    """Row-tile size: keep the bf16 (tm, K) tile around <=4 MiB per buffer,
    big tiles for small-K layers, and divide M with minimal padding."""
    cap = (4 * 1024 * 1024) // (2 * K)           # rows per buffer at ~4 MiB
    cap = max(256, min(2048, (cap // 16) * 16))  # multiple of 16 (bf16 sublane)
    m_al = _round_up(M, 16)
    if m_al <= cap:
        return m_al
    n_tiles = -(-m_al // cap)
    return _round_up(-(-m_al // n_tiles), 16)


def _vmem_limit_bytes(tm, K, N):
    x_tile = 2 * tm * K * 2     # bf16 patch tile, double-buffered
    w_res = 2 * K * N * 2       # bf16 weight (conservatively 2 buffers)
    b_res = 2 * N * 4           # f32 bias
    o_tile = 2 * tm * N * 2     # bf16 output tile, double-buffered
    need = x_tile + w_res + b_res + o_tile
    # 2x headroom for compiler scratch, capped well under v7x's 64 MiB VMEM.
    return int(min(48 * 1024 * 1024, max(2 * need, 16 * 1024 * 1024)))


def matmul_bias_act(x, w, b, *, leak=None, out_dtype=jnp.bfloat16):
    """x: [M, K] bf16, w: [K, N] bf16 (K, N multiples of 128), b: [N] f32."""
    M, K = x.shape
    _, N = w.shape
    tm = _pick_tm(M, K)
    m_pad = _round_up(M, tm)
    if m_pad != M:
        x = jnp.pad(x, ((0, m_pad - M), (0, 0)))
    b2 = b.reshape(1, N).astype(jnp.float32)

    out = pl.pallas_call(
        functools.partial(_matmul_bias_act_kernel, leak=leak),
        out_shape=jax.ShapeDtypeStruct((m_pad, N), out_dtype),
        grid_spec=pltpu.PrefetchScalarGridSpec(
            num_scalar_prefetch=0,
            grid=(m_pad // tm,),
            in_specs=[
                pl.BlockSpec((tm, K), lambda i: (i, 0)),   # patch row-tile
                pl.BlockSpec((K, N), lambda i: (0, 0)),    # full weight, resident
                pl.BlockSpec((1, N), lambda i: (0, 0)),    # bias (f32)
            ],
            out_specs=pl.BlockSpec((tm, N), lambda i: (i, 0)),
        ),
        compiler_params=pltpu.CompilerParams(
            dimension_semantics=("parallel",),             # M rows independent
            vmem_limit_bytes=_vmem_limit_bytes(tm, K, N),
        ),
    )(x.astype(jnp.bfloat16), w.astype(jnp.bfloat16), b2)
    return out[:M]


# ----------------------------------------------------------------------------
# Glue: im2col (pure data movement, bf16) and conv wrapper
# ----------------------------------------------------------------------------
def _im2col(x, kh, kw, stride, pad):
    # x: [N, H, W, C] NHWC (bf16)
    x = jnp.pad(x, ((0, 0), (pad, pad), (pad, pad), (0, 0)))
    n, hp, wp, c = x.shape
    ho = (hp - kh) // stride + 1
    wo = (wp - kw) // stride + 1
    cols = []
    for i in range(kh):
        for j in range(kw):
            cols.append(x[:, i:i + stride * ho:stride, j:j + stride * wo:stride, :])
    patches = jnp.concatenate(cols, axis=-1)          # [N, Ho, Wo, kh*kw*C]
    return patches.reshape(n * ho * wo, kh * kw * c), n, ho, wo


def conv2d_act(x, w, b, *, stride, pad, leak):
    """x: [N,H,W,Cin] bf16 ; w: [Cout,Cin,kh,kw] (PyTorch layout) ; b: [Cout]."""
    cout, cin, kh, kw = w.shape
    patches, n, ho, wo = _im2col(x, kh, kw, stride, pad)
    k = kh * kw * cin
    k_pad = _round_up(k, 128)      # lane-dense K (conv1: 27 -> 128, conv3: 576 -> 640)
    n_pad = _round_up(cout, 128)   # lane-dense N (conv1/2: 64 -> 128)
    # match (kh, kw, Cin) column order of the patches, then zero-pad K/N
    w_flat = jnp.transpose(w, (2, 3, 1, 0)).reshape(k, cout)
    w_flat = jnp.pad(w_flat, ((0, k_pad - k), (0, n_pad - cout)))
    b_pad = jnp.pad(b, (0, n_pad - cout)).astype(jnp.float32)
    if k_pad != k:
        patches = jnp.pad(patches, ((0, 0), (0, k_pad - k)))
    out = matmul_bias_act(patches, w_flat, b_pad, leak=leak)
    out = out[:, :cout]
    return out.reshape(n, ho, wo, cout)


# ----------------------------------------------------------------------------
# Spectral normalization (deterministic, 1 power iteration) — parameter setup
# ----------------------------------------------------------------------------
def spectral_normalize(w, key, n_power_iterations=1, eps=1e-12):
    w2 = w.reshape(w.shape[0], -1)
    u = jax.random.normal(key, (w2.shape[0],), dtype=w2.dtype)
    u = u / (jnp.linalg.norm(u) + eps)
    v = None
    for _ in range(n_power_iterations):
        v = w2.T @ u
        v = v / (jnp.linalg.norm(v) + eps)
        u = w2 @ v
        u = u / (jnp.linalg.norm(u) + eps)
    sigma = u @ (w2 @ v)
    return w / sigma


# ----------------------------------------------------------------------------
# Parameter construction (deterministic, synthetic)
# ----------------------------------------------------------------------------
_CONV_CFG = [
    # (cin, cout, k, stride, pad)
    (CHANNELS, 64, 3, 1, 1),
    (64, 64, 4, 2, 1),
    (64, 128, 3, 1, 1),
    (128, 128, 4, 2, 1),
    (128, 256, 3, 1, 1),
    (256, 256, 4, 2, 1),
    (256, 256, 4, 2, 1),
    (256, 512, 3, 1, 0),
]


def init_params(key):
    params = {"convs": []}
    for idx, (cin, cout, k, _, _) in enumerate(_CONV_CFG):
        kw_key, kb_key, ku_key = jax.random.split(jax.random.fold_in(key, idx), 3)
        w = 0.05 * jax.random.normal(kw_key, (cout, cin, k, k), dtype=jnp.float32)
        b = 0.01 * jax.random.normal(kb_key, (cout,), dtype=jnp.float32)
        w = spectral_normalize(w, ku_key)
        params["convs"].append((w, b))
    kf_w, kf_b, kf_u = jax.random.split(jax.random.fold_in(key, 100), 3)
    fc_w = 0.02 * jax.random.normal(kf_w, (1, W_G * W_G * 512), dtype=jnp.float32)
    fc_b = 0.01 * jax.random.normal(kf_b, (1,), dtype=jnp.float32)
    fc_w = spectral_normalize(fc_w, kf_u)
    params["fc"] = (fc_w, fc_b)
    return params


# ----------------------------------------------------------------------------
# Full discriminator forward
# ----------------------------------------------------------------------------
def discriminator_forward(params, x_nchw):
    # convert PyTorch NCHW input to NHWC bf16 for the conv pipeline
    m = jnp.transpose(x_nchw, (0, 2, 3, 1)).astype(jnp.bfloat16)
    for (w, b), (_, _, _, stride, pad) in zip(params["convs"], _CONV_CFG):
        m = conv2d_act(m, w, b, stride=stride, pad=pad, leak=LEAK)
    # m: [N, 3, 3, 512] NHWC -> flatten in PyTorch (C, H, W) order
    n = m.shape[0]
    feat = jnp.transpose(m, (0, 3, 1, 2)).reshape(n, W_G * W_G * 512)
    fc_w, fc_b = params["fc"]
    # Tiny (n x 4608) @ (4608 x 1): plain JAX — launch overhead > math here.
    out = jnp.dot(feat.astype(jnp.float32), fc_w.T.astype(jnp.float32),
                  preferred_element_type=jnp.float32) + fc_b
    return out


if __name__ == "__main__":
    key = jax.random.PRNGKey(0)
    pkey, xkey = jax.random.split(key)
    params = init_params(pkey)

    # Input spatial size 80x80 is what the architecture implies for w_g == 3:
    # 80 ->80 ->40 ->40 ->20 ->20 ->10 ->5 ->3 (conv8, pad 0)
    x = jax.random.normal(xkey, (2, CHANNELS, 80, 80), dtype=jnp.float32)

    out = discriminator_forward(params, x)
    out = jax.block_until_ready(out)
    assert out.shape == (2, 1), out.shape
    print("KERNEL_OK")
</pallas_src>

<mosaic_0001>
module attributes {stable_mosaic.version = 11 : i64} {
  func.func @_matmul_bias_act_kernel(%arg0: i32, %arg1: memref<1840x128xbf16, #tpu.memory_space<vmem>>, %arg2: memref<128x128xbf16, #tpu.memory_space<vmem>>, %arg3: memref<1x128xf32, #tpu.memory_space<vmem>>, %arg4: memref<1840x128xbf16, #tpu.memory_space<vmem>>) attributes {dimension_semantics = [#tpu.dimension_semantics<parallel>], iteration_bounds = array<i64: 7>, scalar_prefetch = 0 : i64, scratch_operands = 0 : i64, tpu.core_type = #tpu.core_type<tc>, window_params = [{transform_indices = @transform_0, window_bounds = array<i64: 1840, 128>}, {pipeline_mode = #tpu.pipeline_mode<synchronous>, transform_indices = @transform_1, window_bounds = array<i64: 128, 128>}, {pipeline_mode = #tpu.pipeline_mode<synchronous>, transform_indices = @transform_2, window_bounds = array<i64: 1, 128>}, {transform_indices = @transform_3, window_bounds = array<i64: 1840, 128>}]} {
    %c0 = arith.constant 0 : index
    %c0_0 = arith.constant 0 : index
    %0 = vector.load %arg1[%c0, %c0_0] : memref<1840x128xbf16, #tpu.memory_space<vmem>>, vector<1840x128xbf16>
    %c0_1 = arith.constant 0 : index
    %c0_2 = arith.constant 0 : index
    %1 = vector.load %arg2[%c0_1, %c0_2] : memref<128x128xbf16, #tpu.memory_space<vmem>>, vector<128x128xbf16>
    %cst = arith.constant dense<0.000000e+00> : vector<1840x128xf32>
    %2 = tpu.matmul %0, %1, %cst {dimension_numbers = #tpu.dot_dimension_numbers<[1], [0], [0], [1], [0, 0, 1, 1], [], []>} : vector<1840x128xbf16>, vector<128x128xbf16>, vector<1840x128xf32> -> vector<1840x128xf32>
    %c0_3 = arith.constant 0 : index
    %c0_4 = arith.constant 0 : index
    %3 = vector.load %arg3[%c0_3, %c0_4] : memref<1x128xf32, #tpu.memory_space<vmem>>, vector<1x128xf32>
    %4 = vector.broadcast %3 : vector<1x128xf32> to vector<1840x128xf32>
    %5 = arith.addf %2, %4 : vector<1840x128xf32>
    %cst_5 = arith.constant 0.000000e+00 : f32
    %6 = vector.broadcast %cst_5 : f32 to vector<1840x128xf32>
    %7 = arith.cmpf oge, %5, %6 : vector<1840x128xf32>
    %cst_6 = arith.constant 1.000000e-01 : f32
    %8 = vector.broadcast %cst_6 : f32 to vector<1840x128xf32>
    %9 = arith.mulf %8, %5 : vector<1840x128xf32>
    %10 = arith.select %7, %5, %9 : vector<1840x128xi1>, vector<1840x128xf32>
    %11 = arith.truncf %10 : vector<1840x128xf32> to vector<1840x128xbf16>
    %c0_7 = arith.constant 0 : index
    %c0_8 = arith.constant 0 : index
    %12 = vector.load %arg4[%c0_7, %c0_8] : memref<1840x128xbf16, #tpu.memory_space<vmem>>, vector<1840x128xbf16>
    tpu.vector_store %arg4[%c0_7, %c0_8], %11 {strides = array<i32>} : memref<1840x128xbf16, #tpu.memory_space<vmem>>, vector<1840x128xbf16>,
    return
  }
  func.func @transform_0(%arg0: i32) -> (i32, i32) {
    %c0_i32 = arith.constant 0 : i32
    %c0_i32_0 = arith.constant 0 : i32
    return %arg0, %c0_i32 : i32, i32
  }
  func.func @transform_1(%arg0: i32) -> (i32, i32) {
    %c0_i32 = arith.constant 0 : i32
    %c0_i32_0 = arith.constant 0 : i32
    %c0_i32_1 = arith.constant 0 : i32
    return %c0_i32, %c0_i32_0 : i32, i32
  }
  func.func @transform_2(%arg0: i32) -> (i32, i32) {
    %c0_i32 = arith.constant 0 : i32
    %c0_i32_0 = arith.constant 0 : i32
    %c0_i32_1 = arith.constant 0 : i32
    return %c0_i32, %c0_i32_0 : i32, i32
  }
  func.func @transform_3(%arg0: i32) -> (i32, i32) {
    %c0_i32 = arith.constant 0 : i32
    %c0_i32_0 = arith.constant 0 : i32
    return %arg0, %c0_i32 : i32, i32
  }
}

</mosaic_0001>

<llo_original>
// kernel: tpu_custom_call.1
$region0: #{tpu_custom_call.1}
  #allocation0 [shape = 'u32[]', space=smem, size = 0x4, offset = 0x4, fixed_abs, tag = 'smem constant byte address 0x4 - core index']
  #allocation1 [shape = 'u32[144,128]{1,0:T(1,128)}', space=vmem, size = 0x12000, scoped, tag = 'internal scratch']
  %s0 = inlined_call_operand.hbm [shape: bf16[12880,128], index: 0, kind: input, shape index: {}]
  %s1 = inlined_call_operand.hbm [shape: bf16[128,128], index: 1, kind: input, shape index: {}]
  %s2 = inlined_call_operand.hbm [shape: f32[1,128], index: 2, kind: input, shape index: {}]
  %s3 = inlined_call_operand.hbm [shape: bf16[12880,128], index: 3, kind: output, shape index: {}]
  %s4 = sld [smem:[#allocation0]]
  $region57: #{tpu_custom_call.1} parent=0
    _
  %s6 = ssub.s32 1, %s4
  %s7 = scalar_select 0, %s6, %s4
  $region1: #{tpu_custom_call.1} parent=0
    #allocation2 [shape = 'u8[942080]{0}', space=vmem, size = 0xe6000, scoped, tag = 'input window, operand 0']
    #allocation3 [shape = 's32[2]{0}', space=sflag, size = 0x8, scoped, tag = 'scoped memory for tpu_custom_call.1']
    #allocation4 [shape = 's32[2]{0}', space=sflag, size = 0x8, scoped, tag = 'scoped memory for tpu_custom_call.1']
    #allocation5 [shape = 'u8[32768]{0}', space=vmem, size = 0x8000, scoped, tag = 'input window, operand 1, single buffered']
    #allocation6 [shape = 's32[1]{0}', space=sflag, size = 0x4, scoped, tag = 'scoped memory for tpu_custom_call.1']
    #allocation7 [shape = 'u8[512]{0}', space=vmem, size = 0x400, scoped, tag = 'input window, operand 2, single buffered']
    #allocation8 [shape = 'u8[942080]{0}', space=vmem, size = 0xe6000, scoped, tag = 'output window, operand 0']
    %8 = vsyncpa [#allocation3], 0
    %s9 = scalar_lea.sflag [#allocation3], 1
    %10 = vsyncpa %s9, 0
    %11 = vsyncpa [#allocation6], 0
    %12 = vsyncpa [#allocation4], 0
    %s13 = scalar_lea.sflag [#allocation4], 1
    %14 = vsyncpa %s13, 0
    loop: start=0, step=1, limit=9
    $region2: #{tpu_custom_call.1} parent=1 // loop_pre_header
      _
    $region3: #{tpu_custom_call.1} parent=1 // loop_header
      %s16 = sphi 0, %s20
      %p17 = scmp.ge.s32.totalorder %s16, 9
      %s26 = sphi 0, %s28
      %s29 = sphi 0, %s26
      %s30 = sphi 0, %s29
      %s46 = sphi 0, %s30
      %s50 = sphi 0, %s50
      %s52 = sphi 0, %s50
      %s53 = sphi 0, %s52
      %s67 = sphi 0, %s53
      %s71 = sphi 0, %s71
      %s73 = sphi 0, %s71
      %s74 = sphi 0, %s73
      %s88 = sphi 0, %s74
      %s94 = sphi 0, %s96
      %s97 = sphi 0, %s94
      %s98 = sphi 0, %s97
      %s114 = sphi 0, %s98
    $region4: #{tpu_custom_call.1} parent=1 // loop_header_branch
      %19 = sbr.rel (%p17) target = $region8
    $region5: #{tpu_custom_call.1} parent=1 // loop_body
      %s21 = ssub.s32 %s16, 1
      %s22 = ssub.s32 %s16, 2
      %s23 = sadd.s32 %s16, 1
      %s24 = ssub.s32 %s16, %s23
      %p25 = scmp.eq.s32.totalorder %s24, 0
      %s27 = sadd.s32 %s26, 1
      %s28 = scalar_select %p25, %s26, %s27
      %p31 = pneg %p25
      %p32 = scmp.eq.s32.totalorder %s16, 6
      %p33 = por %p31, %p32
      %p34 = scmp.ne.s32.totalorder %s26, %s29
      %p35 = scmp.eq.s32.totalorder %s16, 0
      %p36 = por %p34, %p35
      %p37 = scmp.ne.s32.totalorder %s26, %s29
      %p38 = scmp.eq.s32.totalorder %s21, 6
      %p39 = por %p37, %p38
      %p40 = scmp.ne.s32.totalorder %s29, %s30
      %p41 = scmp.eq.s32.totalorder %s21, 0
      %p42 = por %p40, %p41
      %p43 = scmp.ne.s32.totalorder %s29, %s30
      %p44 = scmp.eq.s32.totalorder %s22, 6
      %p45 = por %p43, %p44
      %p47 = scmp.ne.s32.totalorder %s30, %s46
      %p48 = scmp.eq.s32.totalorder %s22, 0
      %p49 = por %p47, %p48
      %s51 = sadd.s32 %s50, 1
      %p54 = scmp.eq.s32.totalorder %s16, 6
      %p55 = scmp.ne.s32.totalorder %s50, %s52
      %p56 = scmp.eq.s32.totalorder %s16, 0
      %p57 = por %p55, %p56
      %p58 = scmp.ne.s32.totalorder %s50, %s52
      %p59 = scmp.eq.s32.totalorder %s21, 6
      %p60 = por %p58, %p59
      %p61 = scmp.ne.s32.totalorder %s52, %s53
      %p62 = scmp.eq.s32.totalorder %s21, 0
      %p63 = por %p61, %p62
      %p64 = scmp.ne.s32.totalorder %s52, %s53
      %p65 = scmp.eq.s32.totalorder %s22, 6
      %p66 = por %p64, %p65
      %p68 = scmp.ne.s32.totalorder %s53, %s67
      %p69 = scmp.eq.s32.totalorder %s22, 0
      %p70 = por %p68, %p69
      %s72 = sadd.s32 %s71, 1
      %p75 = scmp.eq.s32.totalorder %s16, 6
      %p76 = scmp.ne.s32.totalorder %s71, %s73
      %p77 = scmp.eq.s32.totalorder %s16, 0
      %p78 = por %p76, %p77
      %p79 = scmp.ne.s32.totalorder %s71, %s73
      %p80 = scmp.eq.s32.totalorder %s21, 6
      %p81 = por %p79, %p80
      %p82 = scmp.ne.s32.totalorder %s73, %s74
      %p83 = scmp.eq.s32.totalorder %s21, 0
      %p84 = por %p82, %p83
      %p85 = scmp.ne.s32.totalorder %s73, %s74
      %p86 = scmp.eq.s32.totalorder %s22, 6
      %p87 = por %p85, %p86
      %p89 = scmp.ne.s32.totalorder %s74, %s88
      %p90 = scmp.eq.s32.totalorder %s22, 0
      %p91 = por %p89, %p90
      %s92 = ssub.s32 %s16, %s23
      %p93 = scmp.eq.s32.totalorder %s92, 0
      %s95 = sadd.s32 %s94, 1
      %s96 = scalar_select %p93, %s94, %s95
      %p99 = pneg %p93
      %p100 = scmp.eq.s32.totalorder %s16, 6
      %p101 = por %p99, %p100
      %p102 = scmp.ne.s32.totalorder %s94, %s97
      %p103 = scmp.eq.s32.totalorder %s16, 0
      %p104 = por %p102, %p103
      %p105 = scmp.ne.s32.totalorder %s94, %s97
      %p106 = scmp.eq.s32.totalorder %s21, 6
      %p107 = por %p105, %p106
      %p108 = scmp.ne.s32.totalorder %s97, %s98
      %p109 = scmp.eq.s32.totalorder %s21, 0
      %p110 = por %p108, %p109
      %p111 = scmp.ne.s32.totalorder %s97, %s98
      %p112 = scmp.eq.s32.totalorder %s22, 6
      %p113 = por %p111, %p112
      %p115 = scmp.ne.s32.totalorder %s98, %s114
      %p116 = scmp.eq.s32.totalorder %s22, 0
      %p117 = por %p115, %p116
      %p118 = scmp.le.s32.totalorder 1, %s16
      %p119 = scmp.lt.s32.totalorder %s16, 8
      %p120 = pnand %p118, %p119
      %p121 = pneg %p120
      // Predicated region
      $region9: #{tpu_custom_call.1} parent=5 // pred_check
        _
      $region10: #{tpu_custom_call.1} parent=5 // pred_check_branch
        %123 = sbr.rel (%p120) target = $region12
      $region11: #{tpu_custom_call.1} parent=5 // pred_region
        %s124 = ssub.s32 %s16, 1
        // Predicated region
        $region13: #{tpu_custom_call.1} parent=11 // pred_check
          %p125 = pneg %p63
        $region14: #{tpu_custom_call.1} parent=11 // pred_check_branch
          %127 = sbr.rel (%p125) target = $region16
        $region15: #{tpu_custom_call.1} parent=11 // pred_region
          %s129 = ssub.s32 1024, 1024
          %130 = vsyncadd [#allocation6], %s129
          %s131 = sshll.u32 [#allocation5], 4
          %s132 = int_to_ptr.vmem [resolvable:$true] %s131
          %137 = dma.hbm_to_vmem [thread:$0]  %s1, 1024, %s132, [#allocation6], 64, 64, 4
        $region16: #{tpu_custom_call.1} parent=11 // pred_fallthru
          _
        // Predicated region
        $region17: #{tpu_custom_call.1} parent=11 // pred_check
          %p138 = pneg %p84
        $region18: #{tpu_custom_call.1} parent=11 // pred_check_branch
          %140 = sbr.rel (%p138) target = $region20
        $region19: #{tpu_custom_call.1} parent=11 // pred_region
          %s142 = ssub.s32 16, 16
          %143 = vsyncadd [#allocation6], %s142
          %s145 = sshll.u32 [#allocation7], 4
          %s146 = int_to_ptr.vmem [resolvable:$true] %s145
          %148 = dma.hbm_to_vmem [thread:$0]  %s2, 16, %s146, [#allocation6]
        $region20: #{tpu_custom_call.1} parent=11 // pred_fallthru
          _
      $region12: #{tpu_custom_call.1} parent=5 // pred_fallthru
        _
      %p149 = scmp.lt.s32.totalorder %s16, 7
      // Predicated region
      $region21: #{tpu_custom_call.1} parent=5 // pred_check
        %p150 = pneg %p149
      $region22: #{tpu_custom_call.1} parent=5 // pred_check_branch
        %152 = sbr.rel (%p150) target = $region24
      $region23: #{tpu_custom_call.1} parent=5 // pred_region
        // Predicated region
        $region25: #{tpu_custom_call.1} parent=23 // pred_check
          %p153 = pneg %p36
        $region26: #{tpu_custom_call.1} parent=23 // pred_check_branch
          %155 = sbr.rel (%p153) target = $region28
        $region27: #{tpu_custom_call.1} parent=23 // pred_region
          %s156 = sand.u32 %s26, 1
          %s157 = scalar_lea.sflag [#allocation3], %s156
          %s158 = sand.u32 %s26, 1
          %s159 = smul.addr %s158, 920
          %s160 = scalar_lea.vmem [#allocation2], %s159
          %s161 = smul.u32 230, %s16
          %s163 = ssub.s32 14720, 14720
          %164 = vsyncadd %s157, %s163
          %s165 = smul.addr %s161, 64
          %s166 = scalar_lea.hbm %s0, %s165
          %s167 = sshll.u32 %s160, 4
          %s168 = int_to_ptr.vmem [resolvable:$true] %s167
          %173 = dma.hbm_to_vmem [thread:$0]  %s166, 14720, %s168, %s157, 64, 64, 4
        $region28: #{tpu_custom_call.1} parent=23 // pred_fallthru
          _
      $region24: #{tpu_custom_call.1} parent=5 // pred_fallthru
        _
      %p174 = scmp.le.s32.totalorder 1, %s16
      %p175 = scmp.lt.s32.totalorder %s16, 8
      %p176 = pnand %p174, %p175
      %p177 = pneg %p176
      // Predicated region
      $region29: #{tpu_custom_call.1} parent=5 // pred_check
        _
      $region30: #{tpu_custom_call.1} parent=5 // pred_check_branch
        %179 = sbr.rel (%p176) target = $region32
      $region31: #{tpu_custom_call.1} parent=5 // pred_region
        %s180 = ssub.s32 %s16, 1
        %s181 = sand.u32 %s29, 1
        %s182 = scalar_lea.sflag [#allocation3], %s181
        %s183 = sand.u32 %s29, 1
        %s184 = smul.addr %s183, 920
        %s185 = scalar_lea.vmem [#allocation2], %s184
        // Predicated region
        $region33: #{tpu_custom_call.1} parent=31 // pred_check
          %p186 = pneg %p42
        $region34: #{tpu_custom_call.1} parent=31 // pred_check_branch
          %188 = sbr.rel (%p186) target = $region36
        $region35: #{tpu_custom_call.1} parent=31 // pred_region
          %189 = dma.done %s182, 14720
        $region36: #{tpu_custom_call.1} parent=31 // pred_fallthru
          _
        // Predicated region
        $region37: #{tpu_custom_call.1} parent=31 // pred_check
          %p190 = pneg %p63
        $region38: #{tpu_custom_call.1} parent=31 // pred_check_branch
          %192 = sbr.rel (%p190) target = $region40
        $region39: #{tpu_custom_call.1} parent=31 // pred_region
          %193 = dma.done [#allocation6], 1024
        $region40: #{tpu_custom_call.1} parent=31 // pred_fallthru
          _
        // Predicated region
        $region41: #{tpu_custom_call.1} parent=31 // pred_check
          %p194 = pneg %p84
        $region42: #{tpu_custom_call.1} parent=31 // pred_check_branch
          %196 = sbr.rel (%p194) target = $region44
        $region43: #{tpu_custom_call.1} parent=31 // pred_region
          %197 = dma.done [#allocation6], 16
        $region44: #{tpu_custom_call.1} parent=31 // pred_fallthru
          _
        %s198 = sand.u32 %s29, 1
        %s199 = scalar_lea.sflag [#allocation3], %s198
        %s200 = sand.u32 %s29, 1
        %s201 = smul.addr %s200, 920
        %s202 = scalar_lea.vmem [#allocation2], %s201
        %p203 = pneg %p42
        %p204 = pneg %p39
        %p205 = pneg %p63
        %p206 = pneg %p60
        %p207 = pneg %p84
        %p208 = pneg %p81
        %p209 = pneg %p110
        %p210 = pneg %p107
        %s211 = sand.u32 %s97, 1
        %s212 = scalar_lea.sflag [#allocation4], %s211
        %s213 = sand.u32 %s97, 1
        %s214 = smul.addr %s213, 920
        %s215 = scalar_lea.vmem [#allocation8], %s214
        %s216 = smul.u32 230, %s21
        %s217 = smul.u32 230, %s21
        %v219 = vld [vmem:[%s185] sm:$0xf]
        %v220 = vld [vmem:[%s185 + $0x4] sm:$0xf]
        %v221 = vld [vmem:[%s185 + $0x8] sm:$0xf]
        %v222 = vld [vmem:[%s185 + $0xc] sm:$0xf]
        %v223 = vld [vmem:[%s185 + $0x10] sm:$0xf]
        %v224 = vld [vmem:[%s185 + $0x14] sm:$0xf]
        %v225 = vld [vmem:[%s185 + $0x18] sm:$0xf]
        %v226 = vld [vmem:[%s185 + $0x1c] sm:$0xf]
        %v227 = vld [vmem:[%s185 + $0x20] sm:$0xf]
        %v228 = vld [vmem:[%s185 + $0x24] sm:$0xf]
        %v229 = vld [vmem:[%s185 + $0x28] sm:$0xf]
        %v230 = vld [vmem:[%s185 + $0x2c] sm:$0xf]
        %v231 = vld [vmem:[%s185 + $0x30] sm:$0xf]
        %v232 = vld [vmem:[%s185 + $0x34] sm:$0xf]
        %v233 = vld [vmem:[%s185 + $0x38] sm:$0xf]
        %v234 = vld [vmem:[%s185 + $0x3c] sm:$0xf]
        %v235 = vld [vmem:[%s185 + $0x40] sm:$0xf]
        %v236 = vld [vmem:[%s185 + $0x44] sm:$0xf]
        %v237 = vld [vmem:[%s185 + $0x48] sm:$0xf]
        %v238 = vld [vmem:[%s185 + $0x4c] sm:$0xf]
        %v239 = vld [vmem:[%s185 + $0x50] sm:$0xf]
        %v240 = vld [vmem:[%s185 + $0x54] sm:$0xf]
        %v241 = vld [vmem:[%s185 + $0x58] sm:$0xf]
        %v242 = vld [vmem:[%s185 + $0x5c] sm:$0xf]
        %v243 = vld [vmem:[%s185 + $0x60] sm:$0xf]
        %v244 = vld [vmem:[%s185 + $0x64] sm:$0xf]
        %v245 = vld [vmem:[%s185 + $0x68] sm:$0xf]
        %v246 = vld [vmem:[%s185 + $0x6c] sm:$0xf]
        %v247 = vld [vmem:[%s185 + $0x70] sm:$0xf]
        %v248 = vld [vmem:[%s185 + $0x74] sm:$0xf]
        %v249 = vld [vmem:[%s185 + $0x78] sm:$0xf]
        %v250 = vld [vmem:[%s185 + $0x7c] sm:$0xf]
        %v251 = vld [vmem:[%s185 + $0x80] sm:$0xf]
        %v252 = vld [vmem:[%s185 + $0x84] sm:$0xf]
        %v253 = vld [vmem:[%s185 + $0x88] sm:$0xf]
        %v254 = vld [vmem:[%s185 + $0x8c] sm:$0xf]
        %v255 = vld [vmem:[%s185 + $0x90] sm:$0xf]
        %v256 = vld [vmem:[%s185 + $0x94] sm:$0xf]
        %v257 = vld [vmem:[%s185 + $0x98] sm:$0xf]
        %v258 = vld [vmem:[%s185 + $0x9c] sm:$0xf]
        %v259 = vld [vmem:[%s185 + $0xa0] sm:$0xf]
        %v260 = vld [vmem:[%s185 + $0xa4] sm:$0xf]
        %v261 = vld [vmem:[%s185 + $0xa8] sm:$0xf]
        %v262 = vld [vmem:[%s185 + $0xac] sm:$0xf]
        %v263 = vld [vmem:[%s185 + $0xb0] sm:$0xf]
        %v264 = vld [vmem:[%s185 + $0xb4] sm:$0xf]
        %v265 = vld [vmem:[%s185 + $0xb8] sm:$0xf]
        %v266 = vld [vmem:[%s185 + $0xbc] sm:$0xf]
        %v267 = vld [vmem:[%s185 + $0xc0] sm:$0xf]
        %v268 = vld [vmem:[%s185 + $0xc4] sm:$0xf]
        %v269 = vld [vmem:[%s185 + $0xc8] sm:$0xf]
        %v270 = vld [vmem:[%s185 + $0xcc] sm:$0xf]
        %v271 = vld [vmem:[%s185 + $0xd0] sm:$0xf]
        %v272 = vld [vmem:[%s185 + $0xd4] sm:$0xf]
        %v273 = vld [vmem:[%s185 + $0xd8] sm:$0xf]
        %v274 = vld [vmem:[%s185 + $0xdc] sm:$0xf]
        %v275 = vld [vmem:[%s185 + $0xe0] sm:$0xf]
        %v276 = vld [vmem:[%s185 + $0xe4] sm:$0xf]
        %v277 = vld [vmem:[%s185 + $0xe8] sm:$0xf]
        %v278 = vld [vmem:[%s185 + $0xec] sm:$0xf]
        %v279 = vld [vmem:[%s185 + $0xf0] sm:$0xf]
        %v280 = vld [vmem:[%s185 + $0xf4] sm:$0xf]
        %v281 = vld [vmem:[%s185 + $0xf8] sm:$0xf]
        %v282 = vld [vmem:[%s185 + $0xfc] sm:$0xf]
        %v283 = vld [vmem:[%s185 + $0x100] sm:$0xf]
        %v284 = vld [vmem:[%s185 + $0x104] sm:$0xf]
        %v285 = vld [vmem:[%s185 + $0x108] sm:$0xf]
        %v286 = vld [vmem:[%s185 + $0x10c] sm:$0xf]
        %v287 = vld [vmem:[%s185 + $0x110] sm:$0xf]
        %v288 = vld [vmem:[%s185 + $0x114] sm:$0xf]
        %v289 = vld [vmem:[%s185 + $0x118] sm:$0xf]
        %v290 = vld [vmem:[%s185 + $0x11c] sm:$0xf]
        %v291 = vld [vmem:[%s185 + $0x120] sm:$0xf]
        %v292 = vld [vmem:[%s185 + $0x124] sm:$0xf]
        %v293 = vld [vmem:[%s185 + $0x128] sm:$0xf]
        %v294 = vld [vmem:[%s185 + $0x12c] sm:$0xf]
        %v295 = vld [vmem:[%s185 + $0x130] sm:$0xf]
        %v296 = vld [vmem:[%s185 + $0x134] sm:$0xf]
        %v297 = vld [vmem:[%s185 + $0x138] sm:$0xf]
        %v298 = vld [vmem:[%s185 + $0x13c] sm:$0xf]
        %v299 = vld [vmem:[%s185 + $0x140] sm:$0xf]
        %v300 = vld [vmem:[%s185 + $0x144] sm:$0xf]
        %v301 = vld [vmem:[%s185 + $0x148] sm:$0xf]
        %v302 = vld [vmem:[%s185 + $0x14c] sm:$0xf]
        %v303 = vld [vmem:[%s185 + $0x150] sm:$0xf]
        %v304 = vld [vmem:[%s185 + $0x154] sm:$0xf]
        %v305 = vld [vmem:[%s185 + $0x158] sm:$0xf]
        %v306 = vld [vmem:[%s185 + $0x15c] sm:$0xf]
        %v307 = vld [vmem:[%s185 + $0x160] sm:$0xf]
        %v308 = vld [vmem:[%s185 + $0x164] sm:$0xf]
        %v309 = vld [vmem:[%s185 + $0x168] sm:$0xf]
        %v310 = vld [vmem:[%s185 + $0x16c] sm:$0xf]
        %v311 = vld [vmem:[%s185 + $0x170] sm:$0xf]
        %v312 = vld [vmem:[%s185 + $0x174] sm:$0xf]
        %v313 = vld [vmem:[%s185 + $0x178] sm:$0xf]
        %v314 = vld [vmem:[%s185 + $0x17c] sm:$0xf]
        %v315 = vld [vmem:[%s185 + $0x180] sm:$0xf]
        %v316 = vld [vmem:[%s185 + $0x184] sm:$0xf]
        %v317 = vld [vmem:[%s185 + $0x188] sm:$0xf]
        %v318 = vld [vmem:[%s185 + $0x18c] sm:$0xf]
        %v319 = vld [vmem:[%s185 + $0x190] sm:$0xf]
        %v320 = vld [vmem:[%s185 + $0x194] sm:$0xf]
        %v321 = vld [vmem:[%s185 + $0x198] sm:$0xf]
        %v322 = vld [vmem:[%s185 + $0x19c] sm:$0xf]
        %v323 = vld [vmem:[%s185 + $0x1a0] sm:$0xf]
        %v324 = vld [vmem:[%s185 + $0x1a4] sm:$0xf]
        %v325 = vld [vmem:[%s185 + $0x1a8] sm:$0xf]
        %v326 = vld [vmem:[%s185 + $0x1ac] sm:$0xf]
        %v327 = vld [vmem:[%s185 + $0x1b0] sm:$0xf]
        %v328 = vld [vmem:[%s185 + $0x1b4] sm:$0xf]
        %v329 = vld [vmem:[%s185 + $0x1b8] sm:$0xf]
        %v330 = vld [vmem:[%s185 + $0x1bc] sm:$0xf]
        %v331 = vld [vmem:[%s185 + $0x1c0] sm:$0xf]
        %v332 = vld [vmem:[%s185 + $0x1c4] sm:$0xf]
        %v333 = vld [vmem:[%s185 + $0x1c8] sm:$0xf]
        %v334 = vld [vmem:[%s185 + $0x1cc] sm:$0xf]
        %v335 = vld [vmem:[%s185 + $0x1d0] sm:$0xf]
        %v336 = vld [vmem:[%s185 + $0x1d4] sm:$0xf]
        %v337 = vld [vmem:[%s185 + $0x1d8] sm:$0xf]
        %v338 = vld [vmem:[%s185 + $0x1dc] sm:$0xf]
        %v339 = vld [vmem:[%s185 + $0x1e0] sm:$0xf]
        %v340 = vld [vmem:[%s185 + $0x1e4] sm:$0xf]
        %v341 = vld [vmem:[%s185 + $0x1e8] sm:$0xf]
        %v342 = vld [vmem:[%s185 + $0x1ec] sm:$0xf]
        %v343 = vld [vmem:[%s185 + $0x1f0] sm:$0xf]
        %v344 = vld [vmem:[%s185 + $0x1f4] sm:$0xf]
        %v345 = vld [vmem:[%s185 + $0x1f8] sm:$0xf]
        %v346 = vld [vmem:[%s185 + $0x1fc] sm:$0xf]
        %v347 = vld [vmem:[%s185 + $0x200] sm:$0xf]
        %v348 = vld [vmem:[%s185 + $0x204] sm:$0xf]
        %v349 = vld [vmem:[%s185 + $0x208] sm:$0xf]
        %v350 = vld [vmem:[%s185 + $0x20c] sm:$0xf]
        %v351 = vld [vmem:[%s185 + $0x210] sm:$0xf]
        %v352 = vld [vmem:[%s185 + $0x214] sm:$0xf]
        %v353 = vld [vmem:[%s185 + $0x218] sm:$0xf]
        %v354 = vld [vmem:[%s185 + $0x21c] sm:$0xf]
        %v355 = vld [vmem:[%s185 + $0x220] sm:$0xf]
        %v356 = vld [vmem:[%s185 + $0x224] sm:$0xf]
        %v357 = vld [vmem:[%s185 + $0x228] sm:$0xf]
        %v358 = vld [vmem:[%s185 + $0x22c] sm:$0xf]
        %v359 = vld [vmem:[%s185 + $0x230] sm:$0xf]
        %v360 = vld [vmem:[%s185 + $0x234] sm:$0xf]
        %v361 = vld [vmem:[%s185 + $0x238] sm:$0xf]
        %v362 = vld [vmem:[%s185 + $0x23c] sm:$0xf]
        %v363 = vld [vmem:[%s185 + $0x240] sm:$0xf]
        %v364 = vld [vmem:[%s185 + $0x244] sm:$0xf]
        %v365 = vld [vmem:[%s185 + $0x248] sm:$0xf]
        %v366 = vld [vmem:[%s185 + $0x24c] sm:$0xf]
        %v367 = vld [vmem:[%s185 + $0x250] sm:$0xf]
        %v368 = vld [vmem:[%s185 + $0x254] sm:$0xf]
        %v369 = vld [vmem:[%s185 + $0x258] sm:$0xf]
        %v370 = vld [vmem:[%s185 + $0x25c] sm:$0xf]
        %v371 = vld [vmem:[%s185 + $0x260] sm:$0xf]
        %v372 = vld [vmem:[%s185 + $0x264] sm:$0xf]
        %v373 = vld [vmem:[%s185 + $0x268] sm:$0xf]
        %v374 = vld [vmem:[%s185 + $0x26c] sm:$0xf]
        %v375 = vld [vmem:[%s185 + $0x270] sm:$0xf]
        %v376 = vld [vmem:[%s185 + $0x274] sm:$0xf]
        %v377 = vld [vmem:[%s185 + $0x278] sm:$0xf]
        %v378 = vld [vmem:[%s185 + $0x27c] sm:$0xf]
        %v379 = vld [vmem:[%s185 + $0x280] sm:$0xf]
        %v380 = vld [vmem:[%s185 + $0x284] sm:$0xf]
        %v381 = vld [vmem:[%s185 + $0x288] sm:$0xf]
        %v382 = vld [vmem:[%s185 + $0x28c] sm:$0xf]
        %v383 = vld [vmem:[%s185 + $0x290] sm:$0xf]
        %v384 = vld [vmem:[%s185 + $0x294] sm:$0xf]
        %v385 = vld [vmem:[%s185 + $0x298] sm:$0xf]
        %v386 = vld [vmem:[%s185 + $0x29c] sm:$0xf]
        %v387 = vld [vmem:[%s185 + $0x2a0] sm:$0xf]
        %v388 = vld [vmem:[%s185 + $0x2a4] sm:$0xf]
        %v389 = vld [vmem:[%s185 + $0x2a8] sm:$0xf]
        %v390 = vld [vmem:[%s185 + $0x2ac] sm:$0xf]
        %v391 = vld [vmem:[%s185 + $0x2b0] sm:$0xf]
        %v392 = vld [vmem:[%s185 + $0x2b4] sm:$0xf]
        %v393 = vld [vmem:[%s185 + $0x2b8] sm:$0xf]
        %v394 = vld [vmem:[%s185 + $0x2bc] sm:$0xf]
        %v395 = vld [vmem:[%s185 + $0x2c0] sm:$0xf]
        %v396 = vld [vmem:[%s185 + $0x2c4] sm:$0xf]
        %v397 = vld [vmem:[%s185 + $0x2c8] sm:$0xf]
        %v398 = vld [vmem:[%s185 + $0x2cc] sm:$0xf]
        %v399 = vld [vmem:[%s185 + $0x2d0] sm:$0xf]
        %v400 = vld [vmem:[%s185 + $0x2d4] sm:$0xf]
        %v401 = vld [vmem:[%s185 + $0x2d8] sm:$0xf]
        %v402 = vld [vmem:[%s185 + $0x2dc] sm:$0xf]
        %v403 = vld [vmem:[%s185 + $0x2e0] sm:$0xf]
        %v404 = vld [vmem:[%s185 + $0x2e4] sm:$0xf]
        %v405 = vld [vmem:[%s185 + $0x2e8] sm:$0xf]
        %v406 = vld [vmem:[%s185 + $0x2ec] sm:$0xf]
        %v407 = vld [vmem:[%s185 + $0x2f0] sm:$0xf]
        %v408 = vld [vmem:[%s185 + $0x2f4] sm:$0xf]
        %v409 = vld [vmem:[%s185 + $0x2f8] sm:$0xf]
        %v410 = vld [vmem:[%s185 + $0x2fc] sm:$0xf]
        %v411 = vld [vmem:[%s185 + $0x300] sm:$0xf]
        %v412 = vld [vmem:[%s185 + $0x304] sm:$0xf]
        %v413 = vld [vmem:[%s185 + $0x308] sm:$0xf]
        %v414 = vld [vmem:[%s185 + $0x30c] sm:$0xf]
        %v415 = vld [vmem:[%s185 + $0x310] sm:$0xf]
        %v416 = vld [vmem:[%s185 + $0x314] sm:$0xf]
        %v417 = vld [vmem:[%s185 + $0x318] sm:$0xf]
        %v418 = vld [vmem:[%s185 + $0x31c] sm:$0xf]
        %v419 = vld [vmem:[%s185 + $0x320] sm:$0xf]
        %v420 = vld [vmem:[%s185 + $0x324] sm:$0xf]
        %v421 = vld [vmem:[%s185 + $0x328] sm:$0xf]
        %v422 = vld [vmem:[%s185 + $0x32c] sm:$0xf]
        %v423 = vld [vmem:[%s185 + $0x330] sm:$0xf]
        %v424 = vld [vmem:[%s185 + $0x334] sm:$0xf]
        %v425 = vld [vmem:[%s185 + $0x338] sm:$0xf]
        %v426 = vld [vmem:[%s185 + $0x33c] sm:$0xf]
        %v427 = vld [vmem:[%s185 + $0x340] sm:$0xf]
        %v428 = vld [vmem:[%s185 + $0x344] sm:$0xf]
        %v429 = vld [vmem:[%s185 + $0x348] sm:$0xf]
        %v430 = vld [vmem:[%s185 + $0x34c] sm:$0xf]
        %v431 = vld [vmem:[%s185 + $0x350] sm:$0xf]
        %v432 = vld [vmem:[%s185 + $0x354] sm:$0xf]
        %v433 = vld [vmem:[%s185 + $0x358] sm:$0xf]
        %v434 = vld [vmem:[%s185 + $0x35c] sm:$0xf]
        %v435 = vld [vmem:[%s185 + $0x360] sm:$0xf]
        %v436 = vld [vmem:[%s185 + $0x364] sm:$0xf]
        %v437 = vld [vmem:[%s185 + $0x368] sm:$0xf]
        %v438 = vld [vmem:[%s185 + $0x36c] sm:$0xf]
        %v439 = vld [vmem:[%s185 + $0x370] sm:$0xf]
        %v440 = vld [vmem:[%s185 + $0x374] sm:$0xf]
        %v441 = vld [vmem:[%s185 + $0x378] sm:$0xf]
        %v442 = vld [vmem:[%s185 + $0x37c] sm:$0xf]
        %v443 = vld [vmem:[%s185 + $0x380] sm:$0xf]
        %v444 = vld [vmem:[%s185 + $0x384] sm:$0xf]
        %v445 = vld [vmem:[%s185 + $0x388] sm:$0xf]
        %v446 = vld [vmem:[%s185 + $0x38c] sm:$0xf]
        %v447 = vld [vmem:[%s185 + $0x390] sm:$0xf]
        %v448 = vld [vmem:[%s185 + $0x394] sm:$0xf]
        %v449 = vld [vmem:[#allocation5] sm:$0xf]
        %v450 = vld [vmem:[#allocation5 + $0x4] sm:$0xf]
        %v451 = vld [vmem:[#allocation5 + $0x8] sm:$0xf]
        %v452 = vld [vmem:[#allocation5 + $0xc] sm:$0xf]
        %v453 = vld [vmem:[#allocation5 + $0x10] sm:$0xf]
        %v454 = vld [vmem:[#allocation5 + $0x14] sm:$0xf]
        %v455 = vld [vmem:[#allocation5 + $0x18] sm:$0xf]
        %v456 = vld [vmem:[#allocation5 + $0x1c] sm:$0xf]
        %v457 = vld [vmem:[#allocation5 + $0x20] sm:$0xf]
        %v458 = vld [vmem:[#allocation5 + $0x24] sm:$0xf]
        %v459 = vld [vmem:[#allocation5 + $0x28] sm:$0xf]
        %v460 = vld [vmem:[#allocation5 + $0x2c] sm:$0xf]
        %v461 = vld [vmem:[#allocation5 + $0x30] sm:$0xf]
        %v462 = vld [vmem:[#allocation5 + $0x34] sm:$0xf]
        %v463 = vld [vmem:[#allocation5 + $0x38] sm:$0xf]
        %v464 = vld [vmem:[#allocation5 + $0x3c] sm:$0xf]
        %v465 = vld [vmem:[#allocation7] sm:$0x1]
        %v467 = vlaneseq
        %v468 = vshrl.u32 %v467, 7
        %v469 = vsub.s32 0, %v468
        %v470 = vrot.slane %v465, %v469
        %v702 = vunpack.c.l.b16 %v219
        %v703 = vunpack.c.l.b16 %v220
        %v704 = vunpack.c.l.b16 %v221
        %v705 = vunpack.c.l.b16 %v222
        %v706 = vunpack.c.l.b16 %v223
        %v707 = vunpack.c.l.b16 %v224
        %v708 = vunpack.c.l.b16 %v225
        %v709 = vunpack.c.l.b16 %v226
        %v710 = vunpack.c.l.b16 %v227
        %v711 = vunpack.c.l.b16 %v228
        %v712 = vunpack.c.l.b16 %v229
        %v713 = vunpack.c.l.b16 %v230
        %v714 = vunpack.c.l.b16 %v231
        %v715 = vunpack.c.l.b16 %v232
        %v716 = vunpack.c.l.b16 %v233
        %v717 = vunpack.c.l.b16 %v234
        %v718 = vunpack.c.l.b16 %v235
        %v719 = vunpack.c.l.b16 %v236
        %v720 = vunpack.c.l.b16 %v237
        %v721 = vunpack.c.l.b16 %v238
        %v722 = vunpack.c.l.b16 %v239
        %v723 = vunpack.c.l.b16 %v240
        %v724 = vunpack.c.l.b16 %v241
        %v725 = vunpack.c.l.b16 %v242
        %v726 = vunpack.c.l.b16 %v243
        %v727 = vunpack.c.l.b16 %v244
        %v728 = vunpack.c.l.b16 %v245
        %v729 = vunpack.c.l.b16 %v246
        %v730 = vunpack.c.l.b16 %v247
        %v731 = vunpack.c.l.b16 %v248
        %v732 = vunpack.c.l.b16 %v249
        %v733 = vunpack.c.l.b16 %v250
        %v734 = vunpack.c.l.b16 %v251
        %v735 = vunpack.c.l.b16 %v252
        %v736 = vunpack.c.l.b16 %v253
        %v737 = vunpack.c.l.b16 %v254
        %v738 = vunpack.c.l.b16 %v255
        %v739 = vunpack.c.l.b16 %v256
        %v740 = vunpack.c.l.b16 %v257
        %v741 = vunpack.c.l.b16 %v258
        %v742 = vunpack.c.l.b16 %v259
        %v743 = vunpack.c.l.b16 %v260
        %v744 = vunpack.c.l.b16 %v261
        %v745 = vunpack.c.l.b16 %v262
        %v746 = vunpack.c.l.b16 %v263
        %v747 = vunpack.c.l.b16 %v264
        %v748 = vunpack.c.l.b16 %v265
        %v749 = vunpack.c.l.b16 %v266
        %v750 = vunpack.c.l.b16 %v267
        %v751 = vunpack.c.l.b16 %v268
        %v752 = vunpack.c.l.b16 %v269
        %v753 = vunpack.c.l.b16 %v270
        %v754 = vunpack.c.l.b16 %v271
        %v755 = vunpack.c.l.b16 %v272
        %v756 = vunpack.c.l.b16 %v273
        %v757 = vunpack.c.l.b16 %v274
        %v758 = vunpack.c.l.b16 %v275
        %v759 = vunpack.c.l.b16 %v276
        %v760 = vunpack.c.l.b16 %v277
        %v761 = vunpack.c.l.b16 %v278
        %v762 = vunpack.c.l.b16 %v279
        %v763 = vunpack.c.l.b16 %v280
        %v764 = vunpack.c.l.b16 %v281
        %v765 = vunpack.c.l.b16 %v282
        %v766 = vunpack.c.l.b16 %v283
        %v767 = vunpack.c.l.b16 %v284
        %v768 = vunpack.c.l.b16 %v285
        %v769 = vunpack.c.l.b16 %v286
        %v770 = vunpack.c.l.b16 %v287
        %v771 = vunpack.c.l.b16 %v288
        %v772 = vunpack.c.l.b16 %v289
        %v773 = vunpack.c.l.b16 %v290
        %v774 = vunpack.c.l.b16 %v291
        %v775 = vunpack.c.l.b16 %v292
        %v776 = vunpack.c.l.b16 %v293
        %v777 = vunpack.c.l.b16 %v294
        %v778 = vunpack.c.l.b16 %v295
        %v779 = vunpack.c.l.b16 %v296
        %v780 = vunpack.c.l.b16 %v297
        %v781 = vunpack.c.l.b16 %v298
        %v782 = vunpack.c.l.b16 %v299
        %v783 = vunpack.c.l.b16 %v300
        %v784 = vunpack.c.l.b16 %v301
        %v785 = vunpack.c.l.b16 %v302
        %v786 = vunpack.c.l.b16 %v303
        %v787 = vunpack.c.l.b16 %v304
        %v788 = vunpack.c.l.b16 %v305
        %v789 = vunpack.c.l.b16 %v306
        %v790 = vunpack.c.l.b16 %v307
        %v791 = vunpack.c.l.b16 %v308
        %v792 = vunpack.c.l.b16 %v309
        %v793 = vunpack.c.l.b16 %v310
        %v794 = vunpack.c.l.b16 %v311
        %v795 = vunpack.c.l.b16 %v312
        %v796 = vunpack.c.l.b16 %v313
        %v797 = vunpack.c.l.b16 %v314
        %v798 = vunpack.c.l.b16 %v315
        %v799 = vunpack.c.l.b16 %v316
        %v800 = vunpack.c.l.b16 %v317
        %v801 = vunpack.c.l.b16 %v318
        %v802 = vunpack.c.l.b16 %v319
        %v803 = vunpack.c.l.b16 %v320
        %v804 = vunpack.c.l.b16 %v321
        %v805 = vunpack.c.l.b16 %v322
        %v806 = vunpack.c.l.b16 %v323
        %v807 = vunpack.c.l.b16 %v324
        %v808 = vunpack.c.l.b16 %v325
        %v809 = vunpack.c.l.b16 %v326
        %v810 = vunpack.c.l.b16 %v327
        %v811 = vunpack.c.l.b16 %v328
        %v812 = vunpack.c.l.b16 %v329
        %v813 = vunpack.c.l.b16 %v330
        %v814 = vunpack.c.l.b16 %v331
        %v815 = vunpack.c.l.b16 %v332
        %v816 = vunpack.c.l.b16 %v333
        %v817 = vunpack.c.l.b16 %v334
        %v818 = vunpack.c.l.b16 %v335
        %v819 = vunpack.c.l.b16 %v336
        %v820 = vunpack.c.l.b16 %v337
        %v821 = vunpack.c.l.b16 %v338
        %v822 = vunpack.c.l.b16 %v339
        %v823 = vunpack.c.l.b16 %v340
        %v824 = vunpack.c.l.b16 %v341
        %v825 = vunpack.c.l.b16 %v342
        %v826 = vunpack.c.l.b16 %v343
        %v827 = vunpack.c.l.b16 %v344
        %v828 = vunpack.c.l.b16 %v345
        %v829 = vunpack.c.l.b16 %v346
        %v830 = vunpack.c.l.b16 %v347
        %v831 = vunpack.c.l.b16 %v348
        %v832 = vunpack.c.l.b16 %v349
        %v833 = vunpack.c.l.b16 %v350
        %v834 = vunpack.c.l.b16 %v351
        %v835 = vunpack.c.l.b16 %v352
        %v836 = vunpack.c.l.b16 %v353
        %v837 = vunpack.c.l.b16 %v354
        %v838 = vunpack.c.l.b16 %v355
        %v839 = vunpack.c.l.b16 %v356
        %v840 = vunpack.c.l.b16 %v357
        %v841 = vunpack.c.l.b16 %v358
        %v842 = vunpack.c.l.b16 %v359
        %v843 = vunpack.c.l.b16 %v360
        %v844 = vunpack.c.l.b16 %v361
        %v845 = vunpack.c.l.b16 %v362
        %v846 = vunpack.c.l.b16 %v363
        %v847 = vunpack.c.l.b16 %v364
        %v848 = vunpack.c.l.b16 %v365
        %v849 = vunpack.c.l.b16 %v366
        %v850 = vunpack.c.l.b16 %v367
        %v851 = vunpack.c.l.b16 %v368
        %v852 = vunpack.c.l.b16 %v369
        %v853 = vunpack.c.l.b16 %v370
        %v854 = vunpack.c.l.b16 %v371
        %v855 = vunpack.c.l.b16 %v372
        %v856 = vunpack.c.l.b16 %v373
        %v857 = vunpack.c.l.b16 %v374
        %v858 = vunpack.c.l.b16 %v375
        %v859 = vunpack.c.l.b16 %v376
        %v860 = vunpack.c.l.b16 %v377
        %v861 = vunpack.c.l.b16 %v378
        %v862 = vunpack.c.l.b16 %v379
        %v863 = vunpack.c.l.b16 %v380
        %v864 = vunpack.c.l.b16 %v381
        %v865 = vunpack.c.l.b16 %v382
        %v866 = vunpack.c.l.b16 %v383
        %v867 = vunpack.c.l.b16 %v384
        %v868 = vunpack.c.l.b16 %v385
        %v869 = vunpack.c.l.b16 %v386
        %v870 = vunpack.c.l.b16 %v387
        %v871 = vunpack.c.l.b16 %v388
        %v872 = vunpack.c.l.b16 %v389
        %v873 = vunpack.c.l.b16 %v390
        %v874 = vunpack.c.l.b16 %v391
        %v875 = vunpack.c.l.b16 %v392
        %v876 = vunpack.c.l.b16 %v393
        %v877 = vunpack.c.l.b16 %v394
        %v878 = vunpack.c.l.b16 %v395
        %v879 = vunpack.c.l.b16 %v396
        %v880 = vunpack.c.l.b16 %v397
        %v881 = vunpack.c.l.b16 %v398
        %v882 = vunpack.c.l.b16 %v399
        %v883 = vunpack.c.l.b16 %v400
        %v884 = vunpack.c.l.b16 %v401
        %v885 = vunpack.c.l.b16 %v402
        %v886 = vunpack.c.l.b16 %v403
        %v887 = vunpack.c.l.b16 %v404
        %v888 = vunpack.c.l.b16 %v405
        %v889 = vunpack.c.l.b16 %v406
        %v890 = vunpack.c.l.b16 %v407
        %v891 = vunpack.c.l.b16 %v408
        %v892 = vunpack.c.l.b16 %v409
        %v893 = vunpack.c.l.b16 %v410
        %v894 = vunpack.c.l.b16 %v411
        %v895 = vunpack.c.l.b16 %v412
        %v896 = vunpack.c.l.b16 %v413
        %v897 = vunpack.c.l.b16 %v414
        %v898 = vunpack.c.l.b16 %v415
        %v899 = vunpack.c.l.b16 %v416
        %v900 = vunpack.c.l.b16 %v417
        %v901 = vunpack.c.l.b16 %v418
        %v902 = vunpack.c.l.b16 %v419
        %v903 = vunpack.c.l.b16 %v420
        %v904 = vunpack.c.l.b16 %v421
        %v905 = vunpack.c.l.b16 %v422
        %v906 = vunpack.c.l.b16 %v423
        %v907 = vunpack.c.l.b16 %v424
        %v908 = vunpack.c.l.b16 %v425
        %v909 = vunpack.c.l.b16 %v426
        %v910 = vunpack.c.l.b16 %v427
        %v911 = vunpack.c.l.b16 %v428
        %v912 = vunpack.c.l.b16 %v429
        %v913 = vunpack.c.l.b16 %v430
        %v914 = vunpack.c.l.b16 %v431
        %v915 = vunpack.c.l.b16 %v432
        %v916 = vunpack.c.l.b16 %v433
        %v917 = vunpack.c.l.b16 %v434
        %v918 = vunpack.c.l.b16 %v435
        %v919 = vunpack.c.l.b16 %v436
        %v920 = vunpack.c.l.b16 %v437
        %v921 = vunpack.c.l.b16 %v438
        %v922 = vunpack.c.l.b16 %v439
        %v923 = vunpack.c.l.b16 %v440
        %v924 = vunpack.c.l.b16 %v441
        %v925 = vunpack.c.l.b16 %v442
        %v926 = vunpack.c.l.b16 %v443
        %v927 = vunpack.c.l.b16 %v444
        %v928 = vunpack.c.l.b16 %v445
        %v929 = vunpack.c.l.b16 %v446
        %v930 = vunpack.c.l.b16 %v447
        %v931 = vunpack.c.l.b16 %v448
        %v932 = vpack.c.b16 %v703, %v702
        %v933 = vpack.c.b16 %v705, %v704
        %v934 = vpack.c.b16 %v707, %v706
        %v935 = vpack.c.b16 %v709, %v708
        %v936 = vpack.c.b16 %v711, %v710
        %v937 = vpack.c.b16 %v713, %v712
        %v938 = vpack.c.b16 %v715, %v714
        %v939 = vpack.c.b16 %v717, %v716
        %v940 = vpack.c.b16 %v719, %v718
        %v941 = vpack.c.b16 %v721, %v720
        %v942 = vpack.c.b16 %v723, %v722
        %v943 = vpack.c.b16 %v725, %v724
        %v944 = vpack.c.b16 %v727, %v726
        %v945 = vpack.c.b16 %v729, %v728
        %v946 = vpack.c.b16 %v731, %v730
        %v947 = vpack.c.b16 %v733, %v732
        %v948 = vpack.c.b16 %v735, %v734
        %v949 = vpack.c.b16 %v737, %v736
        %v950 = vpack.c.b16 %v739, %v738
        %v951 = vpack.c.b16 %v741, %v740
        %v952 = vpack.c.b16 %v743, %v742
        %v953 = vpack.c.b16 %v745, %v744
        %v954 = vpack.c.b16 %v747, %v746
        %v955 = vpack.c.b16 %v749, %v748
        %v956 = vpack.c.b16 %v751, %v750
        %v957 = vpack.c.b16 %v753, %v752
        %v958 = vpack.c.b16 %v755, %v754
        %v959 = vpack.c.b16 %v757, %v756
        %v960 = vpack.c.b16 %v759, %v758
        %v961 = vpack.c.b16 %v761, %v760
        %v962 = vpack.c.b16 %v763, %v762
        %v963 = vpack.c.b16 %v765, %v764
        %v964 = vpack.c.b16 %v767, %v766
        %v965 = vpack.c.b16 %v769, %v768
        %v966 = vpack.c.b16 %v771, %v770
        %v967 = vpack.c.b16 %v773, %v772
        %v968 = vpack.c.b16 %v775, %v774
        %v969 = vpack.c.b16 %v777, %v776
        %v970 = vpack.c.b16 %v779, %v778
        %v971 = vpack.c.b16 %v781, %v780
        %v972 = vpack.c.b16 %v783, %v782
        %v973 = vpack.c.b16 %v785, %v784
        %v974 = vpack.c.b16 %v787, %v786
        %v975 = vpack.c.b16 %v789, %v788
        %v976 = vpack.c.b16 %v791, %v790
        %v977 = vpack.c.b16 %v793, %v792
        %v978 = vpack.c.b16 %v795, %v794
        %v979 = vpack.c.b16 %v797, %v796
        %v980 = vpack.c.b16 %v799, %v798
        %v981 = vpack.c.b16 %v801, %v800
        %v982 = vpack.c.b16 %v803, %v802
        %v983 = vpack.c.b16 %v805, %v804
        %v984 = vpack.c.b16 %v807, %v806
        %v985 = vpack.c.b16 %v809, %v808
        %v986 = vpack.c.b16 %v811, %v810
        %v987 = vpack.c.b16 %v813, %v812
        %v988 = vpack.c.b16 %v815, %v814
        %v989 = vpack.c.b16 %v817, %v816
        %v990 = vpack.c.b16 %v819, %v818
        %v991 = vpack.c.b16 %v821, %v820
        %v992 = vpack.c.b16 %v823, %v822
        %v993 = vpack.c.b16 %v825, %v824
        %v994 = vpack.c.b16 %v827, %v826
        %v995 = vpack.c.b16 %v829, %v828
        %v996 = vpack.c.b16 %v831, %v830
        %v997 = vpack.c.b16 %v833, %v832
        %v998 = vpack.c.b16 %v835, %v834
        %v999 = vpack.c.b16 %v837, %v836
        %v1000 = vpack.c.b16 %v839, %v838
        %v1001 = vpack.c.b16 %v841, %v840
        %v1002 = vpack.c.b16 %v843, %v842
        %v1003 = vpack.c.b16 %v845, %v844
        %v1004 = vpack.c.b16 %v847, %v846
        %v1005 = vpack.c.b16 %v849, %v848
        %v1006 = vpack.c.b16 %v851, %v850
        %v1007 = vpack.c.b16 %v853, %v852
        %v1008 = vpack.c.b16 %v855, %v854
        %v1009 = vpack.c.b16 %v857, %v856
        %v1010 = vpack.c.b16 %v859, %v858
        %v1011 = vpack.c.b16 %v861, %v860
        %v1012 = vpack.c.b16 %v863, %v862
        %v1013 = vpack.c.b16 %v865, %v864
        %v1014 = vpack.c.b16 %v867, %v866
        %v1015 = vpack.c.b16 %v869, %v868
        %v1016 = vpack.c.b16 %v871, %v870
        %v1017 = vpack.c.b16 %v873, %v872
        %v1018 = vpack.c.b16 %v875, %v874
        %v1019 = vpack.c.b16 %v877, %v876
        %v1020 = vpack.c.b16 %v879, %v878
        %v1021 = vpack.c.b16 %v881, %v880
        %v1022 = vpack.c.b16 %v883, %v882
        %v1023 = vpack.c.b16 %v885, %v884
        %v1024 = vpack.c.b16 %v887, %v886
        %v1025 = vpack.c.b16 %v889, %v888
        %v1026 = vpack.c.b16 %v891, %v890
        %v1027 = vpack.c.b16 %v893, %v892
        %v1028 = vpack.c.b16 %v895, %v894
        %v1029 = vpack.c.b16 %v897, %v896
        %v1030 = vpack.c.b16 %v899, %v898
        %v1031 = vpack.c.b16 %v901, %v900
        %v1032 = vpack.c.b16 %v903, %v902
        %v1033 = vpack.c.b16 %v905, %v904
        %v1034 = vpack.c.b16 %v907, %v906
        %v1035 = vpack.c.b16 %v909, %v908
        %v1036 = vpack.c.b16 %v911, %v910
        %v1037 = vpack.c.b16 %v913, %v912
        %v1038 = vpack.c.b16 %v915, %v914
        %v1039 = vpack.c.b16 %v917, %v916
        %v1040 = vpack.c.b16 %v919, %v918
        %v1041 = vpack.c.b16 %v921, %v920
        %v1042 = vpack.c.b16 %v923, %v922
        %v1043 = vpack.c.b16 %v925, %v924
        %v1044 = vpack.c.b16 %v927, %v926
        %v1045 = vpack.c.b16 %v929, %v928
        %v1046 = vpack.c.b16 %v931, %v930
        %v1178 = vunpack.c.l.b16 %v449
        %v1179 = vunpack.c.l.b16 %v450
        %v1180 = vunpack.c.l.b16 %v451
        %v1181 = vunpack.c.l.b16 %v452
        %v1182 = vunpack.c.l.b16 %v453
        %v1183 = vunpack.c.l.b16 %v454
        %v1184 = vunpack.c.l.b16 %v455
        %v1185 = vunpack.c.l.b16 %v456
        %v1186 = vunpack.c.l.b16 %v457
        %v1187 = vunpack.c.l.b16 %v458
        %v1188 = vunpack.c.l.b16 %v459
        %v1189 = vunpack.c.l.b16 %v460
        %v1190 = vunpack.c.l.b16 %v461
        %v1191 = vunpack.c.l.b16 %v462
        %v1192 = vunpack.c.l.b16 %v463
        %v1193 = vunpack.c.l.b16 %v464
        %v1194 = vpack.c.b16 %v1179, %v1178
        %v1195 = vpack.c.b16 %v1181, %v1180
        %v1196 = vpack.c.b16 %v1183, %v1182
        %v1197 = vpack.c.b16 %v1185, %v1184
        %v1198 = vpack.c.b16 %v1187, %v1186
        %v1199 = vpack.c.b16 %v1189, %v1188
        %v1200 = vpack.c.b16 %v1191, %v1190
        %v1201 = vpack.c.b16 %v1193, %v1192
        %1210 = vmatprep.subr.bf16.mxu0 0
        %1211 = vmatpush1.bf16.msra.mxu0 %v1194
        %1212 = vmatprep.subr.bf16.mxu0 0
        %1213 = vmatpush1.bf16.msra.mxu0 %v1195
        %1214 = vmatprep.subr.bf16.mxu0 0
        %1215 = vmatpush1.bf16.msra.mxu0 %v1196
        %1216 = vmatprep.subr.bf16.mxu0 0
        %1217 = vmatpush1.bf16.msra.mxu0 %v1197
        %1218 = vmatprep.subr.bf16.mxu0 0
        %1219 = vmatpush1.bf16.msra.mxu0 %v1198
        %1220 = vmatprep.subr.bf16.mxu0 0
        %1221 = vmatpush1.bf16.msra.mxu0 %v1199
        %1222 = vmatprep.subr.bf16.mxu0 0
        %1223 = vmatpush1.bf16.msra.mxu0 %v1200
        %1224 = vmatprep.subr.bf16.mxu0 0
        %1225 = vmatpush1.bf16.msra.mxu0 %v1201
        %1226 = vmatprep.subr.bf16.mxu0 0
        %1227 = vmatpush1.bf16.msra.mxu0 0
        %1228 = vmatprep.subr.bf16.mxu0 0
        %1229 = vmatpush1.bf16.msra.mxu0 0
        %1230 = vmatprep.subr.bf16.mxu0 0
        %1231 = vmatpush1.bf16.msra.mxu0 0
        %1232 = vmatprep.subr.bf16.mxu0 0
        %1233 = vmatpush1.bf16.msra.mxu0 0
        %1234 = vmatprep.subr.bf16.mxu0 0
        %1235 = vmatpush1.bf16.msra.mxu0 0
        %1236 = vmatprep.subr.bf16.mxu0 0
        %1237 = vmatpush1.bf16.msra.mxu0 0
        %1238 = vmatprep.subr.bf16.mxu0 0
        %1239 = vmatpush1.bf16.msra.mxu0 0
        %1240 = vmatprep.subr.bf16.mxu0 0
        %1241 = vmatpush1.bf16.msra.mxu0 0
        %1242 = vmatprep.mubr.bf16.mxu0 0
        %1243 = vmatmul.mubr.bf16.gmra.mrb[0].mxu0 %v932
        %v1244 = vpop.f32.mrb[0].mxu0
        %v1245 = vadd.f32 %v470, %v1244
        %v1246 = vpop.f32.mrb[0].mxu0
        %v1247 = vpop.f32.mrb[0].mxu0
        %v1248 = vadd.f32 %v470, %v1247
        %v1249 = vpop.f32.mrb[0].mxu0
        %1250 = vmatprep.mubr.bf16.mxu0 0
        %1251 = vmatmul.mubr.bf16.gmra.mrb[0].mxu0 %v933
        %v1252 = vpop.f32.mrb[0].mxu0
        %v1253 = vadd.f32 %v470, %v1252
        %v1254 = vpop.f32.mrb[0].mxu0
        %v1255 = vpop.f32.mrb[0].mxu0
        %v1256 = vadd.f32 %v470, %v1255
        %v1257 = vpop.f32.mrb[0].mxu0
        %1258 = vmatprep.mubr.bf16.mxu0 0
        %1259 = vmatmul.mubr.bf16.gmra.mrb[0].mxu0 %v934
        %v1260 = vpop.f32.mrb[0].mxu0
        %v1261 = vadd.f32 %v470, %v1260
        %v1262 = vpop.f32.mrb[0].mxu0
        %v1263 = vpop.f32.mrb[0].mxu0
        %v1264 = vadd.f32 %v470, %v1263
        %v1265 = vpop.f32.mrb[0].mxu0
        %1266 = vmatprep.mubr.bf16.mxu0 0
        %1267 = vmatmul.mubr.bf16.gmra.mrb[0].mxu0 %v935
        %v1268 = vpop.f32.mrb[0].mxu0
        %v1269 = vadd.f32 %v470, %v1268
        %v1270 = vpop.f32.mrb[0].mxu0
        %v1271 = vpop.f32.mrb[0].mxu0
        %v1272 = vadd.f32 %v470, %v1271
        %v1273 = vpop.f32.mrb[0].mxu0
        %1274 = vmatprep.mubr.bf16.mxu0 0
        %1275 = vmatmul.mubr.bf16.gmra.mrb[0].mxu0 %v936
        %v1276 = vpop.f32.mrb[0].mxu0
        %v1277 = vadd.f32 %v470, %v1276
        %v1278 = vpop.f32.mrb[0].mxu0
        %v1279 = vpop.f32.mrb[0].mxu0
        %v1280 = vadd.f32 %v470, %v1279
        %v1281 = vpop.f32.mrb[0].mxu0
        %1282 = vmatprep.mubr.bf16.mxu0 0
        %1283 = vmatmul.mubr.bf16.gmra.mrb[0].mxu0 %v937
        %v1284 = vpop.f32.mrb[0].mxu0
        %v1285 = vadd.f32 %v470, %v1284
        %v1286 = vpop.f32.mrb[0].mxu0
        %v1287 = vpop.f32.mrb[0].mxu0
        %v1288 = vadd.f32 %v470, %v1287
        %v1289 = vpop.f32.mrb[0].mxu0
        %1290 = vmatprep.mubr.bf16.mxu0 0
        %1291 = vmatmul.mubr.bf16.gmra.mrb[0].mxu0 %v938
        %v1292 = vpop.f32.mrb[0].mxu0
        %v1293 = vadd.f32 %v470, %v1292
        %v1294 = vpop.f32.mrb[0].mxu0
        %v1295 = vpop.f32.mrb[0].mxu0
        %v1296 = vadd.f32 %v470, %v1295
        %v1297 = vpop.f32.mrb[0].mxu0
        %1298 = vmatprep.mubr.bf16.mxu0 0
        %1299 = vmatmul.mubr.bf16.gmra.mrb[0].mxu0 %v939
        %v1300 = vpop.f32.mrb[0].mxu0
        %v1301 = vadd.f32 %v470, %v1300
        %v1302 = vpop.f32.mrb[0].mxu0
        %v1303 = vpop.f32.mrb[0].mxu0
        %v1304 = vadd.f32 %v470, %v1303
        %v1305 = vpop.f32.mrb[0].mxu0
        %1306 = vmatprep.mubr.bf16.mxu0 0
        %1307 = vmatmul.mubr.bf16.gmra.mrb[0].mxu0 %v940
        %v1308 = vpop.f32.mrb[0].mxu0
        %v1309 = vadd.f32 %v470, %v1308
        %v1310 = vpop.f32.mrb[0].mxu0
        %v1311 = vpop.f32.mrb[0].mxu0
        %v1312 = vadd.f32 %v470, %v1311
        %v1313 = vpop.f32.mrb[0].mxu0
        %1314 = vmatprep.mubr.bf16.mxu0 0
        %1315 = vmatmul.mubr.bf16.gmra.mrb[0].mxu0 %v941
        %v1316 = vpop.f32.mrb[0].mxu0
        %v1317 = vadd.f32 %v470, %v1316
        %v1318 = vpop.f32.mrb[0].mxu0
        %v1319 = vpop.f32.mrb[0].mxu0
        %v1320 = vadd.f32 %v470, %v1319
        %v1321 = vpop.f32.mrb[0].mxu0
        %1322 = vmatprep.mubr.bf16.mxu0 0
        %1323 = vmatmul.mubr.bf16.gmra.mrb[0].mxu0 %v942
        %v1324 = vpop.f32.mrb[0].mxu0
        %v1325 = vadd.f32 %v470, %v1324
        %v1326 = vpop.f32.mrb[0].mxu0
        %v1327 = vpop.f32.mrb[0].mxu0
        %v1328 = vadd.f32 %v470, %v1327
        %v1329 = vpop.f32.mrb[0].mxu0
        %1330 = vmatprep.mubr.bf16.mxu0 0
        %1331 = vmatmul.mubr.bf16.gmra.mrb[0].mxu0 %v943
        %v1332 = vpop.f32.mrb[0].mxu0
        %v1333 = vadd.f32 %v470, %v1332
        %v1334 = vpop.f32.mrb[0].mxu0
        %v1335 = vpop.f32.mrb[0].mxu0
        %v1336 = vadd.f32 %v470, %v1335
        %v1337 = vpop.f32.mrb[0].mxu0
        %1338 = vmatprep.mubr.bf16.mxu0 0
        %1339 = vmatmul.mubr.bf16.gmra.mrb[0].mxu0 %v944
        %v1340 = vpop.f32.mrb[0].mxu0
        %v1341 = vadd.f32 %v470, %v1340
        %v1342 = vpop.f32.mrb[0].mxu0
        %v1343 = vpop.f32.mrb[0].mxu0
        %v1344 = vadd.f32 %v470, %v1343
        %v1345 = vpop.f32.mrb[0].mxu0
        %1346 = vmatprep.mubr.bf16.mxu0 0
        %1347 = vmatmul.mubr.bf16.gmra.mrb[0].mxu0 %v945
        %v1348 = vpop.f32.mrb[0].mxu0
        %v1349 = vadd.f32 %v470, %v1348
        %v1350 = vpop.f32.mrb[0].mxu0
        %v1351 = vpop.f32.mrb[0].mxu0
        %v1352 = vadd.f32 %v470, %v1351
        %v1353 = vpop.f32.mrb[0].mxu0
        %1354 = vmatprep.mubr.bf16.mxu0 0
        %1355 = vmatmul.mubr.bf16.gmra.mrb[0].mxu0 %v946
        %v1356 = vpop.f32.mrb[0].mxu0
        %v1357 = vadd.f32 %v470, %v1356
        %v1358 = vpop.f32.mrb[0].mxu0
        %v1359 = vpop.f32.mrb[0].mxu0
        %v1360 = vadd.f32 %v470, %v1359
        %v1361 = vpop.f32.mrb[0].mxu0
        %1362 = vmatprep.mubr.bf16.mxu0 0
        %1363 = vmatmul.mubr.bf16.gmra.mrb[0].mxu0 %v947
        %v1364 = vpop.f32.mrb[0].mxu0
        %v1365 = vadd.f32 %v470, %v1364
        %v1366 = vpop.f32.mrb[0].mxu0
        %v1367 = vpop.f32.mrb[0].mxu0
        %v1368 = vadd.f32 %v470, %v1367
        %v1369 = vpop.f32.mrb[0].mxu0
        %1370 = vmatprep.mubr.bf16.mxu0 0
        %1371 = vmatmul.mubr.bf16.gmra.mrb[0].mxu0 %v948
        %v1372 = vpop.f32.mrb[0].mxu0
        %v1373 = vadd.f32 %v470, %v1372
        %v1374 = vpop.f32.mrb[0].mxu0
        %v1375 = vpop.f32.mrb[0].mxu0
        %v1376 = vadd.f32 %v470, %v1375
        %v1377 = vpop.f32.mrb[0].mxu0
        %1378 = vmatprep.mubr.bf16.mxu0 0
        %1379 = vmatmul.mubr.bf16.gmra.mrb[0].mxu0 %v949
        %v1380 = vpop.f32.mrb[0].mxu0
        %v1381 = vadd.f32 %v470, %v1380
        %v1382 = vpop.f32.mrb[0].mxu0
        %v1383 = vpop.f32.mrb[0].mxu0
        %v1384 = vadd.f32 %v470, %v1383
        %v1385 = vpop.f32.mrb[0].mxu0
        %1386 = vmatprep.mubr.bf16.mxu0 0
        %1387 = vmatmul.mubr.bf16.gmra.mrb[0].mxu0 %v950
        %v1388 = vpop.f32.mrb[0].mxu0
        %v1389 = vadd.f32 %v470, %v1388
        %v1390 = vpop.f32.mrb[0].mxu0
        %v1391 = vpop.f32.mrb[0].mxu0
        %v1392 = vadd.f32 %v470, %v1391
        %v1393 = vpop.f32.mrb[0].mxu0
        %1394 = vmatprep.mubr.bf16.mxu0 0
        %1395 = vmatmul.mubr.bf16.gmra.mrb[0].mxu0 %v951
        %v1396 = vpop.f32.mrb[0].mxu0
        %v1397 = vadd.f32 %v470, %v1396
        %v1398 = vpop.f32.mrb[0].mxu0
        %v1399 = vpop.f32.mrb[0].mxu0
        %v1400 = vadd.f32 %v470, %v1399
        %v1401 = vpop.f32.mrb[0].mxu0
        %1402 = vmatprep.mubr.bf16.mxu0 0
        %1403 = vmatmul.mubr.bf16.gmra.mrb[0].mxu0 %v952
        %v1404 = vpop.f32.mrb[0].mxu0
        %v1405 = vadd.f32 %v470, %v1404
        %v1406 = vpop.f32.mrb[0].mxu0
        %v1407 = vpop.f32.mrb[0].mxu0
        %v1408 = vadd.f32 %v470, %v1407
        %v1409 = vpop.f32.mrb[0].mxu0
        %1410 = vmatprep.mubr.bf16.mxu0 0
        %1411 = vmatmul.mubr.bf16.gmra.mrb[0].mxu0 %v953
        %v1412 = vpop.f32.mrb[0].mxu0
        %v1413 = vadd.f32 %v470, %v1412
        %v1414 = vpop.f32.mrb[0].mxu0
        %v1415 = vpop.f32.mrb[0].mxu0
        %v1416 = vadd.f32 %v470, %v1415
        %v1417 = vpop.f32.mrb[0].mxu0
        %1418 = vmatprep.mubr.bf16.mxu0 0
        %1419 = vmatmul.mubr.bf16.gmra.mrb[0].mxu0 %v954
        %v1420 = vpop.f32.mrb[0].mxu0
        %v1421 = vadd.f32 %v470, %v1420
        %v1422 = vpop.f32.mrb[0].mxu0
        %v1423 = vpop.f32.mrb[0].mxu0
        %v1424 = vadd.f32 %v470, %v1423
        %v1425 = vpop.f32.mrb[0].mxu0
        %1426 = vmatprep.mubr.bf16.mxu0 0
        %1427 = vmatmul.mubr.bf16.gmra.mrb[0].mxu0 %v955
        %v1428 = vpop.f32.mrb[0].mxu0
        %v1429 = vadd.f32 %v470, %v1428
        %v1430 = vpop.f32.mrb[0].mxu0
        %v1431 = vpop.f32.mrb[0].mxu0
        %v1432 = vadd.f32 %v470, %v1431
        %v1433 = vpop.f32.mrb[0].mxu0
        %1434 = vmatprep.mubr.bf16.mxu0 0
        %1435 = vmatmul.mubr.bf16.gmra.mrb[0].mxu0 %v956
        %v1436 = vpop.f32.mrb[0].mxu0
        %v1437 = vadd.f32 %v470, %v1436
        %v1438 = vpop.f32.mrb[0].mxu0
        %v1439 = vpop.f32.mrb[0].mxu0
        %v1440 = vadd.f32 %v470, %v1439
        %v1441 = vpop.f32.mrb[0].mxu0
        %1442 = vmatprep.mubr.bf16.mxu0 0
        %1443 = vmatmul.mubr.bf16.gmra.mrb[0].mxu0 %v957
        %v1444 = vpop.f32.mrb[0].mxu0
        %v1445 = vadd.f32 %v470, %v1444
        %v1446 = vpop.f32.mrb[0].mxu0
        %v1447 = vpop.f32.mrb[0].mxu0
        %v1448 = vadd.f32 %v470, %v1447
        %v1449 = vpop.f32.mrb[0].mxu0
        %1450 = vmatprep.mubr.bf16.mxu0 0
        %1451 = vmatmul.mubr.bf16.gmra.mrb[0].mxu0 %v958
        %v1452 = vpop.f32.mrb[0].mxu0
        %v1453 = vadd.f32 %v470, %v1452
        %v1454 = vpop.f32.mrb[0].mxu0
        %v1455 = vpop.f32.mrb[0].mxu0
        %v1456 = vadd.f32 %v470, %v1455
        %v1457 = vpop.f32.mrb[0].mxu0
        %1458 = vmatprep.mubr.bf16.mxu0 0
        %1459 = vmatmul.mubr.bf16.gmra.mrb[0].mxu0 %v959
        %v1460 = vpop.f32.mrb[0].mxu0
        %v1461 = vadd.f32 %v470, %v1460
        %v1462 = vpop.f32.mrb[0].mxu0
        %v1463 = vpop.f32.mrb[0].mxu0
        %v1464 = vadd.f32 %v470, %v1463
        %v1465 = vpop.f32.mrb[0].mxu0
        %1466 = vmatprep.mubr.bf16.mxu0 0
        %1467 = vmatmul.mubr.bf16.gmra.mrb[0].mxu0 %v960
        %v1468 = vpop.f32.mrb[0].mxu0
        %v1469 = vadd.f32 %v470, %v1468
        %v1470 = vpop.f32.mrb[0].mxu0
        %v1471 = vpop.f32.mrb[0].mxu0
        %v1472 = vadd.f32 %v470, %v1471
        %v1473 = vpop.f32.mrb[0].mxu0
        %1474 = vmatprep.mubr.bf16.mxu0 0
        %1475 = vmatmul.mubr.bf16.gmra.mrb[0].mxu0 %v961
        %v1476 = vpop.f32.mrb[0].mxu0
        %v1477 = vadd.f32 %v470, %v1476
        %v1478 = vpop.f32.mrb[0].mxu0
        %v1479 = vpop.f32.mrb[0].mxu0
        %v1480 = vadd.f32 %v470, %v1479
        %v1481 = vpop.f32.mrb[0].mxu0
        %1482 = vmatprep.mubr.bf16.mxu0 0
        %1483 = vmatmul.mubr.bf16.gmra.mrb[0].mxu0 %v962
        %v1484 = vpop.f32.mrb[0].mxu0
        %v1485 = vadd.f32 %v470, %v1484
        %v1486 = vpop.f32.mrb[0].mxu0
        %v1487 = vpop.f32.mrb[0].mxu0
        %v1488 = vadd.f32 %v470, %v1487
        %v1489 = vpop.f32.mrb[0].mxu0
        %1490 = vmatprep.mubr.bf16.mxu0 0
        %1491 = vmatmul.mubr.bf16.gmra.mrb[0].mxu0 %v963
        %v1492 = vpop.f32.mrb[0].mxu0
        %v1493 = vadd.f32 %v470, %v1492
        %v1494 = vpop.f32.mrb[0].mxu0
        %v1495 = vpop.f32.mrb[0].mxu0
        %v1496 = vadd.f32 %v470, %v1495
        %v1497 = vpop.f32.mrb[0].mxu0
        %1498 = vmatprep.mubr.bf16.mxu0 0
        %1499 = vmatmul.mubr.bf16.gmra.mrb[0].mxu0 %v964
        %v1500 = vpop.f32.mrb[0].mxu0
        %v1501 = vadd.f32 %v470, %v1500
        %v1502 = vpop.f32.mrb[0].mxu0
        %v1503 = vpop.f32.mrb[0].mxu0
        %v1504 = vadd.f32 %v470, %v1503
        %v1505 = vpop.f32.mrb[0].mxu0
        %1506 = vmatprep.mubr.bf16.mxu0 0
        %1507 = vmatmul.mubr.bf16.gmra.mrb[0].mxu0 %v965
        %v1508 = vpop.f32.mrb[0].mxu0
        %v1509 = vadd.f32 %v470, %v1508
        %v1510 = vpop.f32.mrb[0].mxu0
        %v1511 = vpop.f32.mrb[0].mxu0
        %v1512 = vadd.f32 %v470, %v1511
        %v1513 = vpop.f32.mrb[0].mxu0
        %1514 = vmatprep.mubr.bf16.mxu0 0
        %1515 = vmatmul.mubr.bf16.gmra.mrb[0].mxu0 %v966
        %v1516 = vpop.f32.mrb[0].mxu0
        %v1517 = vadd.f32 %v470, %v1516
        %v1518 = vpop.f32.mrb[0].mxu0
        %v1519 = vpop.f32.mrb[0].mxu0
        %v1520 = vadd.f32 %v470, %v1519
        %v1521 = vpop.f32.mrb[0].mxu0
        %1522 = vmatprep.mubr.bf16.mxu0 0
        %1523 = vmatmul.mubr.bf16.gmra.mrb[0].mxu0 %v967
        %v1524 = vpop.f32.mrb[0].mxu0
        %v1525 = vadd.f32 %v470, %v1524
        %v1526 = vpop.f32.mrb[0].mxu0
        %v1527 = vpop.f32.mrb[0].mxu0
        %v1528 = vadd.f32 %v470, %v1527
        %v1529 = vpop.f32.mrb[0].mxu0
        %1530 = vmatprep.mubr.bf16.mxu0 0
        %1531 = vmatmul.mubr.bf16.gmra.mrb[0].mxu0 %v968
        %v1532 = vpop.f32.mrb[0].mxu0
        %v1533 = vadd.f32 %v470, %v1532
        %v1534 = vpop.f32.mrb[0].mxu0
        %v1535 = vpop.f32.mrb[0].mxu0
        %v1536 = vadd.f32 %v470, %v1535
        %v1537 = vpop.f32.mrb[0].mxu0
        %1538 = vmatprep.mubr.bf16.mxu0 0
        %1539 = vmatmul.mubr.bf16.gmra.mrb[0].mxu0 %v969
        %v1540 = vpop.f32.mrb[0].mxu0
        %v1541 = vadd.f32 %v470, %v1540
        %v1542 = vpop.f32.mrb[0].mxu0
        %v1543 = vpop.f32.mrb[0].mxu0
        %v1544 = vadd.f32 %v470, %v1543
        %v1545 = vpop.f32.mrb[0].mxu0
        %1546 = vmatprep.mubr.bf16.mxu0 0
        %1547 = vmatmul.mubr.bf16.gmra.mrb[0].mxu0 %v970
        %v1548 = vpop.f32.mrb[0].mxu0
        %v1549 = vadd.f32 %v470, %v1548
        %v1550 = vpop.f32.mrb[0].mxu0
        %v1551 = vpop.f32.mrb[0].mxu0
        %v1552 = vadd.f32 %v470, %v1551
        %v1553 = vpop.f32.mrb[0].mxu0
        %1554 = vmatprep.mubr.bf16.mxu0 0
        %1555 = vmatmul.mubr.bf16.gmra.mrb[0].mxu0 %v971
        %v1556 = vpop.f32.mrb[0].mxu0
        %v1557 = vadd.f32 %v470, %v1556
        %v1558 = vpop.f32.mrb[0].mxu0
        %v1559 = vpop.f32.mrb[0].mxu0
        %v1560 = vadd.f32 %v470, %v1559
        %v1561 = vpop.f32.mrb[0].mxu0
        %1562 = vmatprep.mubr.bf16.mxu0 0
        %1563 = vmatmul.mubr.bf16.gmra.mrb[0].mxu0 %v972
        %v1564 = vpop.f32.mrb[0].mxu0
        %v1565 = vadd.f32 %v470, %v1564
        %v1566 = vpop.f32.mrb[0].mxu0
        %v1567 = vpop.f32.mrb[0].mxu0
        %v1568 = vadd.f32 %v470, %v1567
        %v1569 = vpop.f32.mrb[0].mxu0
        %1570 = vmatprep.mubr.bf16.mxu0 0
        %1571 = vmatmul.mubr.bf16.gmra.mrb[0].mxu0 %v973
        %v1572 = vpop.f32.mrb[0].mxu0
        %v1573 = vadd.f32 %v470, %v1572
        %v1574 = vpop.f32.mrb[0].mxu0
        %v1575 = vpop.f32.mrb[0].mxu0
        %v1576 = vadd.f32 %v470, %v1575
        %v1577 = vpop.f32.mrb[0].mxu0
        %1578 = vmatprep.mubr.bf16.mxu0 0
        %1579 = vmatmul.mubr.bf16.gmra.mrb[0].mxu0 %v974
        %v1580 = vpop.f32.mrb[0].mxu0
        %v1581 = vadd.f32 %v470, %v1580
        %v1582 = vpop.f32.mrb[0].mxu0
        %v1583 = vpop.f32.mrb[0].mxu0
        %v1584 = vadd.f32 %v470, %v1583
        %v1585 = vpop.f32.mrb[0].mxu0
        %1586 = vmatprep.mubr.bf16.mxu0 0
        %1587 = vmatmul.mubr.bf16.gmra.mrb[0].mxu0 %v975
        %v1588 = vpop.f32.mrb[0].mxu0
        %v1589 = vadd.f32 %v470, %v1588
        %v1590 = vpop.f32.mrb[0].mxu0
        %v1591 = vpop.f32.mrb[0].mxu0
        %v1592 = vadd.f32 %v470, %v1591
        %v1593 = vpop.f32.mrb[0].mxu0
        %1594 = vmatprep.mubr.bf16.mxu0 0
        %1595 = vmatmul.mubr.bf16.gmra.mrb[0].mxu0 %v976
        %v1596 = vpop.f32.mrb[0].mxu0
        %v1597 = vadd.f32 %v470, %v1596
        %v1598 = vpop.f32.mrb[0].mxu0
        %v1599 = vpop.f32.mrb[0].mxu0
        %v1600 = vadd.f32 %v470, %v1599
        %v1601 = vpop.f32.mrb[0].mxu0
        %1602 = vmatprep.mubr.bf16.mxu0 0
        %1603 = vmatmul.mubr.bf16.gmra.mrb[0].mxu0 %v977
        %v1604 = vpop.f32.mrb[0].mxu0
        %v1605 = vadd.f32 %v470, %v1604
        %v1606 = vpop.f32.mrb[0].mxu0
        %v1607 = vpop.f32.mrb[0].mxu0
        %v1608 = vadd.f32 %v470, %v1607
        %v1609 = vpop.f32.mrb[0].mxu0
        %1610 = vmatprep.mubr.bf16.mxu0 0
        %1611 = vmatmul.mubr.bf16.gmra.mrb[0].mxu0 %v978
        %v1612 = vpop.f32.mrb[0].mxu0
        %v1613 = vadd.f32 %v470, %v1612
        %v1614 = vpop.f32.mrb[0].mxu0
        %v1615 = vpop.f32.mrb[0].mxu0
        %v1616 = vadd.f32 %v470, %v1615
        %v1617 = vpop.f32.mrb[0].mxu0
        %1618 = vmatprep.mubr.bf16.mxu0 0
        %1619 = vmatmul.mubr.bf16.gmra.mrb[0].mxu0 %v979
        %v1620 = vpop.f32.mrb[0].mxu0
        %v1621 = vadd.f32 %v470, %v1620
        %v1622 = vpop.f32.mrb[0].mxu0
        %v1623 = vpop.f32.mrb[0].mxu0
        %v1624 = vadd.f32 %v470, %v1623
        %v1625 = vpop.f32.mrb[0].mxu0
        %1626 = vmatprep.mubr.bf16.mxu0 0
        %1627 = vmatmul.mubr.bf16.gmra.mrb[0].mxu0 %v980
        %v1628 = vpop.f32.mrb[0].mxu0
        %v1629 = vadd.f32 %v470, %v1628
        %v1630 = vpop.f32.mrb[0].mxu0
        %v1631 = vpop.f32.mrb[0].mxu0
        %v1632 = vadd.f32 %v470, %v1631
        %v1633 = vpop.f32.mrb[0].mxu0
        %1634 = vmatprep.mubr.bf16.mxu0 0
        %1635 = vmatmul.mubr.bf16.gmra.mrb[0].mxu0 %v981
        %v1636 = vpop.f32.mrb[0].mxu0
        %v1637 = vadd.f32 %v470, %v1636
        %v1638 = vpop.f32.mrb[0].mxu0
        %v1639 = vpop.f32.mrb[0].mxu0
        %v1640 = vadd.f32 %v470, %v1639
        %v1641 = vpop.f32.mrb[0].mxu0
        %1642 = vmatprep.mubr.bf16.mxu0 0
        %1643 = vmatmul.mubr.bf16.gmra.mrb[0].mxu0 %v982
        %v1644 = vpop.f32.mrb[0].mxu0
        %v1645 = vadd.f32 %v470, %v1644
        %v1646 = vpop.f32.mrb[0].mxu0
        %v1647 = vpop.f32.mrb[0].mxu0
        %v1648 = vadd.f32 %v470, %v1647
        %v1649 = vpop.f32.mrb[0].mxu0
        %1650 = vmatprep.mubr.bf16.mxu0 0
        %1651 = vmatmul.mubr.bf16.gmra.mrb[0].mxu0 %v983
        %v1652 = vpop.f32.mrb[0].mxu0
        %v1653 = vadd.f32 %v470, %v1652
        %v1654 = vpop.f32.mrb[0].mxu0
        %v1655 = vpop.f32.mrb[0].mxu0
        %v1656 = vadd.f32 %v470, %v1655
        %v1657 = vpop.f32.mrb[0].mxu0
        %1658 = vmatprep.mubr.bf16.mxu0 0
        %1659 = vmatmul.mubr.bf16.gmra.mrb[0].mxu0 %v984
        %v1660 = vpop.f32.mrb[0].mxu0
        %v1661 = vadd.f32 %v470, %v1660
        %v1662 = vpop.f32.mrb[0].mxu0
        %v1663 = vpop.f32.mrb[0].mxu0
        %v1664 = vadd.f32 %v470, %v1663
        %v1665 = vpop.f32.mrb[0].mxu0
        %1666 = vmatprep.mubr.bf16.mxu0 0
        %1667 = vmatmul.mubr.bf16.gmra.mrb[0].mxu0 %v985
        %v1668 = vpop.f32.mrb[0].mxu0
        %v1669 = vadd.f32 %v470, %v1668
        %v1670 = vpop.f32.mrb[0].mxu0
        %v1671 = vpop.f32.mrb[0].mxu0
        %v1672 = vadd.f32 %v470, %v1671
        %v1673 = vpop.f32.mrb[0].mxu0
        %1674 = vmatprep.mubr.bf16.mxu0 0
        %1675 = vmatmul.mubr.bf16.gmra.mrb[0].mxu0 %v986
        %v1676 = vpop.f32.mrb[0].mxu0
        %v1677 = vadd.f32 %v470, %v1676
        %v1678 = vpop.f32.mrb[0].mxu0
        %v1679 = vpop.f32.mrb[0].mxu0
        %v1680 = vadd.f32 %v470, %v1679
        %v1681 = vpop.f32.mrb[0].mxu0
        %1682 = vmatprep.mubr.bf16.mxu0 0
        %1683 = vmatmul.mubr.bf16.gmra.mrb[0].mxu0 %v987
        %v1684 = vpop.f32.mrb[0].mxu0
        %v1685 = vadd.f32 %v470, %v1684
        %v1686 = vpop.f32.mrb[0].mxu0
        %v1687 = vpop.f32.mrb[0].mxu0
        %v1688 = vadd.f32 %v470, %v1687
        %v1689 = vpop.f32.mrb[0].mxu0
        %1690 = vmatprep.mubr.bf16.mxu0 0
        %1691 = vmatmul.mubr.bf16.gmra.mrb[0].mxu0 %v988
        %v1692 = vpop.f32.mrb[0].mxu0
        %v1693 = vadd.f32 %v470, %v1692
        %v1694 = vpop.f32.mrb[0].mxu0
        %v1695 = vpop.f32.mrb[0].mxu0
        %v1696 = vadd.f32 %v470, %v1695
        %v1697 = vpop.f32.mrb[0].mxu0
        %1698 = vmatprep.mubr.bf16.mxu0 0
        %1699 = vmatmul.mubr.bf16.gmra.mrb[0].mxu0 %v989
        %v1700 = vpop.f32.mrb[0].mxu0
        %v1701 = vadd.f32 %v470, %v1700
        %v1702 = vpop.f32.mrb[0].mxu0
        %v1703 = vpop.f32.mrb[0].mxu0
        %v1704 = vadd.f32 %v470, %v1703
        %v1705 = vpop.f32.mrb[0].mxu0
        %1706 = vmatprep.mubr.bf16.mxu0 0
        %1707 = vmatmul.mubr.bf16.gmra.mrb[0].mxu0 %v990
        %v1708 = vpop.f32.mrb[0].mxu0
        %v1709 = vadd.f32 %v470, %v1708
        %v1710 = vpop.f32.mrb[0].mxu0
        %v1711 = vpop.f32.mrb[0].mxu0
        %v1712 = vadd.f32 %v470, %v1711
        %v1713 = vpop.f32.mrb[0].mxu0
        %1714 = vmatprep.mubr.bf16.mxu0 0
        %1715 = vmatmul.mubr.bf16.gmra.mrb[0].mxu0 %v991
        %v1716 = vpop.f32.mrb[0].mxu0
        %v1717 = vadd.f32 %v470, %v1716
        %v1718 = vpop.f32.mrb[0].mxu0
        %v1719 = vpop.f32.mrb[0].mxu0
        %v1720 = vadd.f32 %v470, %v1719
        %v1721 = vpop.f32.mrb[0].mxu0
        %1722 = vmatprep.mubr.bf16.mxu0 0
        %1723 = vmatmul.mubr.bf16.gmra.mrb[0].mxu0 %v992
        %v1724 = vpop.f32.mrb[0].mxu0
        %v1725 = vadd.f32 %v470, %v1724
        %v1726 = vpop.f32.mrb[0].mxu0
        %v1727 = vpop.f32.mrb[0].mxu0
        %v1728 = vadd.f32 %v470, %v1727
        %v1729 = vpop.f32.mrb[0].mxu0
        %1730 = vmatprep.mubr.bf16.mxu0 0
        %1731 = vmatmul.mubr.bf16.gmra.mrb[0].mxu0 %v993
        %v1732 = vpop.f32.mrb[0].mxu0
        %v1733 = vadd.f32 %v470, %v1732
        %v1734 = vpop.f32.mrb[0].mxu0
        %v1735 = vpop.f32.mrb[0].mxu0
        %v1736 = vadd.f32 %v470, %v1735
        %v1737 = vpop.f32.mrb[0].mxu0
        %1738 = vmatprep.mubr.bf16.mxu0 0
        %1739 = vmatmul.mubr.bf16.gmra.mrb[0].mxu0 %v994
        %v1740 = vpop.f32.mrb[0].mxu0
        %v1741 = vadd.f32 %v470, %v1740
        %v1742 = vpop.f32.mrb[0].mxu0
        %v1743 = vpop.f32.mrb[0].mxu0
        %v1744 = vadd.f32 %v470, %v1743
        %v1745 = vpop.f32.mrb[0].mxu0
        %1746 = vmatprep.mubr.bf16.mxu0 0
        %1747 = vmatmul.mubr.bf16.gmra.mrb[0].mxu0 %v995
        %v1748 = vpop.f32.mrb[0].mxu0
        %v1749 = vadd.f32 %v470, %v1748
        %v1750 = vpop.f32.mrb[0].mxu0
        %v1751 = vpop.f32.mrb[0].mxu0
        %v1752 = vadd.f32 %v470, %v1751
        %v1753 = vpop.f32.mrb[0].mxu0
        %1754 = vmatprep.mubr.bf16.mxu0 0
        %1755 = vmatmul.mubr.bf16.gmra.mrb[0].mxu0 %v996
        %v1756 = vpop.f32.mrb[0].mxu0
        %v1757 = vadd.f32 %v470, %v1756
        %v1758 = vpop.f32.mrb[0].mxu0
        %v1759 = vpop.f32.mrb[0].mxu0
        %v1760 = vadd.f32 %v470, %v1759
        %v1761 = vpop.f32.mrb[0].mxu0
        %1762 = vmatprep.mubr.bf16.mxu0 0
        %1763 = vmatmul.mubr.bf16.gmra.mrb[0].mxu0 %v997
        %v1764 = vpop.f32.mrb[0].mxu0
        %v1765 = vadd.f32 %v470, %v1764
        %v1766 = vpop.f32.mrb[0].mxu0
        %v1767 = vpop.f32.mrb[0].mxu0
        %v1768 = vadd.f32 %v470, %v1767
        %v1769 = vpop.f32.mrb[0].mxu0
        %1770 = vmatprep.mubr.bf16.mxu0 0
        %1771 = vmatmul.mubr.bf16.gmra.mrb[0].mxu0 %v998
        %v1772 = vpop.f32.mrb[0].mxu0
        %v1773 = vadd.f32 %v470, %v1772
        %v1774 = vpop.f32.mrb[0].mxu0
        %v1775 = vpop.f32.mrb[0].mxu0
        %v1776 = vadd.f32 %v470, %v1775
        %v1777 = vpop.f32.mrb[0].mxu0
        %1778 = vmatprep.mubr.bf16.mxu0 0
        %1779 = vmatmul.mubr.bf16.gmra.mrb[0].mxu0 %v999
        %v1780 = vpop.f32.mrb[0].mxu0
        %v1781 = vadd.f32 %v470, %v1780
        %v1782 = vpop.f32.mrb[0].mxu0
        %v1783 = vpop.f32.mrb[0].mxu0
        %v1784 = vadd.f32 %v470, %v1783
        %v1785 = vpop.f32.mrb[0].mxu0
        %1786 = vmatprep.mubr.bf16.mxu0 0
        %1787 = vmatmul.mubr.bf16.gmra.mrb[0].mxu0 %v1000
        %v1788 = vpop.f32.mrb[0].mxu0
        %v1789 = vadd.f32 %v470, %v1788
        %v1790 = vpop.f32.mrb[0].mxu0
        %v1791 = vpop.f32.mrb[0].mxu0
        %v1792 = vadd.f32 %v470, %v1791
        %v1793 = vpop.f32.mrb[0].mxu0
        %1794 = vmatprep.mubr.bf16.mxu0 0
        %1795 = vmatmul.mubr.bf16.gmra.mrb[0].mxu0 %v1001
        %v1796 = vpop.f32.mrb[0].mxu0
        %v1797 = vadd.f32 %v470, %v1796
        %v1798 = vpop.f32.mrb[0].mxu0
        %v1799 = vpop.f32.mrb[0].mxu0
        %v1800 = vadd.f32 %v470, %v1799
        %v1801 = vpop.f32.mrb[0].mxu0
        %1802 = vmatprep.mubr.bf16.mxu0 0
        %1803 = vmatmul.mubr.bf16.gmra.mrb[0].mxu0 %v1002
        %v1804 = vpop.f32.mrb[0].mxu0
        %v1805 = vadd.f32 %v470, %v1804
        %v1806 = vpop.f32.mrb[0].mxu0
        %v1807 = vpop.f32.mrb[0].mxu0
        %v1808 = vadd.f32 %v470, %v1807
        %v1809 = vpop.f32.mrb[0].mxu0
        %1810 = vmatprep.mubr.bf16.mxu0 0
        %1811 = vmatmul.mubr.bf16.gmra.mrb[0].mxu0 %v1003
        %v1812 = vpop.f32.mrb[0].mxu0
        %v1813 = vadd.f32 %v470, %v1812
        %v1814 = vpop.f32.mrb[0].mxu0
        %v1815 = vpop.f32.mrb[0].mxu0
        %v1816 = vadd.f32 %v470, %v1815
        %v1817 = vpop.f32.mrb[0].mxu0
        %1818 = vmatprep.mubr.bf16.mxu0 0
        %1819 = vmatmul.mubr.bf16.gmra.mrb[0].mxu0 %v1004
        %v1820 = vpop.f32.mrb[0].mxu0
        %v1821 = vadd.f32 %v470, %v1820
        %v1822 = vpop.f32.mrb[0].mxu0
        %v1823 = vpop.f32.mrb[0].mxu0
        %v1824 = vadd.f32 %v470, %v1823
        %v1825 = vpop.f32.mrb[0].mxu0
        %1826 = vmatprep.mubr.bf16.mxu0 0
        %1827 = vmatmul.mubr.bf16.gmra.mrb[0].mxu0 %v1005
        %v1828 = vpop.f32.mrb[0].mxu0
        %v1829 = vadd.f32 %v470, %v1828
        %v1830 = vpop.f32.mrb[0].mxu0
        %v1831 = vpop.f32.mrb[0].mxu0
        %v1832 = vadd.f32 %v470, %v1831
        %v1833 = vpop.f32.mrb[0].mxu0
        %1834 = vmatprep.mubr.bf16.mxu0 0
        %1835 = vmatmul.mubr.bf16.gmra.mrb[0].mxu0 %v1006
        %v1836 = vpop.f32.mrb[0].mxu0
        %v1837 = vadd.f32 %v470, %v1836
        %v1838 = vpop.f32.mrb[0].mxu0
        %v1839 = vpop.f32.mrb[0].mxu0
        %v1840 = vadd.f32 %v470, %v1839
        %v1841 = vpop.f32.mrb[0].mxu0
        %1842 = vmatprep.mubr.bf16.mxu0 0
        %1843 = vmatmul.mubr.bf16.gmra.mrb[0].mxu0 %v1007
        %v1844 = vpop.f32.mrb[0].mxu0
        %v1845 = vadd.f32 %v470, %v1844
        %v1846 = vpop.f32.mrb[0].mxu0
        %v1847 = vpop.f32.mrb[0].mxu0
        %v1848 = vadd.f32 %v470, %v1847
        %v1849 = vpop.f32.mrb[0].mxu0
        %1850 = vmatprep.mubr.bf16.mxu0 0
        %1851 = vmatmul.mubr.bf16.gmra.mrb[0].mxu0 %v1008
        %v1852 = vpop.f32.mrb[0].mxu0
        %v1853 = vadd.f32 %v470, %v1852
        %v1854 = vpop.f32.mrb[0].mxu0
        %v1855 = vpop.f32.mrb[0].mxu0
        %v1856 = vadd.f32 %v470, %v1855
        %v1857 = vpop.f32.mrb[0].mxu0
        %1858 = vmatprep.mubr.bf16.mxu0 0
        %1859 = vmatmul.mubr.bf16.gmra.mrb[0].mxu0 %v1009
        %v1860 = vpop.f32.mrb[0].mxu0
        %v1861 = vadd.f32 %v470, %v1860
        %v1862 = vpop.f32.mrb[0].mxu0
        %v1863 = vpop.f32.mrb[0].mxu0
        %v1864 = vadd.f32 %v470, %v1863
        %v1865 = vpop.f32.mrb[0].mxu0
        %1866 = vmatprep.mubr.bf16.mxu0 0
        %1867 = vmatmul.mubr.bf16.gmra.mrb[0].mxu0 %v1010
        %v1868 = vpop.f32.mrb[0].mxu0
        %v1869 = vadd.f32 %v470, %v1868
        %v1870 = vpop.f32.mrb[0].mxu0
        %v1871 = vpop.f32.mrb[0].mxu0
        %v1872 = vadd.f32 %v470, %v1871
        %v1873 = vpop.f32.mrb[0].mxu0
        %1874 = vmatprep.mubr.bf16.mxu0 0
        %1875 = vmatmul.mubr.bf16.gmra.mrb[0].mxu0 %v1011
        %v1876 = vpop.f32.mrb[0].mxu0
        %v1877 = vadd.f32 %v470, %v1876
        %v1878 = vpop.f32.mrb[0].mxu0
        %v1879 = vpop.f32.mrb[0].mxu0
        %v1880 = vadd.f32 %v470, %v1879
        %v1881 = vpop.f32.mrb[0].mxu0
        %1882 = vmatprep.mubr.bf16.mxu0 0
        %1883 = vmatmul.mubr.bf16.gmra.mrb[0].mxu0 %v1012
        %v1884 = vpop.f32.mrb[0].mxu0
        %v1885 = vadd.f32 %v470, %v1884
        %v1886 = vpop.f32.mrb[0].mxu0
        %v1887 = vpop.f32.mrb[0].mxu0
        %v1888 = vadd.f32 %v470, %v1887
        %v1889 = vpop.f32.mrb[0].mxu0
        %1890 = vmatprep.mubr.bf16.mxu0 0
        %1891 = vmatmul.mubr.bf16.gmra.mrb[0].mxu0 %v1013
        %v1892 = vpop.f32.mrb[0].mxu0
        %v1893 = vadd.f32 %v470, %v1892
        %v1894 = vpop.f32.mrb[0].mxu0
        %v1895 = vpop.f32.mrb[0].mxu0
        %v1896 = vadd.f32 %v470, %v1895
        %v1897 = vpop.f32.mrb[0].mxu0
        %1898 = vmatprep.mubr.bf16.mxu0 0
        %1899 = vmatmul.mubr.bf16.gmra.mrb[0].mxu0 %v1014
        %v1900 = vpop.f32.mrb[0].mxu0
        %v1901 = vadd.f32 %v470, %v1900
        %v1902 = vpop.f32.mrb[0].mxu0
        %v1903 = vpop.f32.mrb[0].mxu0
        %v1904 = vadd.f32 %v470, %v1903
        %v1905 = vpop.f32.mrb[0].mxu0
        %1906 = vmatprep.mubr.bf16.mxu0 0
        %1907 = vmatmul.mubr.bf16.gmra.mrb[0].mxu0 %v1015
        %v1908 = vpop.f32.mrb[0].mxu0
        %v1909 = vadd.f32 %v470, %v1908
        %v1910 = vpop.f32.mrb[0].mxu0
        %v1911 = vpop.f32.mrb[0].mxu0
        %v1912 = vadd.f32 %v470, %v1911
        %v1913 = vpop.f32.mrb[0].mxu0
        %1914 = vmatprep.mubr.bf16.mxu0 0
        %1915 = vmatmul.mubr.bf16.gmra.mrb[0].mxu0 %v1016
        %v1916 = vpop.f32.mrb[0].mxu0
        %v1917 = vadd.f32 %v470, %v1916
        %v1918 = vpop.f32.mrb[0].mxu0
        %v1919 = vpop.f32.mrb[0].mxu0
        %v1920 = vadd.f32 %v470, %v1919
        %v1921 = vpop.f32.mrb[0].mxu0
        %1922 = vmatprep.mubr.bf16.mxu0 0
        %1923 = vmatmul.mubr.bf16.gmra.mrb[0].mxu0 %v1017
        %v1924 = vpop.f32.mrb[0].mxu0
        %v1925 = vadd.f32 %v470, %v1924
        %v1926 = vpop.f32.mrb[0].mxu0
        %v1927 = vpop.f32.mrb[0].mxu0
        %v1928 = vadd.f32 %v470, %v1927
        %v1929 = vpop.f32.mrb[0].mxu0
        %1930 = vmatprep.mubr.bf16.mxu0 0
        %1931 = vmatmul.mubr.bf16.gmra.mrb[0].mxu0 %v1018
        %v1932 = vpop.f32.mrb[0].mxu0
        %v1933 = vadd.f32 %v470, %v1932
        %v1934 = vpop.f32.mrb[0].mxu0
        %v1935 = vpop.f32.mrb[0].mxu0
        %v1936 = vadd.f32 %v470, %v1935
        %v1937 = vpop.f32.mrb[0].mxu0
        %1938 = vmatprep.mubr.bf16.mxu0 0
        %1939 = vmatmul.mubr.bf16.gmra.mrb[0].mxu0 %v1019
        %v1940 = vpop.f32.mrb[0].mxu0
        %v1941 = vadd.f32 %v470, %v1940
        %v1942 = vpop.f32.mrb[0].mxu0
        %v1943 = vpop.f32.mrb[0].mxu0
        %v1944 = vadd.f32 %v470, %v1943
        %v1945 = vpop.f32.mrb[0].mxu0
        %1946 = vmatprep.mubr.bf16.mxu0 0
        %1947 = vmatmul.mubr.bf16.gmra.mrb[0].mxu0 %v1020
        %v1948 = vpop.f32.mrb[0].mxu0
        %v1949 = vadd.f32 %v470, %v1948
        %v1950 = vpop.f32.mrb[0].mxu0
        %v1951 = vpop.f32.mrb[0].mxu0
        %v1952 = vadd.f32 %v470, %v1951
        %v1953 = vpop.f32.mrb[0].mxu0
        %1954 = vmatprep.mubr.bf16.mxu0 0
        %1955 = vmatmul.mubr.bf16.gmra.mrb[0].mxu0 %v1021
        %v1956 = vpop.f32.mrb[0].mxu0
        %v1957 = vadd.f32 %v470, %v1956
        %v1958 = vpop.f32.mrb[0].mxu0
        %v1959 = vpop.f32.mrb[0].mxu0
        %v1960 = vadd.f32 %v470, %v1959
        %v1961 = vpop.f32.mrb[0].mxu0
        %1962 = vmatprep.mubr.bf16.mxu0 0
        %1963 = vmatmul.mubr.bf16.gmra.mrb[0].mxu0 %v1022
        %v1964 = vpop.f32.mrb[0].mxu0
        %v1965 = vadd.f32 %v470, %v1964
        %v1966 = vpop.f32.mrb[0].mxu0
        %v1967 = vpop.f32.mrb[0].mxu0
        %v1968 = vadd.f32 %v470, %v1967
        %v1969 = vpop.f32.mrb[0].mxu0
        %1970 = vmatprep.mubr.bf16.mxu0 0
        %1971 = vmatmul.mubr.bf16.gmra.mrb[0].mxu0 %v1023
        %v1972 = vpop.f32.mrb[0].mxu0
        %v1973 = vadd.f32 %v470, %v1972
        %v1974 = vpop.f32.mrb[0].mxu0
        %v1975 = vpop.f32.mrb[0].mxu0
        %v1976 = vadd.f32 %v470, %v1975
        %v1977 = vpop.f32.mrb[0].mxu0
        %1978 = vmatprep.mubr.bf16.mxu0 0
        %1979 = vmatmul.mubr.bf16.gmra.mrb[0].mxu0 %v1024
        %v1980 = vpop.f32.mrb[0].mxu0
        %v1981 = vadd.f32 %v470, %v1980
        %v1982 = vpop.f32.mrb[0].mxu0
        %v1983 = vpop.f32.mrb[0].mxu0
        %v1984 = vadd.f32 %v470, %v1983
        %v1985 = vpop.f32.mrb[0].mxu0
        %1986 = vmatprep.mubr.bf16.mxu0 0
        %1987 = vmatmul.mubr.bf16.gmra.mrb[0].mxu0 %v1025
        %v1988 = vpop.f32.mrb[0].mxu0
        %v1989 = vadd.f32 %v470, %v1988
        %v1990 = vpop.f32.mrb[0].mxu0
        %v1991 = vpop.f32.mrb[0].mxu0
        %v1992 = vadd.f32 %v470, %v1991
        %v1993 = vpop.f32.mrb[0].mxu0
        %1994 = vmatprep.mubr.bf16.mxu0 0
        %1995 = vmatmul.mubr.bf16.gmra.mrb[0].mxu0 %v1026
        %v1996 = vpop.f32.mrb[0].mxu0
        %v1997 = vadd.f32 %v470, %v1996
        %v1998 = vpop.f32.mrb[0].mxu0
        %v1999 = vpop.f32.mrb[0].mxu0
        %v2000 = vadd.f32 %v470, %v1999
        %v2001 = vpop.f32.mrb[0].mxu0
        %2002 = vmatprep.mubr.bf16.mxu0 0
        %2003 = vmatmul.mubr.bf16.gmra.mrb[0].mxu0 %v1027
        %v2004 = vpop.f32.mrb[0].mxu0
        %v2005 = vadd.f32 %v470, %v2004
        %v2006 = vpop.f32.mrb[0].mxu0
        %v2007 = vpop.f32.mrb[0].mxu0
        %v2008 = vadd.f32 %v470, %v2007
        %v2009 = vpop.f32.mrb[0].mxu0
        %2010 = vmatprep.mubr.bf16.mxu0 0
        %2011 = vmatmul.mubr.bf16.gmra.mrb[0].mxu0 %v1028
        %v2012 = vpop.f32.mrb[0].mxu0
        %v2013 = vadd.f32 %v470, %v2012
        %v2014 = vpop.f32.mrb[0].mxu0
        %v2015 = vpop.f32.mrb[0].mxu0
        %v2016 = vadd.f32 %v470, %v2015
        %v2017 = vpop.f32.mrb[0].mxu0
        %2018 = vmatprep.mubr.bf16.mxu0 0
        %2019 = vmatmul.mubr.bf16.gmra.mrb[0].mxu0 %v1029
        %v2020 = vpop.f32.mrb[0].mxu0
        %v2021 = vadd.f32 %v470, %v2020
        %v2022 = vpop.f32.mrb[0].mxu0
        %v2023 = vpop.f32.mrb[0].mxu0
        %v2024 = vadd.f32 %v470, %v2023
        %v2025 = vpop.f32.mrb[0].mxu0
        %2026 = vmatprep.mubr.bf16.mxu0 0
        %2027 = vmatmul.mubr.bf16.gmra.mrb[0].mxu0 %v1030
        %v2028 = vpop.f32.mrb[0].mxu0
        %v2029 = vadd.f32 %v470, %v2028
        %v2030 = vpop.f32.mrb[0].mxu0
        %v2031 = vpop.f32.mrb[0].mxu0
        %v2032 = vadd.f32 %v470, %v2031
        %v2033 = vpop.f32.mrb[0].mxu0
        %2034 = vmatprep.mubr.bf16.mxu0 0
        %2035 = vmatmul.mubr.bf16.gmra.mrb[0].mxu0 %v1031
        %v2036 = vpop.f32.mrb[0].mxu0
        %v2037 = vadd.f32 %v470, %v2036
        %v2038 = vpop.f32.mrb[0].mxu0
        %v2039 = vpop.f32.mrb[0].mxu0
        %v2040 = vadd.f32 %v470, %v2039
        %v2041 = vpop.f32.mrb[0].mxu0
        %2042 = vmatprep.mubr.bf16.mxu0 0
        %2043 = vmatmul.mubr.bf16.gmra.mrb[0].mxu0 %v1032
        %v2044 = vpop.f32.mrb[0].mxu0
        %v2045 = vadd.f32 %v470, %v2044
        %v2046 = vpop.f32.mrb[0].mxu0
        %v2047 = vpop.f32.mrb[0].mxu0
        %v2048 = vadd.f32 %v470, %v2047
        %v2049 = vpop.f32.mrb[0].mxu0
        %2050 = vmatprep.mubr.bf16.mxu0 0
        %2051 = vmatmul.mubr.bf16.gmra.mrb[0].mxu0 %v1033
        %v2052 = vpop.f32.mrb[0].mxu0
        %v2053 = vadd.f32 %v470, %v2052
        %v2054 = vpop.f32.mrb[0].mxu0
        %v2055 = vpop.f32.mrb[0].mxu0
        %v2056 = vadd.f32 %v470, %v2055
        %v2057 = vpop.f32.mrb[0].mxu0
        %2058 = vmatprep.mubr.bf16.mxu0 0
        %2059 = vmatmul.mubr.bf16.gmra.mrb[0].mxu0 %v1034
        %v2060 = vpop.f32.mrb[0].mxu0
        %v2061 = vadd.f32 %v470, %v2060
        %v2062 = vpop.f32.mrb[0].mxu0
        %v2063 = vpop.f32.mrb[0].mxu0
        %v2064 = vadd.f32 %v470, %v2063
        %v2065 = vpop.f32.mrb[0].mxu0
        %2066 = vmatprep.mubr.bf16.mxu0 0
        %2067 = vmatmul.mubr.bf16.gmra.mrb[0].mxu0 %v1035
        %v2068 = vpop.f32.mrb[0].mxu0
        %v2069 = vadd.f32 %v470, %v2068
        %v2070 = vpop.f32.mrb[0].mxu0
        %v2071 = vpop.f32.mrb[0].mxu0
        %v2072 = vadd.f32 %v470, %v2071
        %v2073 = vpop.f32.mrb[0].mxu0
        %2074 = vmatprep.mubr.bf16.mxu0 0
        %2075 = vmatmul.mubr.bf16.gmra.mrb[0].mxu0 %v1036
        %v2076 = vpop.f32.mrb[0].mxu0
        %v2077 = vadd.f32 %v470, %v2076
        %v2078 = vpop.f32.mrb[0].mxu0
        %v2079 = vpop.f32.mrb[0].mxu0
        %v2080 = vadd.f32 %v470, %v2079
        %v2081 = vpop.f32.mrb[0].mxu0
        %2082 = vmatprep.mubr.bf16.mxu0 0
        %2083 = vmatmul.mubr.bf16.gmra.mrb[0].mxu0 %v1037
        %v2084 = vpop.f32.mrb[0].mxu0
        %v2085 = vadd.f32 %v470, %v2084
        %v2086 = vpop.f32.mrb[0].mxu0
        %v2087 = vpop.f32.mrb[0].mxu0
        %v2088 = vadd.f32 %v470, %v2087
        %v2089 = vpop.f32.mrb[0].mxu0
        %2090 = vmatprep.mubr.bf16.mxu0 0
        %2091 = vmatmul.mubr.bf16.gmra.mrb[0].mxu0 %v1038
        %v2092 = vpop.f32.mrb[0].mxu0
        %v2093 = vadd.f32 %v470, %v2092
        %v2094 = vpop.f32.mrb[0].mxu0
        %v2095 = vpop.f32.mrb[0].mxu0
        %v2096 = vadd.f32 %v470, %v2095
        %v2097 = vpop.f32.mrb[0].mxu0
        %2098 = vmatprep.mubr.bf16.mxu0 0
        %2099 = vmatmul.mubr.bf16.gmra.mrb[0].mxu0 %v1039
        %v2100 = vpop.f32.mrb[0].mxu0
        %v2101 = vadd.f32 %v470, %v2100
        %v2102 = vpop.f32.mrb[0].mxu0
        %v2103 = vpop.f32.mrb[0].mxu0
        %v2104 = vadd.f32 %v470, %v2103
        %v2105 = vpop.f32.mrb[0].mxu0
        %2106 = vmatprep.mubr.bf16.mxu0 0
        %2107 = vmatmul.mubr.bf16.gmra.mrb[0].mxu0 %v1040
        %v2108 = vpop.f32.mrb[0].mxu0
        %v2109 = vadd.f32 %v470, %v2108
        %v2110 = vpop.f32.mrb[0].mxu0
        %v2111 = vpop.f32.mrb[0].mxu0
        %v2112 = vadd.f32 %v470, %v2111
        %v2113 = vpop.f32.mrb[0].mxu0
        %2114 = vmatprep.mubr.bf16.mxu0 0
        %2115 = vmatmul.mubr.bf16.gmra.mrb[0].mxu0 %v1041
        %v2116 = vpop.f32.mrb[0].mxu0
        %v2117 = vadd.f32 %v470, %v2116
        %v2118 = vpop.f32.mrb[0].mxu0
        %v2119 = vpop.f32.mrb[0].mxu0
        %v2120 = vadd.f32 %v470, %v2119
        %v2121 = vpop.f32.mrb[0].mxu0
        %2122 = vmatprep.mubr.bf16.mxu0 0
        %2123 = vmatmul.mubr.bf16.gmra.mrb[0].mxu0 %v1042
        %v2124 = vpop.f32.mrb[0].mxu0
        %v2125 = vadd.f32 %v470, %v2124
        %v2126 = vpop.f32.mrb[0].mxu0
        %v2127 = vpop.f32.mrb[0].mxu0
        %v2128 = vadd.f32 %v470, %v2127
        %v2129 = vpop.f32.mrb[0].mxu0
        %2130 = vmatprep.mubr.bf16.mxu0 0
        %2131 = vmatmul.mubr.bf16.gmra.mrb[0].mxu0 %v1043
        %v2132 = vpop.f32.mrb[0].mxu0
        %v2133 = vadd.f32 %v470, %v2132
        %v2134 = vpop.f32.mrb[0].mxu0
        %v2135 = vpop.f32.mrb[0].mxu0
        %v2136 = vadd.f32 %v470, %v2135
        %v2137 = vpop.f32.mrb[0].mxu0
        %2138 = vmatprep.mubr.bf16.mxu0 0
        %2139 = vmatmul.mubr.bf16.gmra.mrb[0].mxu0 %v1044
        %v2140 = vpop.f32.mrb[0].mxu0
        %v2141 = vadd.f32 %v470, %v2140
        %v2142 = vpop.f32.mrb[0].mxu0
        %v2143 = vpop.f32.mrb[0].mxu0
        %v2144 = vadd.f32 %v470, %v2143
        %v2145 = vpop.f32.mrb[0].mxu0
        %2146 = vmatprep.mubr.bf16.mxu0 0
        %2147 = vmatmul.mubr.bf16.gmra.mrb[0].mxu0 %v1045
        %v2148 = vpop.f32.mrb[0].mxu0
        %v2149 = vadd.f32 %v470, %v2148
        %v2150 = vpop.f32.mrb[0].mxu0
        %v2151 = vpop.f32.mrb[0].mxu0
        %v2152 = vadd.f32 %v470, %v2151
        %v2153 = vpop.f32.mrb[0].mxu0
        %2154 = vmatprep.mubr.bf16.mxu0 0
        %2155 = vmatmul.mubr.bf16.gmra.mrb[0].mxu0 %v1046
        %v2156 = vpop.f32.mrb[0].mxu0
        %v2157 = vadd.f32 %v470, %v2156
        %v2158 = vpop.f32.mrb[0].mxu0
        %v2159 = vpop.f32.mrb[0].mxu0
        %v2160 = vadd.f32 %v470, %v2159
        %v2161 = vpop.f32.mrb[0].mxu0
        %2162 = vdwg.mxu0
        %vm2163 = vcmp.ge.f32.partialorder %v1245, 0.0
        %vm2164 = vcmp.ge.f32.partialorder %v1248, 0.0
        %vm2165 = vcmp.ge.f32.partialorder %v1253, 0.0
        %vm2166 = vcmp.ge.f32.partialorder %v1256, 0.0
        %vm2167 = vcmp.ge.f32.partialorder %v1261, 0.0
        %vm2168 = vcmp.ge.f32.partialorder %v1264, 0.0
        %vm2169 = vcmp.ge.f32.partialorder %v1269, 0.0
        %vm2170 = vcmp.ge.f32.partialorder %v1272, 0.0
        %vm2171 = vcmp.ge.f32.partialorder %v1277, 0.0
        %vm2172 = vcmp.ge.f32.partialorder %v1280, 0.0
        %vm2173 = vcmp.ge.f32.partialorder %v1285, 0.0
        %vm2174 = vcmp.ge.f32.partialorder %v1288, 0.0
        %vm2175 = vcmp.ge.f32.partialorder %v1293, 0.0
        %vm2176 = vcmp.ge.f32.partialorder %v1296, 0.0
        %vm2177 = vcmp.ge.f32.partialorder %v1301, 0.0
        %vm2178 = vcmp.ge.f32.partialorder %v1304, 0.0
        %vm2179 = vcmp.ge.f32.partialorder %v1309, 0.0
        %vm2180 = vcmp.ge.f32.partialorder %v1312, 0.0
        %vm2181 = vcmp.ge.f32.partialorder %v1317, 0.0
        %vm2182 = vcmp.ge.f32.partialorder %v1320, 0.0
        %vm2183 = vcmp.ge.f32.partialorder %v1325, 0.0
        %vm2184 = vcmp.ge.f32.partialorder %v1328, 0.0
        %vm2185 = vcmp.ge.f32.partialorder %v1333, 0.0
        %vm2186 = vcmp.ge.f32.partialorder %v1336, 0.0
        %vm2187 = vcmp.ge.f32.partialorder %v1341, 0.0
        %vm2188 = vcmp.ge.f32.partialorder %v1344, 0.0
        %vm2189 = vcmp.ge.f32.partialorder %v1349, 0.0
        %vm2190 = vcmp.ge.f32.partialorder %v1352, 0.0
        %vm2191 = vcmp.ge.f32.partialorder %v1357, 0.0
        %vm2192 = vcmp.ge.f32.partialorder %v1360, 0.0
        %vm2193 = vcmp.ge.f32.partialorder %v1365, 0.0
        %vm2194 = vcmp.ge.f32.partialorder %v1368, 0.0
        %vm2195 = vcmp.ge.f32.partialorder %v1373, 0.0
        %vm2196 = vcmp.ge.f32.partialorder %v1376, 0.0
        %vm2197 = vcmp.ge.f32.partialorder %v1381, 0.0
        %vm2198 = vcmp.ge.f32.partialorder %v1384, 0.0
        %vm2199 = vcmp.ge.f32.partialorder %v1389, 0.0
        %vm2200 = vcmp.ge.f32.partialorder %v1392, 0.0
        %vm2201 = vcmp.ge.f32.partialorder %v1397, 0.0
        %vm2202 = vcmp.ge.f32.partialorder %v1400, 0.0
        %vm2203 = vcmp.ge.f32.partialorder %v1405, 0.0
        %vm2204 = vcmp.ge.f32.partialorder %v1408, 0.0
        %vm2205 = vcmp.ge.f32.partialorder %v1413, 0.0
        %vm2206 = vcmp.ge.f32.partialorder %v1416, 0.0
        %vm2207 = vcmp.ge.f32.partialorder %v1421, 0.0
        %vm2208 = vcmp.ge.f32.partialorder %v1424, 0.0
        %vm2209 = vcmp.ge.f32.partialorder %v1429, 0.0
        %vm2210 = vcmp.ge.f32.partialorder %v1432, 0.0
        %vm2211 = vcmp.ge.f32.partialorder %v1437, 0.0
        %vm2212 = vcmp.ge.f32.partialorder %v1440, 0.0
        %vm2213 = vcmp.ge.f32.partialorder %v1445, 0.0
        %vm2214 = vcmp.ge.f32.partialorder %v1448, 0.0
        %vm2215 = vcmp.ge.f32.partialorder %v1453, 0.0
        %vm2216 = vcmp.ge.f32.partialorder %v1456, 0.0
        %vm2217 = vcmp.ge.f32.partialorder %v1461, 0.0
        %vm2218 = vcmp.ge.f32.partialorder %v1464, 0.0
        %vm2219 = vcmp.ge.f32.partialorder %v1469, 0.0
        %vm2220 = vcmp.ge.f32.partialorder %v1472, 0.0
        %vm2221 = vcmp.ge.f32.partialorder %v1477, 0.0
        %vm2222 = vcmp.ge.f32.partialorder %v1480, 0.0
        %vm2223 = vcmp.ge.f32.partialorder %v1485, 0.0
        %vm2224 = vcmp.ge.f32.partialorder %v1488, 0.0
        %vm2225 = vcmp.ge.f32.partialorder %v1493, 0.0
        %vm2226 = vcmp.ge.f32.partialorder %v1496, 0.0
        %vm2227 = vcmp.ge.f32.partialorder %v1501, 0.0
        %vm2228 = vcmp.ge.f32.partialorder %v1504, 0.0
        %vm2229 = vcmp.ge.f32.partialorder %v1509, 0.0
        %vm2230 = vcmp.ge.f32.partialorder %v1512, 0.0
        %vm2231 = vcmp.ge.f32.partialorder %v1517, 0.0
        %vm2232 = vcmp.ge.f32.partialorder %v1520, 0.0
        %vm2233 = vcmp.ge.f32.partialorder %v1525, 0.0
        %vm2234 = vcmp.ge.f32.partialorder %v1528, 0.0
        %vm2235 = vcmp.ge.f32.partialorder %v1533, 0.0
        %vm2236 = vcmp.ge.f32.partialorder %v1536, 0.0
        %vm2237 = vcmp.ge.f32.partialorder %v1541, 0.0
        %vm2238 = vcmp.ge.f32.partialorder %v1544, 0.0
        %vm2239 = vcmp.ge.f32.partialorder %v1549, 0.0
        %vm2240 = vcmp.ge.f32.partialorder %v1552, 0.0
        %vm2241 = vcmp.ge.f32.partialorder %v1557, 0.0
        %vm2242 = vcmp.ge.f32.partialorder %v1560, 0.0
        %vm2243 = vcmp.ge.f32.partialorder %v1565, 0.0
        %vm2244 = vcmp.ge.f32.partialorder %v1568, 0.0
        %vm2245 = vcmp.ge.f32.partialorder %v1573, 0.0
        %vm2246 = vcmp.ge.f32.partialorder %v1576, 0.0
        %vm2247 = vcmp.ge.f32.partialorder %v1581, 0.0
        %vm2248 = vcmp.ge.f32.partialorder %v1584, 0.0
        %vm2249 = vcmp.ge.f32.partialorder %v1589, 0.0
        %vm2250 = vcmp.ge.f32.partialorder %v1592, 0.0
        %vm2251 = vcmp.ge.f32.partialorder %v1597, 0.0
        %vm2252 = vcmp.ge.f32.partialorder %v1600, 0.0
        %vm2253 = vcmp.ge.f32.partialorder %v1605, 0.0
        %vm2254 = vcmp.ge.f32.partialorder %v1608, 0.0
        %vm2255 = vcmp.ge.f32.partialorder %v1613, 0.0
        %vm2256 = vcmp.ge.f32.partialorder %v1616, 0.0
        %vm2257 = vcmp.ge.f32.partialorder %v1621, 0.0
        %vm2258 = vcmp.ge.f32.partialorder %v1624, 0.0
        %vm2259 = vcmp.ge.f32.partialorder %v1629, 0.0
        %vm2260 = vcmp.ge.f32.partialorder %v1632, 0.0
        %vm2261 = vcmp.ge.f32.partialorder %v1637, 0.0
        %vm2262 = vcmp.ge.f32.partialorder %v1640, 0.0
        %vm2263 = vcmp.ge.f32.partialorder %v1645, 0.0
        %vm2264 = vcmp.ge.f32.partialorder %v1648, 0.0
        %vm2265 = vcmp.ge.f32.partialorder %v1653, 0.0
        %vm2266 = vcmp.ge.f32.partialorder %v1656, 0.0
        %vm2267 = vcmp.ge.f32.partialorder %v1661, 0.0
        %vm2268 = vcmp.ge.f32.partialorder %v1664, 0.0
        %vm2269 = vcmp.ge.f32.partialorder %v1669, 0.0
        %vm2270 = vcmp.ge.f32.partialorder %v1672, 0.0
        %vm2271 = vcmp.ge.f32.partialorder %v1677, 0.0
        %vm2272 = vcmp.ge.f32.partialorder %v1680, 0.0
        %vm2273 = vcmp.ge.f32.partialorder %v1685, 0.0
        %vm2274 = vcmp.ge.f32.partialorder %v1688, 0.0
        %vm2275 = vcmp.ge.f32.partialorder %v1693, 0.0
        %vm2276 = vcmp.ge.f32.partialorder %v1696, 0.0
        %vm2277 = vcmp.ge.f32.partialorder %v1701, 0.0
        %vm2278 = vcmp.ge.f32.partialorder %v1704, 0.0
        %vm2279 = vcmp.ge.f32.partialorder %v1709, 0.0
        %vm2280 = vcmp.ge.f32.partialorder %v1712, 0.0
        %vm2281 = vcmp.ge.f32.partialorder %v1717, 0.0
        %vm2282 = vcmp.ge.f32.partialorder %v1720, 0.0
        %vm2283 = vcmp.ge.f32.partialorder %v1725, 0.0
        %vm2284 = vcmp.ge.f32.partialorder %v1728, 0.0
        %vm2285 = vcmp.ge.f32.partialorder %v1733, 0.0
        %vm2286 = vcmp.ge.f32.partialorder %v1736, 0.0
        %vm2287 = vcmp.ge.f32.partialorder %v1741, 0.0
        %vm2288 = vcmp.ge.f32.partialorder %v1744, 0.0
        %vm2289 = vcmp.ge.f32.partialorder %v1749, 0.0
        %vm2290 = vcmp.ge.f32.partialorder %v1752, 0.0
        %vm2291 = vcmp.ge.f32.partialorder %v1757, 0.0
        %vm2292 = vcmp.ge.f32.partialorder %v1760, 0.0
        %vm2293 = vcmp.ge.f32.partialorder %v1765, 0.0
        %vm2294 = vcmp.ge.f32.partialorder %v1768, 0.0
        %vm2295 = vcmp.ge.f32.partialorder %v1773, 0.0
        %vm2296 = vcmp.ge.f32.partialorder %v1776, 0.0
        %vm2297 = vcmp.ge.f32.partialorder %v1781, 0.0
        %vm2298 = vcmp.ge.f32.partialorder %v1784, 0.0
        %vm2299 = vcmp.ge.f32.partialorder %v1789, 0.0
        %vm2300 = vcmp.ge.f32.partialorder %v1792, 0.0
        %vm2301 = vcmp.ge.f32.partialorder %v1797, 0.0
        %vm2302 = vcmp.ge.f32.partialorder %v1800, 0.0
        %vm2303 = vcmp.ge.f32.partialorder %v1805, 0.0
        %vm2304 = vcmp.ge.f32.partialorder %v1808, 0.0
        %vm2305 = vcmp.ge.f32.partialorder %v1813, 0.0
        %vm2306 = vcmp.ge.f32.partialorder %v1816, 0.0
        %vm2307 = vcmp.ge.f32.partialorder %v1821, 0.0
        %vm2308 = vcmp.ge.f32.partialorder %v1824, 0.0
        %vm2309 = vcmp.ge.f32.partialorder %v1829, 0.0
        %vm2310 = vcmp.ge.f32.partialorder %v1832, 0.0
        %vm2311 = vcmp.ge.f32.partialorder %v1837, 0.0
        %vm2312 = vcmp.ge.f32.partialorder %v1840, 0.0
        %vm2313 = vcmp.ge.f32.partialorder %v1845, 0.0
        %vm2314 = vcmp.ge.f32.partialorder %v1848, 0.0
        %vm2315 = vcmp.ge.f32.partialorder %v1853, 0.0
        %vm2316 = vcmp.ge.f32.partialorder %v1856, 0.0
        %vm2317 = vcmp.ge.f32.partialorder %v1861, 0.0
        %vm2318 = vcmp.ge.f32.partialorder %v1864, 0.0
        %vm2319 = vcmp.ge.f32.partialorder %v1869, 0.0
        %vm2320 = vcmp.ge.f32.partialorder %v1872, 0.0
        %vm2321 = vcmp.ge.f32.partialorder %v1877, 0.0
        %vm2322 = vcmp.ge.f32.partialorder %v1880, 0.0
        %vm2323 = vcmp.ge.f32.partialorder %v1885, 0.0
        %vm2324 = vcmp.ge.f32.partialorder %v1888, 0.0
        %vm2325 = vcmp.ge.f32.partialorder %v1893, 0.0
        %vm2326 = vcmp.ge.f32.partialorder %v1896, 0.0
        %vm2327 = vcmp.ge.f32.partialorder %v1901, 0.0
        %vm2328 = vcmp.ge.f32.partialorder %v1904, 0.0
        %vm2329 = vcmp.ge.f32.partialorder %v1909, 0.0
        %vm2330 = vcmp.ge.f32.partialorder %v1912, 0.0
        %vm2331 = vcmp.ge.f32.partialorder %v1917, 0.0
        %vm2332 = vcmp.ge.f32.partialorder %v1920, 0.0
        %vm2333 = vcmp.ge.f32.partialorder %v1925, 0.0
        %vm2334 = vcmp.ge.f32.partialorder %v1928, 0.0
        %vm2335 = vcmp.ge.f32.partialorder %v1933, 0.0
        %vm2336 = vcmp.ge.f32.partialorder %v1936, 0.0
        %vm2337 = vcmp.ge.f32.partialorder %v1941, 0.0
        %vm2338 = vcmp.ge.f32.partialorder %v1944, 0.0
        %vm2339 = vcmp.ge.f32.partialorder %v1949, 0.0
        %vm2340 = vcmp.ge.f32.partialorder %v1952, 0.0
        %vm2341 = vcmp.ge.f32.partialorder %v1957, 0.0
        %vm2342 = vcmp.ge.f32.partialorder %v1960, 0.0
        %vm2343 = vcmp.ge.f32.partialorder %v1965, 0.0
        %vm2344 = vcmp.ge.f32.partialorder %v1968, 0.0
        %vm2345 = vcmp.ge.f32.partialorder %v1973, 0.0
        %vm2346 = vcmp.ge.f32.partialorder %v1976, 0.0
        %vm2347 = vcmp.ge.f32.partialorder %v1981, 0.0
        %vm2348 = vcmp.ge.f32.partialorder %v1984, 0.0
        %vm2349 = vcmp.ge.f32.partialorder %v1989, 0.0
        %vm2350 = vcmp.ge.f32.partialorder %v1992, 0.0
        %vm2351 = vcmp.ge.f32.partialorder %v1997, 0.0
        %vm2352 = vcmp.ge.f32.partialorder %v2000, 0.0
        %vm2353 = vcmp.ge.f32.partialorder %v2005, 0.0
        %vm2354 = vcmp.ge.f32.partialorder %v2008, 0.0
        %vm2355 = vcmp.ge.f32.partialorder %v2013, 0.0
        %vm2356 = vcmp.ge.f32.partialorder %v2016, 0.0
        %vm2357 = vcmp.ge.f32.partialorder %v2021, 0.0
        %vm2358 = vcmp.ge.f32.partialorder %v2024, 0.0
        %vm2359 = vcmp.ge.f32.partialorder %v2029, 0.0
        %vm2360 = vcmp.ge.f32.partialorder %v2032, 0.0
        %vm2361 = vcmp.ge.f32.partialorder %v2037, 0.0
        %vm2362 = vcmp.ge.f32.partialorder %v2040, 0.0
        %vm2363 = vcmp.ge.f32.partialorder %v2045, 0.0
        %vm2364 = vcmp.ge.f32.partialorder %v2048, 0.0
        %vm2365 = vcmp.ge.f32.partialorder %v2053, 0.0
        %vm2366 = vcmp.ge.f32.partialorder %v2056, 0.0
        %vm2367 = vcmp.ge.f32.partialorder %v2061, 0.0
        %vm2368 = vcmp.ge.f32.partialorder %v2064, 0.0
        %vm2369 = vcmp.ge.f32.partialorder %v2069, 0.0
        %vm2370 = vcmp.ge.f32.partialorder %v2072, 0.0
        %vm2371 = vcmp.ge.f32.partialorder %v2077, 0.0
        %vm2372 = vcmp.ge.f32.partialorder %v2080, 0.0
        %vm2373 = vcmp.ge.f32.partialorder %v2085, 0.0
        %vm2374 = vcmp.ge.f32.partialorder %v2088, 0.0
        %vm2375 = vcmp.ge.f32.partialorder %v2093, 0.0
        %vm2376 = vcmp.ge.f32.partialorder %v2096, 0.0
        %vm2377 = vcmp.ge.f32.partialorder %v2101, 0.0
        %vm2378 = vcmp.ge.f32.partialorder %v2104, 0.0
        %vm2379 = vcmp.ge.f32.partialorder %v2109, 0.0
        %vm2380 = vcmp.ge.f32.partialorder %v2112, 0.0
        %vm2381 = vcmp.ge.f32.partialorder %v2117, 0.0
        %vm2382 = vcmp.ge.f32.partialorder %v2120, 0.0
        %vm2383 = vcmp.ge.f32.partialorder %v2125, 0.0
        %vm2384 = vcmp.ge.f32.partialorder %v2128, 0.0
        %vm2385 = vcmp.ge.f32.partialorder %v2133, 0.0
        %vm2386 = vcmp.ge.f32.partialorder %v2136, 0.0
        %vm2387 = vcmp.ge.f32.partialorder %v2141, 0.0
        %vm2388 = vcmp.ge.f32.partialorder %v2144, 0.0
        %vm2389 = vcmp.ge.f32.partialorder %v2149, 0.0
        %vm2390 = vcmp.ge.f32.partialorder %v2152, 0.0
        %vm2391 = vcmp.ge.f32.partialorder %v2157, 0.0
        %vm2392 = vcmp.ge.f32.partialorder %v2160, 0.0
        %v2393 = vmul.f32 %v1245, 0.1
        %v2394 = vmul.f32 %v1248, 0.1
        %v2395 = vmul.f32 %v1253, 0.1
        %v2396 = vmul.f32 %v1256, 0.1
        %v2397 = vmul.f32 %v1261, 0.1
        %v2398 = vmul.f32 %v1264, 0.1
        %v2399 = vmul.f32 %v1269, 0.1
        %v2400 = vmul.f32 %v1272, 0.1
        %v2401 = vmul.f32 %v1277, 0.1
        %v2402 = vmul.f32 %v1280, 0.1
        %v2403 = vmul.f32 %v1285, 0.1
        %v2404 = vmul.f32 %v1288, 0.1
        %v2405 = vmul.f32 %v1293, 0.1
        %v2406 = vmul.f32 %v1296, 0.1
        %v2407 = vmul.f32 %v1301, 0.1
        %v2408 = vmul.f32 %v1304, 0.1
        %v2409 = vmul.f32 %v1309, 0.1
        %v2410 = vmul.f32 %v1312, 0.1
        %v2411 = vmul.f32 %v1317, 0.1
        %v2412 = vmul.f32 %v1320, 0.1
        %v2413 = vmul.f32 %v1325, 0.1
        %v2414 = vmul.f32 %v1328, 0.1
        %v2415 = vmul.f32 %v1333, 0.1
        %v2416 = vmul.f32 %v1336, 0.1
        %v2417 = vmul.f32 %v1341, 0.1
        %v2418 = vmul.f32 %v1344, 0.1
        %v2419 = vmul.f32 %v1349, 0.1
        %v2420 = vmul.f32 %v1352, 0.1
        %v2421 = vmul.f32 %v1357, 0.1
        %v2422 = vmul.f32 %v1360, 0.1
        %v2423 = vmul.f32 %v1365, 0.1
        %v2424 = vmul.f32 %v1368, 0.1
        %v2425 = vmul.f32 %v1373, 0.1
        %v2426 = vmul.f32 %v1376, 0.1
        %v2427 = vmul.f32 %v1381, 0.1
        %v2428 = vmul.f32 %v1384, 0.1
        %v2429 = vmul.f32 %v1389, 0.1
        %v2430 = vmul.f32 %v1392, 0.1
        %v2431 = vmul.f32 %v1397, 0.1
        %v2432 = vmul.f32 %v1400, 0.1
        %v2433 = vmul.f32 %v1405, 0.1
        %v2434 = vmul.f32 %v1408, 0.1
        %v2435 = vmul.f32 %v1413, 0.1
        %v2436 = vmul.f32 %v1416, 0.1
        %v2437 = vmul.f32 %v1421, 0.1
        %v2438 = vmul.f32 %v1424, 0.1
        %v2439 = vmul.f32 %v1429, 0.1
        %v2440 = vmul.f32 %v1432, 0.1
        %v2441 = vmul.f32 %v1437, 0.1
        %v2442 = vmul.f32 %v1440, 0.1
        %v2443 = vmul.f32 %v1445, 0.1
        %v2444 = vmul.f32 %v1448, 0.1
        %v2445 = vmul.f32 %v1453, 0.1
        %v2446 = vmul.f32 %v1456, 0.1
        %v2447 = vmul.f32 %v1461, 0.1
        %v2448 = vmul.f32 %v1464, 0.1
        %v2449 = vmul.f32 %v1469, 0.1
        %v2450 = vmul.f32 %v1472, 0.1
        %v2451 = vmul.f32 %v1477, 0.1
        %v2452 = vmul.f32 %v1480, 0.1
        %v2453 = vmul.f32 %v1485, 0.1
        %v2454 = vmul.f32 %v1488, 0.1
        %v2455 = vmul.f32 %v1493, 0.1
        %v2456 = vmul.f32 %v1496, 0.1
        %v2457 = vmul.f32 %v1501, 0.1
        %v2458 = vmul.f32 %v1504, 0.1
        %v2459 = vmul.f32 %v1509, 0.1
        %v2460 = vmul.f32 %v1512, 0.1
        %v2461 = vmul.f32 %v1517, 0.1
        %v2462 = vmul.f32 %v1520, 0.1
        %v2463 = vmul.f32 %v1525, 0.1
        %v2464 = vmul.f32 %v1528, 0.1
        %v2465 = vmul.f32 %v1533, 0.1
        %v2466 = vmul.f32 %v1536, 0.1
        %v2467 = vmul.f32 %v1541, 0.1
        %v2468 = vmul.f32 %v1544, 0.1
        %v2469 = vmul.f32 %v1549, 0.1
        %v2470 = vmul.f32 %v1552, 0.1
        %v2471 = vmul.f32 %v1557, 0.1
        %v2472 = vmul.f32 %v1560, 0.1
        %v2473 = vmul.f32 %v1565, 0.1
        %v2474 = vmul.f32 %v1568, 0.1
        %v2475 = vmul.f32 %v1573, 0.1
        %v2476 = vmul.f32 %v1576, 0.1
        %v2477 = vmul.f32 %v1581, 0.1
        %v2478 = vmul.f32 %v1584, 0.1
        %v2479 = vmul.f32 %v1589, 0.1
        %v2480 = vmul.f32 %v1592, 0.1
        %v2481 = vmul.f32 %v1597, 0.1
        %v2482 = vmul.f32 %v1600, 0.1
        %v2483 = vmul.f32 %v1605, 0.1
        %v2484 = vmul.f32 %v1608, 0.1
        %v2485 = vmul.f32 %v1613, 0.1
        %v2486 = vmul.f32 %v1616, 0.1
        %v2487 = vmul.f32 %v1621, 0.1
        %v2488 = vmul.f32 %v1624, 0.1
        %v2489 = vmul.f32 %v1629, 0.1
        %v2490 = vmul.f32 %v1632, 0.1
        %v2491 = vmul.f32 %v1637, 0.1
        %v2492 = vmul.f32 %v1640, 0.1
        %v2493 = vmul.f32 %v1645, 0.1
        %v2494 = vmul.f32 %v1648, 0.1
        %v2495 = vmul.f32 %v1653, 0.1
        %v2496 = vmul.f32 %v1656, 0.1
        %v2497 = vmul.f32 %v1661, 0.1
        %v2498 = vmul.f32 %v1664, 0.1
        %v2499 = vmul.f32 %v1669, 0.1
        %v2500 = vmul.f32 %v1672, 0.1
        %v2501 = vmul.f32 %v1677, 0.1
        %v2502 = vmul.f32 %v1680, 0.1
        %v2503 = vmul.f32 %v1685, 0.1
        %v2504 = vmul.f32 %v1688, 0.1
        %v2505 = vmul.f32 %v1693, 0.1
        %v2506 = vmul.f32 %v1696, 0.1
        %v2507 = vmul.f32 %v1701, 0.1
        %v2508 = vmul.f32 %v1704, 0.1
        %v2509 = vmul.f32 %v1709, 0.1
        %v2510 = vmul.f32 %v1712, 0.1
        %v2511 = vmul.f32 %v1717, 0.1
        %v2512 = vmul.f32 %v1720, 0.1
        %v2513 = vmul.f32 %v1725, 0.1
        %v2514 = vmul.f32 %v1728, 0.1
        %v2515 = vmul.f32 %v1733, 0.1
        %v2516 = vmul.f32 %v1736, 0.1
        %v2517 = vmul.f32 %v1741, 0.1
        %v2518 = vmul.f32 %v1744, 0.1
        %v2519 = vmul.f32 %v1749, 0.1
        %v2520 = vmul.f32 %v1752, 0.1
        %v2521 = vmul.f32 %v1757, 0.1
        %v2522 = vmul.f32 %v1760, 0.1
        %v2523 = vmul.f32 %v1765, 0.1
        %v2524 = vmul.f32 %v1768, 0.1
        %v2525 = vmul.f32 %v1773, 0.1
        %v2526 = vmul.f32 %v1776, 0.1
        %v2527 = vmul.f32 %v1781, 0.1
        %v2528 = vmul.f32 %v1784, 0.1
        %v2529 = vmul.f32 %v1789, 0.1
        %v2530 = vmul.f32 %v1792, 0.1
        %v2531 = vmul.f32 %v1797, 0.1
        %v2532 = vmul.f32 %v1800, 0.1
        %v2533 = vmul.f32 %v1805, 0.1
        %v2534 = vmul.f32 %v1808, 0.1
        %v2535 = vmul.f32 %v1813, 0.1
        %v2536 = vmul.f32 %v1816, 0.1
        %v2537 = vmul.f32 %v1821, 0.1
        %v2538 = vmul.f32 %v1824, 0.1
        %v2539 = vmul.f32 %v1829, 0.1
        %v2540 = vmul.f32 %v1832, 0.1
        %v2541 = vmul.f32 %v1837, 0.1
        %v2542 = vmul.f32 %v1840, 0.1
        %v2543 = vmul.f32 %v1845, 0.1
        %v2544 = vmul.f32 %v1848, 0.1
        %v2545 = vmul.f32 %v1853, 0.1
        %v2546 = vmul.f32 %v1856, 0.1
        %v2547 = vmul.f32 %v1861, 0.1
        %v2548 = vmul.f32 %v1864, 0.1
        %v2549 = vmul.f32 %v1869, 0.1
        %v2550 = vmul.f32 %v1872, 0.1
        %v2551 = vmul.f32 %v1877, 0.1
        %v2552 = vmul.f32 %v1880, 0.1
        %v2553 = vmul.f32 %v1885, 0.1
        %v2554 = vmul.f32 %v1888, 0.1
        %v2555 = vmul.f32 %v1893, 0.1
        %v2556 = vmul.f32 %v1896, 0.1
        %v2557 = vmul.f32 %v1901, 0.1
        %v2558 = vmul.f32 %v1904, 0.1
        %v2559 = vmul.f32 %v1909, 0.1
        %v2560 = vmul.f32 %v1912, 0.1
        %v2561 = vmul.f32 %v1917, 0.1
        %v2562 = vmul.f32 %v1920, 0.1
        %v2563 = vmul.f32 %v1925, 0.1
        %v2564 = vmul.f32 %v1928, 0.1
        %v2565 = vmul.f32 %v1933, 0.1
        %v2566 = vmul.f32 %v1936, 0.1
        %v2567 = vmul.f32 %v1941, 0.1
        %v2568 = vmul.f32 %v1944, 0.1
        %v2569 = vmul.f32 %v1949, 0.1
        %v2570 = vmul.f32 %v1952, 0.1
        %v2571 = vmul.f32 %v1957, 0.1
        %v2572 = vmul.f32 %v1960, 0.1
        %v2573 = vmul.f32 %v1965, 0.1
        %v2574 = vmul.f32 %v1968, 0.1
        %v2575 = vmul.f32 %v1973, 0.1
        %v2576 = vmul.f32 %v1976, 0.1
        %v2577 = vmul.f32 %v1981, 0.1
        %v2578 = vmul.f32 %v1984, 0.1
        %v2579 = vmul.f32 %v1989, 0.1
        %v2580 = vmul.f32 %v1992, 0.1
        %v2581 = vmul.f32 %v1997, 0.1
        %v2582 = vmul.f32 %v2000, 0.1
        %v2583 = vmul.f32 %v2005, 0.1
        %v2584 = vmul.f32 %v2008, 0.1
        %v2585 = vmul.f32 %v2013, 0.1
        %v2586 = vmul.f32 %v2016, 0.1
        %v2587 = vmul.f32 %v2021, 0.1
        %v2588 = vmul.f32 %v2024, 0.1
        %v2589 = vmul.f32 %v2029, 0.1
        %v2590 = vmul.f32 %v2032, 0.1
        %v2591 = vmul.f32 %v2037, 0.1
        %v2592 = vmul.f32 %v2040, 0.1
        %v2593 = vmul.f32 %v2045, 0.1
        %v2594 = vmul.f32 %v2048, 0.1
        %v2595 = vmul.f32 %v2053, 0.1
        %v2596 = vmul.f32 %v2056, 0.1
        %v2597 = vmul.f32 %v2061, 0.1
        %v2598 = vmul.f32 %v2064, 0.1
        %v2599 = vmul.f32 %v2069, 0.1
        %v2600 = vmul.f32 %v2072, 0.1
        %v2601 = vmul.f32 %v2077, 0.1
        %v2602 = vmul.f32 %v2080, 0.1
        %v2603 = vmul.f32 %v2085, 0.1
        %v2604 = vmul.f32 %v2088, 0.1
        %v2605 = vmul.f32 %v2093, 0.1
        %v2606 = vmul.f32 %v2096, 0.1
        %v2607 = vmul.f32 %v2101, 0.1
        %v2608 = vmul.f32 %v2104, 0.1
        %v2609 = vmul.f32 %v2109, 0.1
        %v2610 = vmul.f32 %v2112, 0.1
        %v2611 = vmul.f32 %v2117, 0.1
        %v2612 = vmul.f32 %v2120, 0.1
        %v2613 = vmul.f32 %v2125, 0.1
        %v2614 = vmul.f32 %v2128, 0.1
        %v2615 = vmul.f32 %v2133, 0.1
        %v2616 = vmul.f32 %v2136, 0.1
        %v2617 = vmul.f32 %v2141, 0.1
        %v2618 = vmul.f32 %v2144, 0.1
        %v2619 = vmul.f32 %v2149, 0.1
        %v2620 = vmul.f32 %v2152, 0.1
        %v2621 = vmul.f32 %v2157, 0.1
        %v2622 = vmul.f32 %v2160, 0.1
        %v2623 = vsel %vm2163, %v1245, %v2393
        %v2624 = vsel %vm2164, %v1248, %v2394
        %v2625 = vsel %vm2165, %v1253, %v2395
        %v2626 = vsel %vm2166, %v1256, %v2396
        %v2627 = vsel %vm2167, %v1261, %v2397
        %v2628 = vsel %vm2168, %v1264, %v2398
        %v2629 = vsel %vm2169, %v1269, %v2399
        %v2630 = vsel %vm2170, %v1272, %v2400
        %v2631 = vsel %vm2171, %v1277, %v2401
        %v2632 = vsel %vm2172, %v1280, %v2402
        %v2633 = vsel %vm2173, %v1285, %v2403
        %v2634 = vsel %vm2174, %v1288, %v2404
        %v2635 = vsel %vm2175, %v1293, %v2405
        %v2636 = vsel %vm2176, %v1296, %v2406
        %v2637 = vsel %vm2177, %v1301, %v2407
        %v2638 = vsel %vm2178, %v1304, %v2408
        %v2639 = vsel %vm2179, %v1309, %v2409
        %v2640 = vsel %vm2180, %v1312, %v2410
        %v2641 = vsel %vm2181, %v1317, %v2411
        %v2642 = vsel %vm2182, %v1320, %v2412
        %v2643 = vsel %vm2183, %v1325, %v2413
        %v2644 = vsel %vm2184, %v1328, %v2414
        %v2645 = vsel %vm2185, %v1333, %v2415
        %v2646 = vsel %vm2186, %v1336, %v2416
        %v2647 = vsel %vm2187, %v1341, %v2417
        %v2648 = vsel %vm2188, %v1344, %v2418
        %v2649 = vsel %vm2189, %v1349, %v2419
        %v2650 = vsel %vm2190, %v1352, %v2420
        %v2651 = vsel %vm2191, %v1357, %v2421
        %v2652 = vsel %vm2192, %v1360, %v2422
        %v2653 = vsel %vm2193, %v1365, %v2423
        %v2654 = vsel %vm2194, %v1368, %v2424
        %v2655 = vsel %vm2195, %v1373, %v2425
        %v2656 = vsel %vm2196, %v1376, %v2426
        %v2657 = vsel %vm2197, %v1381, %v2427
        %v2658 = vsel %vm2198, %v1384, %v2428
        %v2659 = vsel %vm2199, %v1389, %v2429
        %v2660 = vsel %vm2200, %v1392, %v2430
        %v2661 = vsel %vm2201, %v1397, %v2431
        %v2662 = vsel %vm2202, %v1400, %v2432
        %v2663 = vsel %vm2203, %v1405, %v2433
        %v2664 = vsel %vm2204, %v1408, %v2434
        %v2665 = vsel %vm2205, %v1413, %v2435
        %v2666 = vsel %vm2206, %v1416, %v2436
        %v2667 = vsel %vm2207, %v1421, %v2437
        %v2668 = vsel %vm2208, %v1424, %v2438
        %v2669 = vsel %vm2209, %v1429, %v2439
        %v2670 = vsel %vm2210, %v1432, %v2440
        %v2671 = vsel %vm2211, %v1437, %v2441
        %v2672 = vsel %vm2212, %v1440, %v2442
        %v2673 = vsel %vm2213, %v1445, %v2443
        %v2674 = vsel %vm2214, %v1448, %v2444
        %v2675 = vsel %vm2215, %v1453, %v2445
        %v2676 = vsel %vm2216, %v1456, %v2446
        %v2677 = vsel %vm2217, %v1461, %v2447
        %v2678 = vsel %vm2218, %v1464, %v2448
        %v2679 = vsel %vm2219, %v1469, %v2449
        %v2680 = vsel %vm2220, %v1472, %v2450
        %v2681 = vsel %vm2221, %v1477, %v2451
        %v2682 = vsel %vm2222, %v1480, %v2452
        %v2683 = vsel %vm2223, %v1485, %v2453
        %v2684 = vsel %vm2224, %v1488, %v2454
        %v2685 = vsel %vm2225, %v1493, %v2455
        %v2686 = vsel %vm2226, %v1496, %v2456
        %v2687 = vsel %vm2227, %v1501, %v2457
        %v2688 = vsel %vm2228, %v1504, %v2458
        %v2689 = vsel %vm2229, %v1509, %v2459
        %v2690 = vsel %vm2230, %v1512, %v2460
        %v2691 = vsel %vm2231, %v1517, %v2461
        %v2692 = vsel %vm2232, %v1520, %v2462
        %v2693 = vsel %vm2233, %v1525, %v2463
        %v2694 = vsel %vm2234, %v1528, %v2464
        %v2695 = vsel %vm2235, %v1533, %v2465
        %v2696 = vsel %vm2236, %v1536, %v2466
        %v2697 = vsel %vm2237, %v1541, %v2467
        %v2698 = vsel %vm2238, %v1544, %v2468
        %v2699 = vsel %vm2239, %v1549, %v2469
        %v2700 = vsel %vm2240, %v1552, %v2470
        %v2701 = vsel %vm2241, %v1557, %v2471
        %v2702 = vsel %vm2242, %v1560, %v2472
        %v2703 = vsel %vm2243, %v1565, %v2473
        %v2704 = vsel %vm2244, %v1568, %v2474
        %v2705 = vsel %vm2245, %v1573, %v2475
        %v2706 = vsel %vm2246, %v1576, %v2476
        %v2707 = vsel %vm2247, %v1581, %v2477
        %v2708 = vsel %vm2248, %v1584, %v2478
        %v2709 = vsel %vm2249, %v1589, %v2479
        %v2710 = vsel %vm2250, %v1592, %v2480
        %v2711 = vsel %vm2251, %v1597, %v2481
        %v2712 = vsel %vm2252, %v1600, %v2482
        %v2713 = vsel %vm2253, %v1605, %v2483
        %v2714 = vsel %vm2254, %v1608, %v2484
        %v2715 = vsel %vm2255, %v1613, %v2485
        %v2716 = vsel %vm2256, %v1616, %v2486
        %v2717 = vsel %vm2257, %v1621, %v2487
        %v2718 = vsel %vm2258, %v1624, %v2488
        %v2719 = vsel %vm2259, %v1629, %v2489
        %v2720 = vsel %vm2260, %v1632, %v2490
        %v2721 = vsel %vm2261, %v1637, %v2491
        %v2722 = vsel %vm2262, %v1640, %v2492
        %v2723 = vsel %vm2263, %v1645, %v2493
        %v2724 = vsel %vm2264, %v1648, %v2494
        %v2725 = vsel %vm2265, %v1653, %v2495
        %v2726 = vsel %vm2266, %v1656, %v2496
        %v2727 = vsel %vm2267, %v1661, %v2497
        %v2728 = vsel %vm2268, %v1664, %v2498
        %v2729 = vsel %vm2269, %v1669, %v2499
        %v2730 = vsel %vm2270, %v1672, %v2500
        %v2731 = vsel %vm2271, %v1677, %v2501
        %v2732 = vsel %vm2272, %v1680, %v2502
        %v2733 = vsel %vm2273, %v1685, %v2503
        %v2734 = vsel %vm2274, %v1688, %v2504
        %v2735 = vsel %vm2275, %v1693, %v2505
        %v2736 = vsel %vm2276, %v1696, %v2506
        %v2737 = vsel %vm2277, %v1701, %v2507
        %v2738 = vsel %vm2278, %v1704, %v2508
        %v2739 = vsel %vm2279, %v1709, %v2509
        %v2740 = vsel %vm2280, %v1712, %v2510
        %v2741 = vsel %vm2281, %v1717, %v2511
        %v2742 = vsel %vm2282, %v1720, %v2512
        %v2743 = vsel %vm2283, %v1725, %v2513
        %v2744 = vsel %vm2284, %v1728, %v2514
        %v2745 = vsel %vm2285, %v1733, %v2515
        %v2746 = vsel %vm2286, %v1736, %v2516
        %v2747 = vsel %vm2287, %v1741, %v2517
        %v2748 = vsel %vm2288, %v1744, %v2518
        %v2749 = vsel %vm2289, %v1749, %v2519
        %v2750 = vsel %vm2290, %v1752, %v2520
        %v2751 = vsel %vm2291, %v1757, %v2521
        %v2752 = vsel %vm2292, %v1760, %v2522
        %v2753 = vsel %vm2293, %v1765, %v2523
        %v2754 = vsel %vm2294, %v1768, %v2524
        %v2755 = vsel %vm2295, %v1773, %v2525
        %v2756 = vsel %vm2296, %v1776, %v2526
        %v2757 = vsel %vm2297, %v1781, %v2527
        %v2758 = vsel %vm2298, %v1784, %v2528
        %v2759 = vsel %vm2299, %v1789, %v2529
        %v2760 = vsel %vm2300, %v1792, %v2530
        %v2761 = vsel %vm2301, %v1797, %v2531
        %v2762 = vsel %vm2302, %v1800, %v2532
        %v2763 = vsel %vm2303, %v1805, %v2533
        %v2764 = vsel %vm2304, %v1808, %v2534
        %v2765 = vsel %vm2305, %v1813, %v2535
        %v2766 = vsel %vm2306, %v1816, %v2536
        %v2767 = vsel %vm2307, %v1821, %v2537
        %v2768 = vsel %vm2308, %v1824, %v2538
        %v2769 = vsel %vm2309, %v1829, %v2539
        %v2770 = vsel %vm2310, %v1832, %v2540
        %v2771 = vsel %vm2311, %v1837, %v2541
        %v2772 = vsel %vm2312, %v1840, %v2542
        %v2773 = vsel %vm2313, %v1845, %v2543
        %v2774 = vsel %vm2314, %v1848, %v2544
        %v2775 = vsel %vm2315, %v1853, %v2545
        %v2776 = vsel %vm2316, %v1856, %v2546
        %v2777 = vsel %vm2317, %v1861, %v2547
        %v2778 = vsel %vm2318, %v1864, %v2548
        %v2779 = vsel %vm2319, %v1869, %v2549
        %v2780 = vsel %vm2320, %v1872, %v2550
        %v2781 = vsel %vm2321, %v1877, %v2551
        %v2782 = vsel %vm2322, %v1880, %v2552
        %v2783 = vsel %vm2323, %v1885, %v2553
        %v2784 = vsel %vm2324, %v1888, %v2554
        %v2785 = vsel %vm2325, %v1893, %v2555
        %v2786 = vsel %vm2326, %v1896, %v2556
        %v2787 = vsel %vm2327, %v1901, %v2557
        %v2788 = vsel %vm2328, %v1904, %v2558
        %v2789 = vsel %vm2329, %v1909, %v2559
        %v2790 = vsel %vm2330, %v1912, %v2560
        %v2791 = vsel %vm2331, %v1917, %v2561
        %v2792 = vsel %vm2332, %v1920, %v2562
        %v2793 = vsel %vm2333, %v1925, %v2563
        %v2794 = vsel %vm2334, %v1928, %v2564
        %v2795 = vsel %vm2335, %v1933, %v2565
        %v2796 = vsel %vm2336, %v1936, %v2566
        %v2797 = vsel %vm2337, %v1941, %v2567
        %v2798 = vsel %vm2338, %v1944, %v2568
        %v2799 = vsel %vm2339, %v1949, %v2569
        %v2800 = vsel %vm2340, %v1952, %v2570
        %v2801 = vsel %vm2341, %v1957, %v2571
        %v2802 = vsel %vm2342, %v1960, %v2572
        %v2803 = vsel %vm2343, %v1965, %v2573
        %v2804 = vsel %vm2344, %v1968, %v2574
        %v2805 = vsel %vm2345, %v1973, %v2575
        %v2806 = vsel %vm2346, %v1976, %v2576
        %v2807 = vsel %vm2347, %v1981, %v2577
        %v2808 = vsel %vm2348, %v1984, %v2578
        %v2809 = vsel %vm2349, %v1989, %v2579
        %v2810 = vsel %vm2350, %v1992, %v2580
        %v2811 = vsel %vm2351, %v1997, %v2581
        %v2812 = vsel %vm2352, %v2000, %v2582
        %v2813 = vsel %vm2353, %v2005, %v2583
        %v2814 = vsel %vm2354, %v2008, %v2584
        %v2815 = vsel %vm2355, %v2013, %v2585
        %v2816 = vsel %vm2356, %v2016, %v2586
        %v2817 = vsel %vm2357, %v2021, %v2587
        %v2818 = vsel %vm2358, %v2024, %v2588
        %v2819 = vsel %vm2359, %v2029, %v2589
        %v2820 = vsel %vm2360, %v2032, %v2590
        %v2821 = vsel %vm2361, %v2037, %v2591
        %v2822 = vsel %vm2362, %v2040, %v2592
        %v2823 = vsel %vm2363, %v2045, %v2593
        %v2824 = vsel %vm2364, %v2048, %v2594
        %v2825 = vsel %vm2365, %v2053, %v2595
        %v2826 = vsel %vm2366, %v2056, %v2596
        %v2827 = vsel %vm2367, %v2061, %v2597
        %v2828 = vsel %vm2368, %v2064, %v2598
        %v2829 = vsel %vm2369, %v2069, %v2599
        %v2830 = vsel %vm2370, %v2072, %v2600
        %v2831 = vsel %vm2371, %v2077, %v2601
        %v2832 = vsel %vm2372, %v2080, %v2602
        %v2833 = vsel %vm2373, %v2085, %v2603
        %v2834 = vsel %vm2374, %v2088, %v2604
        %v2835 = vsel %vm2375, %v2093, %v2605
        %v2836 = vsel %vm2376, %v2096, %v2606
        %v2837 = vsel %vm2377, %v2101, %v2607
        %v2838 = vsel %vm2378, %v2104, %v2608
        %v2839 = vsel %vm2379, %v2109, %v2609
        %v2840 = vsel %vm2380, %v2112, %v2610
        %v2841 = vsel %vm2381, %v2117, %v2611
        %v2842 = vsel %vm2382, %v2120, %v2612
        %v2843 = vsel %vm2383, %v2125, %v2613
        %v2844 = vsel %vm2384, %v2128, %v2614
        %v2845 = vsel %vm2385, %v2133, %v2615
        %v2846 = vsel %vm2386, %v2136, %v2616
        %v2847 = vsel %vm2387, %v2141, %v2617
        %v2848 = vsel %vm2388, %v2144, %v2618
        %v2849 = vsel %vm2389, %v2149, %v2619
        %v2850 = vsel %vm2390, %v2152, %v2620
        %v2851 = vsel %vm2391, %v2157, %v2621
        %v2852 = vsel %vm2392, %v2160, %v2622
        %v2853 = vpack.c.bf16 %v2624, %v2623
        %v2854 = vpack.c.bf16 %v2626, %v2625
        %v2855 = vpack.c.bf16 %v2628, %v2627
        %v2856 = vpack.c.bf16 %v2630, %v2629
        %v2857 = vpack.c.bf16 %v2632, %v2631
        %v2858 = vpack.c.bf16 %v2634, %v2633
        %v2859 = vpack.c.bf16 %v2636, %v2635
        %v2860 = vpack.c.bf16 %v2638, %v2637
        %v2861 = vpack.c.bf16 %v2640, %v2639
        %v2862 = vpack.c.bf16 %v2642, %v2641
        %v2863 = vpack.c.bf16 %v2644, %v2643
        %v2864 = vpack.c.bf16 %v2646, %v2645
        %v2865 = vpack.c.bf16 %v2648, %v2647
        %v2866 = vpack.c.bf16 %v2650, %v2649
        %v2867 = vpack.c.bf16 %v2652, %v2651
        %v2868 = vpack.c.bf16 %v2654, %v2653
        %v2869 = vpack.c.bf16 %v2656, %v2655
        %v2870 = vpack.c.bf16 %v2658, %v2657
        %v2871 = vpack.c.bf16 %v2660, %v2659
        %v2872 = vpack.c.bf16 %v2662, %v2661
        %v2873 = vpack.c.bf16 %v2664, %v2663
        %v2874 = vpack.c.bf16 %v2666, %v2665
        %v2875 = vpack.c.bf16 %v2668, %v2667
        %v2876 = vpack.c.bf16 %v2670, %v2669
        %v2877 = vpack.c.bf16 %v2672, %v2671
        %v2878 = vpack.c.bf16 %v2674, %v2673
        %v2879 = vpack.c.bf16 %v2676, %v2675
        %v2880 = vpack.c.bf16 %v2678, %v2677
        %v2881 = vpack.c.bf16 %v2680, %v2679
        %v2882 = vpack.c.bf16 %v2682, %v2681
        %v2883 = vpack.c.bf16 %v2684, %v2683
        %v2884 = vpack.c.bf16 %v2686, %v2685
        %v2885 = vpack.c.bf16 %v2688, %v2687
        %v2886 = vpack.c.bf16 %v2690, %v2689
        %v2887 = vpack.c.bf16 %v2692, %v2691
        %v2888 = vpack.c.bf16 %v2694, %v2693
        %v2889 = vpack.c.bf16 %v2696, %v2695
        %v2890 = vpack.c.bf16 %v2698, %v2697
        %v2891 = vpack.c.bf16 %v2700, %v2699
        %v2892 = vpack.c.bf16 %v2702, %v2701
        %v2893 = vpack.c.bf16 %v2704, %v2703
        %v2894 = vpack.c.bf16 %v2706, %v2705
        %v2895 = vpack.c.bf16 %v2708, %v2707
        %v2896 = vpack.c.bf16 %v2710, %v2709
        %v2897 = vpack.c.bf16 %v2712, %v2711
        %v2898 = vpack.c.bf16 %v2714, %v2713
        %v2899 = vpack.c.bf16 %v2716, %v2715
        %v2900 = vpack.c.bf16 %v2718, %v2717
        %v2901 = vpack.c.bf16 %v2720, %v2719
        %v2902 = vpack.c.bf16 %v2722, %v2721
        %v2903 = vpack.c.bf16 %v2724, %v2723
        %v2904 = vpack.c.bf16 %v2726, %v2725
        %v2905 = vpack.c.bf16 %v2728, %v2727
        %v2906 = vpack.c.bf16 %v2730, %v2729
        %v2907 = vpack.c.bf16 %v2732, %v2731
        %v2908 = vpack.c.bf16 %v2734, %v2733
        %v2909 = vpack.c.bf16 %v2736, %v2735
        %v2910 = vpack.c.bf16 %v2738, %v2737
        %v2911 = vpack.c.bf16 %v2740, %v2739
        %v2912 = vpack.c.bf16 %v2742, %v2741
        %v2913 = vpack.c.bf16 %v2744, %v2743
        %v2914 = vpack.c.bf16 %v2746, %v2745
        %v2915 = vpack.c.bf16 %v2748, %v2747
        %v2916 = vpack.c.bf16 %v2750, %v2749
        %v2917 = vpack.c.bf16 %v2752, %v2751
        %v2918 = vpack.c.bf16 %v2754, %v2753
        %v2919 = vpack.c.bf16 %v2756, %v2755
        %v2920 = vpack.c.bf16 %v2758, %v2757
        %v2921 = vpack.c.bf16 %v2760, %v2759
        %v2922 = vpack.c.bf16 %v2762, %v2761
        %v2923 = vpack.c.bf16 %v2764, %v2763
        %v2924 = vpack.c.bf16 %v2766, %v2765
        %v2925 = vpack.c.bf16 %v2768, %v2767
        %v2926 = vpack.c.bf16 %v2770, %v2769
        %v2927 = vpack.c.bf16 %v2772, %v2771
        %v2928 = vpack.c.bf16 %v2774, %v2773
        %v2929 = vpack.c.bf16 %v2776, %v2775
        %v2930 = vpack.c.bf16 %v2778, %v2777
        %v2931 = vpack.c.bf16 %v2780, %v2779
        %v2932 = vpack.c.bf16 %v2782, %v2781
        %v2933 = vpack.c.bf16 %v2784, %v2783
        %v2934 = vpack.c.bf16 %v2786, %v2785
        %v2935 = vpack.c.bf16 %v2788, %v2787
        %v2936 = vpack.c.bf16 %v2790, %v2789
        %v2937 = vpack.c.bf16 %v2792, %v2791
        %v2938 = vpack.c.bf16 %v2794, %v2793
        %v2939 = vpack.c.bf16 %v2796, %v2795
        %v2940 = vpack.c.bf16 %v2798, %v2797
        %v2941 = vpack.c.bf16 %v2800, %v2799
        %v2942 = vpack.c.bf16 %v2802, %v2801
        %v2943 = vpack.c.bf16 %v2804, %v2803
        %v2944 = vpack.c.bf16 %v2806, %v2805
        %v2945 = vpack.c.bf16 %v2808, %v2807
        %v2946 = vpack.c.bf16 %v2810, %v2809
        %v2947 = vpack.c.bf16 %v2812, %v2811
        %v2948 = vpack.c.bf16 %v2814, %v2813
        %v2949 = vpack.c.bf16 %v2816, %v2815
        %v2950 = vpack.c.bf16 %v2818, %v2817
        %v2951 = vpack.c.bf16 %v2820, %v2819
        %v2952 = vpack.c.bf16 %v2822, %v2821
        %v2953 = vpack.c.bf16 %v2824, %v2823
        %v2954 = vpack.c.bf16 %v2826, %v2825
        %v2955 = vpack.c.bf16 %v2828, %v2827
        %v2956 = vpack.c.bf16 %v2830, %v2829
        %v2957 = vpack.c.bf16 %v2832, %v2831
        %v2958 = vpack.c.bf16 %v2834, %v2833
        %v2959 = vpack.c.bf16 %v2836, %v2835
        %v2960 = vpack.c.bf16 %v2838, %v2837
        %v2961 = vpack.c.bf16 %v2840, %v2839
        %v2962 = vpack.c.bf16 %v2842, %v2841
        %v2963 = vpack.c.bf16 %v2844, %v2843
        %v2964 = vpack.c.bf16 %v2846, %v2845
        %v2965 = vpack.c.bf16 %v2848, %v2847
        %v2966 = vpack.c.bf16 %v2850, %v2849
        %v2967 = vpack.c.bf16 %v2852, %v2851
        %v3083 = vunpack.c.l.b16 %v2853
        %v3084 = vunpack.c.h.b16 %v2853
        %v3085 = vunpack.c.l.b16 %v2854
        %v3086 = vunpack.c.h.b16 %v2854
        %v3087 = vunpack.c.l.b16 %v2855
        %v3088 = vunpack.c.h.b16 %v2855
        %v3089 = vunpack.c.l.b16 %v2856
        %v3090 = vunpack.c.h.b16 %v2856
        %v3091 = vunpack.c.l.b16 %v2857
        %v3092 = vunpack.c.h.b16 %v2857
        %v3093 = vunpack.c.l.b16 %v2858
        %v3094 = vunpack.c.h.b16 %v2858
        %v3095 = vunpack.c.l.b16 %v2859
        %v3096 = vunpack.c.h.b16 %v2859
        %v3097 = vunpack.c.l.b16 %v2860
        %v3098 = vunpack.c.h.b16 %v2860
        %v3099 = vunpack.c.l.b16 %v2861
        %v3100 = vunpack.c.h.b16 %v2861
        %v3101 = vunpack.c.l.b16 %v2862
        %v3102 = vunpack.c.h.b16 %v2862
        %v3103 = vunpack.c.l.b16 %v2863
        %v3104 = vunpack.c.h.b16 %v2863
        %v3105 = vunpack.c.l.b16 %v2864
        %v3106 = vunpack.c.h.b16 %v2864
        %v3107 = vunpack.c.l.b16 %v2865
        %v3108 = vunpack.c.h.b16 %v2865
        %v3109 = vunpack.c.l.b16 %v2866
        %v3110 = vunpack.c.h.b16 %v2866
        %v3111 = vunpack.c.l.b16 %v2867
        %v3112 = vunpack.c.h.b16 %v2867
        %v3113 = vunpack.c.l.b16 %v2868
        %v3114 = vunpack.c.h.b16 %v2868
        %v3115 = vunpack.c.l.b16 %v2869
        %v3116 = vunpack.c.h.b16 %v2869
        %v3117 = vunpack.c.l.b16 %v2870
        %v3118 = vunpack.c.h.b16 %v2870
        %v3119 = vunpack.c.l.b16 %v2871
        %v3120 = vunpack.c.h.b16 %v2871
        %v3121 = vunpack.c.l.b16 %v2872
        %v3122 = vunpack.c.h.b16 %v2872
        %v3123 = vunpack.c.l.b16 %v2873
        %v3124 = vunpack.c.h.b16 %v2873
        %v3125 = vunpack.c.l.b16 %v2874
        %v3126 = vunpack.c.h.b16 %v2874
        %v3127 = vunpack.c.l.b16 %v2875
        %v3128 = vunpack.c.h.b16 %v2875
        %v3129 = vunpack.c.l.b16 %v2876
        %v3130 = vunpack.c.h.b16 %v2876
        %v3131 = vunpack.c.l.b16 %v2877
        %v3132 = vunpack.c.h.b16 %v2877
        %v3133 = vunpack.c.l.b16 %v2878
        %v3134 = vunpack.c.h.b16 %v2878
        %v3135 = vunpack.c.l.b16 %v2879
        %v3136 = vunpack.c.h.b16 %v2879
        %v3137 = vunpack.c.l.b16 %v2880
        %v3138 = vunpack.c.h.b16 %v2880
        %v3139 = vunpack.c.l.b16 %v2881
        %v3140 = vunpack.c.h.b16 %v2881
        %v3141 = vunpack.c.l.b16 %v2882
        %v3142 = vunpack.c.h.b16 %v2882
        %v3143 = vunpack.c.l.b16 %v2883
        %v3144 = vunpack.c.h.b16 %v2883
        %v3145 = vunpack.c.l.b16 %v2884
        %v3146 = vunpack.c.h.b16 %v2884
        %v3147 = vunpack.c.l.b16 %v2885
        %v3148 = vunpack.c.h.b16 %v2885
        %v3149 = vunpack.c.l.b16 %v2886
        %v3150 = vunpack.c.h.b16 %v2886
        %v3151 = vunpack.c.l.b16 %v2887
        %v3152 = vunpack.c.h.b16 %v2887
        %v3153 = vunpack.c.l.b16 %v2888
        %v3154 = vunpack.c.h.b16 %v2888
        %v3155 = vunpack.c.l.b16 %v2889
        %v3156 = vunpack.c.h.b16 %v2889
        %v3157 = vunpack.c.l.b16 %v2890
        %v3158 = vunpack.c.h.b16 %v2890
        %v3159 = vunpack.c.l.b16 %v2891
        %v3160 = vunpack.c.h.b16 %v2891
        %v3161 = vunpack.c.l.b16 %v2892
        %v3162 = vunpack.c.h.b16 %v2892
        %v3163 = vunpack.c.l.b16 %v2893
        %v3164 = vunpack.c.h.b16 %v2893
        %v3165 = vunpack.c.l.b16 %v2894
        %v3166 = vunpack.c.h.b16 %v2894
        %v3167 = vunpack.c.l.b16 %v2895
        %v3168 = vunpack.c.h.b16 %v2895
        %v3169 = vunpack.c.l.b16 %v2896
        %v3170 = vunpack.c.h.b16 %v2896
        %v3171 = vunpack.c.l.b16 %v2897
        %v3172 = vunpack.c.h.b16 %v2897
        %v3173 = vunpack.c.l.b16 %v2898
        %v3174 = vunpack.c.h.b16 %v2898
        %v3175 = vunpack.c.l.b16 %v2899
        %v3176 = vunpack.c.h.b16 %v2899
        %v3177 = vunpack.c.l.b16 %v2900
        %v3178 = vunpack.c.h.b16 %v2900
        %v3179 = vunpack.c.l.b16 %v2901
        %v3180 = vunpack.c.h.b16 %v2901
        %v3181 = vunpack.c.l.b16 %v2902
        %v3182 = vunpack.c.h.b16 %v2902
        %v3183 = vunpack.c.l.b16 %v2903
        %v3184 = vunpack.c.h.b16 %v2903
        %v3185 = vunpack.c.l.b16 %v2904
        %v3186 = vunpack.c.h.b16 %v2904
        %v3187 = vunpack.c.l.b16 %v2905
        %v3188 = vunpack.c.h.b16 %v2905
        %v3189 = vunpack.c.l.b16 %v2906
        %v3190 = vunpack.c.h.b16 %v2906
        %v3191 = vunpack.c.l.b16 %v2907
        %v3192 = vunpack.c.h.b16 %v2907
        %v3193 = vunpack.c.l.b16 %v2908
        %v3194 = vunpack.c.h.b16 %v2908
        %v3195 = vunpack.c.l.b16 %v2909
        %v3196 = vunpack.c.h.b16 %v2909
        %v3197 = vunpack.c.l.b16 %v2910
        %v3198 = vunpack.c.h.b16 %v2910
        %v3199 = vunpack.c.l.b16 %v2911
        %v3200 = vunpack.c.h.b16 %v2911
        %v3201 = vunpack.c.l.b16 %v2912
        %v3202 = vunpack.c.h.b16 %v2912
        %v3203 = vunpack.c.l.b16 %v2913
        %v3204 = vunpack.c.h.b16 %v2913
        %v3205 = vunpack.c.l.b16 %v2914
        %v3206 = vunpack.c.h.b16 %v2914
        %v3207 = vunpack.c.l.b16 %v2915
        %v3208 = vunpack.c.h.b16 %v2915
        %v3209 = vunpack.c.l.b16 %v2916
        %v3210 = vunpack.c.h.b16 %v2916
        %v3211 = vunpack.c.l.b16 %v2917
        %v3212 = vunpack.c.h.b16 %v2917
        %v3213 = vunpack.c.l.b16 %v2918
        %v3214 = vunpack.c.h.b16 %v2918
        %v3215 = vunpack.c.l.b16 %v2919
        %v3216 = vunpack.c.h.b16 %v2919
        %v3217 = vunpack.c.l.b16 %v2920
        %v3218 = vunpack.c.h.b16 %v2920
        %v3219 = vunpack.c.l.b16 %v2921
        %v3220 = vunpack.c.h.b16 %v2921
        %v3221 = vunpack.c.l.b16 %v2922
        %v3222 = vunpack.c.h.b16 %v2922
        %v3223 = vunpack.c.l.b16 %v2923
        %v3224 = vunpack.c.h.b16 %v2923
        %v3225 = vunpack.c.l.b16 %v2924
        %v3226 = vunpack.c.h.b16 %v2924
        %v3227 = vunpack.c.l.b16 %v2925
        %v3228 = vunpack.c.h.b16 %v2925
        %v3229 = vunpack.c.l.b16 %v2926
        %v3230 = vunpack.c.h.b16 %v2926
        %v3231 = vunpack.c.l.b16 %v2927
        %v3232 = vunpack.c.h.b16 %v2927
        %v3233 = vunpack.c.l.b16 %v2928
        %v3234 = vunpack.c.h.b16 %v2928
        %v3235 = vunpack.c.l.b16 %v2929
        %v3236 = vunpack.c.h.b16 %v2929
        %v3237 = vunpack.c.l.b16 %v2930
        %v3238 = vunpack.c.h.b16 %v2930
        %v3239 = vunpack.c.l.b16 %v2931
        %v3240 = vunpack.c.h.b16 %v2931
        %v3241 = vunpack.c.l.b16 %v2932
        %v3242 = vunpack.c.h.b16 %v2932
        %v3243 = vunpack.c.l.b16 %v2933
        %v3244 = vunpack.c.h.b16 %v2933
        %v3245 = vunpack.c.l.b16 %v2934
        %v3246 = vunpack.c.h.b16 %v2934
        %v3247 = vunpack.c.l.b16 %v2935
        %v3248 = vunpack.c.h.b16 %v2935
        %v3249 = vunpack.c.l.b16 %v2936
        %v3250 = vunpack.c.h.b16 %v2936
        %v3251 = vunpack.c.l.b16 %v2937
        %v3252 = vunpack.c.h.b16 %v2937
        %v3253 = vunpack.c.l.b16 %v2938
        %v3254 = vunpack.c.h.b16 %v2938
        %v3255 = vunpack.c.l.b16 %v2939
        %v3256 = vunpack.c.h.b16 %v2939
        %v3257 = vunpack.c.l.b16 %v2940
        %v3258 = vunpack.c.h.b16 %v2940
        %v3259 = vunpack.c.l.b16 %v2941
        %v3260 = vunpack.c.h.b16 %v2941
        %v3261 = vunpack.c.l.b16 %v2942
        %v3262 = vunpack.c.h.b16 %v2942
        %v3263 = vunpack.c.l.b16 %v2943
        %v3264 = vunpack.c.h.b16 %v2943
        %v3265 = vunpack.c.l.b16 %v2944
        %v3266 = vunpack.c.h.b16 %v2944
        %v3267 = vunpack.c.l.b16 %v2945
        %v3268 = vunpack.c.h.b16 %v2945
        %v3269 = vunpack.c.l.b16 %v2946
        %v3270 = vunpack.c.h.b16 %v2946
        %v3271 = vunpack.c.l.b16 %v2947
        %v3272 = vunpack.c.h.b16 %v2947
        %v3273 = vunpack.c.l.b16 %v2948
        %v3274 = vunpack.c.h.b16 %v2948
        %v3275 = vunpack.c.l.b16 %v2949
        %v3276 = vunpack.c.h.b16 %v2949
        %v3277 = vunpack.c.l.b16 %v2950
        %v3278 = vunpack.c.h.b16 %v2950
        %v3279 = vunpack.c.l.b16 %v2951
        %v3280 = vunpack.c.h.b16 %v2951
        %v3281 = vunpack.c.l.b16 %v2952
        %v3282 = vunpack.c.h.b16 %v2952
        %v3283 = vunpack.c.l.b16 %v2953
        %v3284 = vunpack.c.h.b16 %v2953
        %v3285 = vunpack.c.l.b16 %v2954
        %v3286 = vunpack.c.h.b16 %v2954
        %v3287 = vunpack.c.l.b16 %v2955
        %v3288 = vunpack.c.h.b16 %v2955
        %v3289 = vunpack.c.l.b16 %v2956
        %v3290 = vunpack.c.h.b16 %v2956
        %v3291 = vunpack.c.l.b16 %v2957
        %v3292 = vunpack.c.h.b16 %v2957
        %v3293 = vunpack.c.l.b16 %v2958
        %v3294 = vunpack.c.h.b16 %v2958
        %v3295 = vunpack.c.l.b16 %v2959
        %v3296 = vunpack.c.h.b16 %v2959
        %v3297 = vunpack.c.l.b16 %v2960
        %v3298 = vunpack.c.h.b16 %v2960
        %v3299 = vunpack.c.l.b16 %v2961
        %v3300 = vunpack.c.h.b16 %v2961
        %v3301 = vunpack.c.l.b16 %v2962
        %v3302 = vunpack.c.h.b16 %v2962
        %v3303 = vunpack.c.l.b16 %v2963
        %v3304 = vunpack.c.h.b16 %v2963
        %v3305 = vunpack.c.l.b16 %v2964
        %v3306 = vunpack.c.h.b16 %v2964
        %v3307 = vunpack.c.l.b16 %v2965
        %v3308 = vunpack.c.h.b16 %v2965
        %v3309 = vunpack.c.l.b16 %v2966
        %v3310 = vunpack.c.h.b16 %v2966
        %v3311 = vunpack.c.l.b16 %v2967
        %v3312 = vunpack.c.h.b16 %v2967
        %v3313 = vpack.c.b16 %v3083, %v3083
        %v3314 = vpack.c.b16 %v3084, %v3084
        %v3315 = vpack.c.b16 %v3085, %v3085
        %v3316 = vpack.c.b16 %v3086, %v3086
        %v3317 = vpack.c.b16 %v3087, %v3087
        %v3318 = vpack.c.b16 %v3088, %v3088
        %v3319 = vpack.c.b16 %v3089, %v3089
        %v3320 = vpack.c.b16 %v3090, %v3090
        %v3321 = vpack.c.b16 %v3091, %v3091
        %v3322 = vpack.c.b16 %v3092, %v3092
        %v3323 = vpack.c.b16 %v3093, %v3093
        %v3324 = vpack.c.b16 %v3094, %v3094
        %v3325 = vpack.c.b16 %v3095, %v3095
        %v3326 = vpack.c.b16 %v3096, %v3096
        %v3327 = vpack.c.b16 %v3097, %v3097
        %v3328 = vpack.c.b16 %v3098, %v3098
        %v3329 = vpack.c.b16 %v3099, %v3099
        %v3330 = vpack.c.b16 %v3100, %v3100
        %v3331 = vpack.c.b16 %v3101, %v3101
        %v3332 = vpack.c.b16 %v3102, %v3102
        %v3333 = vpack.c.b16 %v3103, %v3103
        %v3334 = vpack.c.b16 %v3104, %v3104
        %v3335 = vpack.c.b16 %v3105, %v3105
        %v3336 = vpack.c.b16 %v3106, %v3106
        %v3337 = vpack.c.b16 %v3107, %v3107
        %v3338 = vpack.c.b16 %v3108, %v3108
        %v3339 = vpack.c.b16 %v3109, %v3109
        %v3340 = vpack.c.b16 %v3110, %v3110
        %v3341 = vpack.c.b16 %v3111, %v3111
        %v3342 = vpack.c.b16 %v3112, %v3112
        %v3343 = vpack.c.b16 %v3113, %v3113
        %v3344 = vpack.c.b16 %v3114, %v3114
        %v3345 = vpack.c.b16 %v3115, %v3115
        %v3346 = vpack.c.b16 %v3116, %v3116
        %v3347 = vpack.c.b16 %v3117, %v3117
        %v3348 = vpack.c.b16 %v3118, %v3118
        %v3349 = vpack.c.b16 %v3119, %v3119
        %v3350 = vpack.c.b16 %v3120, %v3120
        %v3351 = vpack.c.b16 %v3121, %v3121
        %v3352 = vpack.c.b16 %v3122, %v3122
        %v3353 = vpack.c.b16 %v3123, %v3123
        %v3354 = vpack.c.b16 %v3124, %v3124
        %v3355 = vpack.c.b16 %v3125, %v3125
        %v3356 = vpack.c.b16 %v3126, %v3126
        %v3357 = vpack.c.b16 %v3127, %v3127
        %v3358 = vpack.c.b16 %v3128, %v3128
        %v3359 = vpack.c.b16 %v3129, %v3129
        %v3360 = vpack.c.b16 %v3130, %v3130
        %v3361 = vpack.c.b16 %v3131, %v3131
        %v3362 = vpack.c.b16 %v3132, %v3132
        %v3363 = vpack.c.b16 %v3133, %v3133
        %v3364 = vpack.c.b16 %v3134, %v3134
        %v3365 = vpack.c.b16 %v3135, %v3135
        %v3366 = vpack.c.b16 %v3136, %v3136
        %v3367 = vpack.c.b16 %v3137, %v3137
        %v3368 = vpack.c.b16 %v3138, %v3138
        %v3369 = vpack.c.b16 %v3139, %v3139
        %v3370 = vpack.c.b16 %v3140, %v3140
        %v3371 = vpack.c.b16 %v3141, %v3141
        %v3372 = vpack.c.b16 %v3142, %v3142
        %v3373 = vpack.c.b16 %v3143, %v3143
        %v3374 = vpack.c.b16 %v3144, %v3144
        %v3375 = vpack.c.b16 %v3145, %v3145
        %v3376 = vpack.c.b16 %v3146, %v3146
        %v3377 = vpack.c.b16 %v3147, %v3147
        %v3378 = vpack.c.b16 %v3148, %v3148
        %v3379 = vpack.c.b16 %v3149, %v3149
        %v3380 = vpack.c.b16 %v3150, %v3150
        %v3381 = vpack.c.b16 %v3151, %v3151
        %v3382 = vpack.c.b16 %v3152, %v3152
        %v3383 = vpack.c.b16 %v3153, %v3153
        %v3384 = vpack.c.b16 %v3154, %v3154
        %v3385 = vpack.c.b16 %v3155, %v3155
        %v3386 = vpack.c.b16 %v3156, %v3156
        %v3387 = vpack.c.b16 %v3157, %v3157
        %v3388 = vpack.c.b16 %v3158, %v3158
        %v3389 = vpack.c.b16 %v3159, %v3159
        %v3390 = vpack.c.b16 %v3160, %v3160
        %v3391 = vpack.c.b16 %v3161, %v3161
        %v3392 = vpack.c.b16 %v3162, %v3162
        %v3393 = vpack.c.b16 %v3163, %v3163
        %v3394 = vpack.c.b16 %v3164, %v3164
        %v3395 = vpack.c.b16 %v3165, %v3165
        %v3396 = vpack.c.b16 %v3166, %v3166
        %v3397 = vpack.c.b16 %v3167, %v3167
        %v3398 = vpack.c.b16 %v3168, %v3168
        %v3399 = vpack.c.b16 %v3169, %v3169
        %v3400 = vpack.c.b16 %v3170, %v3170
        %v3401 = vpack.c.b16 %v3171, %v3171
        %v3402 = vpack.c.b16 %v3172, %v3172
        %v3403 = vpack.c.b16 %v3173, %v3173
        %v3404 = vpack.c.b16 %v3174, %v3174
        %v3405 = vpack.c.b16 %v3175, %v3175
        %v3406 = vpack.c.b16 %v3176, %v3176
        %v3407 = vpack.c.b16 %v3177, %v3177
        %v3408 = vpack.c.b16 %v3178, %v3178
        %v3409 = vpack.c.b16 %v3179, %v3179
        %v3410 = vpack.c.b16 %v3180, %v3180
        %v3411 = vpack.c.b16 %v3181, %v3181
        %v3412 = vpack.c.b16 %v3182, %v3182
        %v3413 = vpack.c.b16 %v3183, %v3183
        %v3414 = vpack.c.b16 %v3184, %v3184
        %v3415 = vpack.c.b16 %v3185, %v3185
        %v3416 = vpack.c.b16 %v3186, %v3186
        %v3417 = vpack.c.b16 %v3187, %v3187
        %v3418 = vpack.c.b16 %v3188, %v3188
        %v3419 = vpack.c.b16 %v3189, %v3189
        %v3420 = vpack.c.b16 %v3190, %v3190
        %v3421 = vpack.c.b16 %v3191, %v3191
        %v3422 = vpack.c.b16 %v3192, %v3192
        %v3423 = vpack.c.b16 %v3193, %v3193
        %v3424 = vpack.c.b16 %v3194, %v3194
        %v3425 = vpack.c.b16 %v3195, %v3195
        %v3426 = vpack.c.b16 %v3196, %v3196
        %v3427 = vpack.c.b16 %v3197, %v3197
        %v3428 = vpack.c.b16 %v3198, %v3198
        %v3429 = vpack.c.b16 %v3199, %v3199
        %v3430 = vpack.c.b16 %v3200, %v3200
        %v3431 = vpack.c.b16 %v3201, %v3201
        %v3432 = vpack.c.b16 %v3202, %v3202
        %v3433 = vpack.c.b16 %v3203, %v3203
        %v3434 = vpack.c.b16 %v3204, %v3204
        %v3435 = vpack.c.b16 %v3205, %v3205
        %v3436 = vpack.c.b16 %v3206, %v3206
        %v3437 = vpack.c.b16 %v3207, %v3207
        %v3438 = vpack.c.b16 %v3208, %v3208
        %v3439 = vpack.c.b16 %v3209, %v3209
        %v3440 = vpack.c.b16 %v3210, %v3210
        %v3441 = vpack.c.b16 %v3211, %v3211
        %v3442 = vpack.c.b16 %v3212, %v3212
        %v3443 = vpack.c.b16 %v3213, %v3213
        %v3444 = vpack.c.b16 %v3214, %v3214
        %v3445 = vpack.c.b16 %v3215, %v3215
        %v3446 = vpack.c.b16 %v3216, %v3216
        %v3447 = vpack.c.b16 %v3217, %v3217
        %v3448 = vpack.c.b16 %v3218, %v3218
        %v3449 = vpack.c.b16 %v3219, %v3219
        %v3450 = vpack.c.b16 %v3220, %v3220
        %v3451 = vpack.c.b16 %v3221, %v3221
        %v3452 = vpack.c.b16 %v3222, %v3222
        %v3453 = vpack.c.b16 %v3223, %v3223
        %v3454 = vpack.c.b16 %v3224, %v3224
        %v3455 = vpack.c.b16 %v3225, %v3225
        %v3456 = vpack.c.b16 %v3226, %v3226
        %v3457 = vpack.c.b16 %v3227, %v3227
        %v3458 = vpack.c.b16 %v3228, %v3228
        %v3459 = vpack.c.b16 %v3229, %v3229
        %v3460 = vpack.c.b16 %v3230, %v3230
        %v3461 = vpack.c.b16 %v3231, %v3231
        %v3462 = vpack.c.b16 %v3232, %v3232
        %v3463 = vpack.c.b16 %v3233, %v3233
        %v3464 = vpack.c.b16 %v3234, %v3234
        %v3465 = vpack.c.b16 %v3235, %v3235
        %v3466 = vpack.c.b16 %v3236, %v3236
        %v3467 = vpack.c.b16 %v3237, %v3237
        %v3468 = vpack.c.b16 %v3238, %v3238
        %v3469 = vpack.c.b16 %v3239, %v3239
        %v3470 = vpack.c.b16 %v3240, %v3240
        %v3471 = vpack.c.b16 %v3241, %v3241
        %v3472 = vpack.c.b16 %v3242, %v3242
        %v3473 = vpack.c.b16 %v3243, %v3243
        %v3474 = vpack.c.b16 %v3244, %v3244
        %v3475 = vpack.c.b16 %v3245, %v3245
        %v3476 = vpack.c.b16 %v3246, %v3246
        %v3477 = vpack.c.b16 %v3247, %v3247
        %v3478 = vpack.c.b16 %v3248, %v3248
        %v3479 = vpack.c.b16 %v3249, %v3249
        %v3480 = vpack.c.b16 %v3250, %v3250
        %v3481 = vpack.c.b16 %v3251, %v3251
        %v3482 = vpack.c.b16 %v3252, %v3252
        %v3483 = vpack.c.b16 %v3253, %v3253
        %v3484 = vpack.c.b16 %v3254, %v3254
        %v3485 = vpack.c.b16 %v3255, %v3255
        %v3486 = vpack.c.b16 %v3256, %v3256
        %v3487 = vpack.c.b16 %v3257, %v3257
        %v3488 = vpack.c.b16 %v3258, %v3258
        %v3489 = vpack.c.b16 %v3259, %v3259
        %v3490 = vpack.c.b16 %v3260, %v3260
        %v3491 = vpack.c.b16 %v3261, %v3261
        %v3492 = vpack.c.b16 %v3262, %v3262
        %v3493 = vpack.c.b16 %v3263, %v3263
        %v3494 = vpack.c.b16 %v3264, %v3264
        %v3495 = vpack.c.b16 %v3265, %v3265
        %v3496 = vpack.c.b16 %v3266, %v3266
        %v3497 = vpack.c.b16 %v3267, %v3267
        %v3498 = vpack.c.b16 %v3268, %v3268
        %v3499 = vpack.c.b16 %v3269, %v3269
        %v3500 = vpack.c.b16 %v3270, %v3270
        %v3501 = vpack.c.b16 %v3271, %v3271
        %v3502 = vpack.c.b16 %v3272, %v3272
        %v3503 = vpack.c.b16 %v3273, %v3273
        %v3504 = vpack.c.b16 %v3274, %v3274
        %v3505 = vpack.c.b16 %v3275, %v3275
        %v3506 = vpack.c.b16 %v3276, %v3276
        %v3507 = vpack.c.b16 %v3277, %v3277
        %v3508 = vpack.c.b16 %v3278, %v3278
        %v3509 = vpack.c.b16 %v3279, %v3279
        %v3510 = vpack.c.b16 %v3280, %v3280
        %v3511 = vpack.c.b16 %v3281, %v3281
        %v3512 = vpack.c.b16 %v3282, %v3282
        %v3513 = vpack.c.b16 %v3283, %v3283
        %v3514 = vpack.c.b16 %v3284, %v3284
        %v3515 = vpack.c.b16 %v3285, %v3285
        %v3516 = vpack.c.b16 %v3286, %v3286
        %v3517 = vpack.c.b16 %v3287, %v3287
        %v3518 = vpack.c.b16 %v3288, %v3288
        %v3519 = vpack.c.b16 %v3289, %v3289
        %v3520 = vpack.c.b16 %v3290, %v3290
        %v3521 = vpack.c.b16 %v3291, %v3291
        %v3522 = vpack.c.b16 %v3292, %v3292
        %v3523 = vpack.c.b16 %v3293, %v3293
        %v3524 = vpack.c.b16 %v3294, %v3294
        %v3525 = vpack.c.b16 %v3295, %v3295
        %v3526 = vpack.c.b16 %v3296, %v3296
        %v3527 = vpack.c.b16 %v3297, %v3297
        %v3528 = vpack.c.b16 %v3298, %v3298
        %v3529 = vpack.c.b16 %v3299, %v3299
        %v3530 = vpack.c.b16 %v3300, %v3300
        %v3531 = vpack.c.b16 %v3301, %v3301
        %v3532 = vpack.c.b16 %v3302, %v3302
        %v3533 = vpack.c.b16 %v3303, %v3303
        %v3534 = vpack.c.b16 %v3304, %v3304
        %v3535 = vpack.c.b16 %v3305, %v3305
        %v3536 = vpack.c.b16 %v3306, %v3306
        %v3537 = vpack.c.b16 %v3307, %v3307
        %v3538 = vpack.c.b16 %v3308, %v3308
        %v3539 = vpack.c.b16 %v3309, %v3309
        %v3540 = vpack.c.b16 %v3310, %v3310
        %v3541 = vpack.c.b16 %v3311, %v3311
        %v3542 = vpack.c.b16 %v3312, %v3312
        %3773 = vst [vmem:[%s215] sm:$0xf] %v3313
        %3774 = vst [vmem:[%s215 + $0x4] sm:$0xf] %v3314
        %3775 = vst [vmem:[%s215 + $0x8] sm:$0xf] %v3315
        %3776 = vst [vmem:[%s215 + $0xc] sm:$0xf] %v3316
        %3777 = vst [vmem:[%s215 + $0x10] sm:$0xf] %v3317
        %3778 = vst [vmem:[%s215 + $0x14] sm:$0xf] %v3318
        %3779 = vst [vmem:[%s215 + $0x18] sm:$0xf] %v3319
        %3780 = vst [vmem:[%s215 + $0x1c] sm:$0xf] %v3320
        %3781 = vst [vmem:[%s215 + $0x20] sm:$0xf] %v3321
        %3782 = vst [vmem:[%s215 + $0x24] sm:$0xf] %v3322
        %3783 = vst [vmem:[%s215 + $0x28] sm:$0xf] %v3323
        %3784 = vst [vmem:[%s215 + $0x2c] sm:$0xf] %v3324
        %3785 = vst [vmem:[%s215 + $0x30] sm:$0xf] %v3325
        %3786 = vst [vmem:[%s215 + $0x34] sm:$0xf] %v3326
        %3787 = vst [vmem:[%s215 + $0x38] sm:$0xf] %v3327
        %3788 = vst [vmem:[%s215 + $0x3c] sm:$0xf] %v3328
        %3789 = vst [vmem:[%s215 + $0x40] sm:$0xf] %v3329
        %3790 = vst [vmem:[%s215 + $0x44] sm:$0xf] %v3330
        %3791 = vst [vmem:[%s215 + $0x48] sm:$0xf] %v3331
        %3792 = vst [vmem:[%s215 + $0x4c] sm:$0xf] %v3332
        %3793 = vst [vmem:[%s215 + $0x50] sm:$0xf] %v3333
        %3794 = vst [vmem:[%s215 + $0x54] sm:$0xf] %v3334
        %3795 = vst [vmem:[%s215 + $0x58] sm:$0xf] %v3335
        %3796 = vst [vmem:[%s215 + $0x5c] sm:$0xf] %v3336
        %3797 = vst [vmem:[%s215 + $0x60] sm:$0xf] %v3337
        %3798 = vst [vmem:[%s215 + $0x64] sm:$0xf] %v3338
        %3799 = vst [vmem:[%s215 + $0x68] sm:$0xf] %v3339
        %3800 = vst [vmem:[%s215 + $0x6c] sm:$0xf] %v3340
        %3801 = vst [vmem:[%s215 + $0x70] sm:$0xf] %v3341
        %3802 = vst [vmem:[%s215 + $0x74] sm:$0xf] %v3342
        %3803 = vst [vmem:[%s215 + $0x78] sm:$0xf] %v3343
        %3804 = vst [vmem:[%s215 + $0x7c] sm:$0xf] %v3344
        %3805 = vst [vmem:[%s215 + $0x80] sm:$0xf] %v3345
        %3806 = vst [vmem:[%s215 + $0x84] sm:$0xf] %v3346
        %3807 = vst [vmem:[%s215 + $0x88] sm:$0xf] %v3347
        %3808 = vst [vmem:[%s215 + $0x8c] sm:$0xf] %v3348
        %3809 = vst [vmem:[%s215 + $0x90] sm:$0xf] %v3349
        %3810 = vst [vmem:[%s215 + $0x94] sm:$0xf] %v3350
        %3811 = vst [vmem:[%s215 + $0x98] sm:$0xf] %v3351
        %3812 = vst [vmem:[%s215 + $0x9c] sm:$0xf] %v3352
        %3813 = vst [vmem:[%s215 + $0xa0] sm:$0xf] %v3353
        %3814 = vst [vmem:[%s215 + $0xa4] sm:$0xf] %v3354
        %3815 = vst [vmem:[%s215 + $0xa8] sm:$0xf] %v3355
        %3816 = vst [vmem:[%s215 + $0xac] sm:$0xf] %v3356
        %3817 = vst [vmem:[%s215 + $0xb0] sm:$0xf] %v3357
        %3818 = vst [vmem:[%s215 + $0xb4] sm:$0xf] %v3358
        %3819 = vst [vmem:[%s215 + $0xb8] sm:$0xf] %v3359
        %3820 = vst [vmem:[%s215 + $0xbc] sm:$0xf] %v3360
        %3821 = vst [vmem:[%s215 + $0xc0] sm:$0xf] %v3361
        %3822 = vst [vmem:[%s215 + $0xc4] sm:$0xf] %v3362
        %3823 = vst [vmem:[%s215 + $0xc8] sm:$0xf] %v3363
        %3824 = vst [vmem:[%s215 + $0xcc] sm:$0xf] %v3364
        %3825 = vst [vmem:[%s215 + $0xd0] sm:$0xf] %v3365
        %3826 = vst [vmem:[%s215 + $0xd4] sm:$0xf] %v3366
        %3827 = vst [vmem:[%s215 + $0xd8] sm:$0xf] %v3367
        %3828 = vst [vmem:[%s215 + $0xdc] sm:$0xf] %v3368
        %3829 = vst [vmem:[%s215 + $0xe0] sm:$0xf] %v3369
        %3830 = vst [vmem:[%s215 + $0xe4] sm:$0xf] %v3370
        %3831 = vst [vmem:[%s215 + $0xe8] sm:$0xf] %v3371
        %3832 = vst [vmem:[%s215 + $0xec] sm:$0xf] %v3372
        %3833 = vst [vmem:[%s215 + $0xf0] sm:$0xf] %v3373
        %3834 = vst [vmem:[%s215 + $0xf4] sm:$0xf] %v3374
        %3835 = vst [vmem:[%s215 + $0xf8] sm:$0xf] %v3375
        %3836 = vst [vmem:[%s215 + $0xfc] sm:$0xf] %v3376
        %3837 = vst [vmem:[%s215 + $0x100] sm:$0xf] %v3377
        %3838 = vst [vmem:[%s215 + $0x104] sm:$0xf] %v3378
        %3839 = vst [vmem:[%s215 + $0x108] sm:$0xf] %v3379
        %3840 = vst [vmem:[%s215 + $0x10c] sm:$0xf] %v3380
        %3841 = vst [vmem:[%s215 + $0x110] sm:$0xf] %v3381
        %3842 = vst [vmem:[%s215 + $0x114] sm:$0xf] %v3382
        %3843 = vst [vmem:[%s215 + $0x118] sm:$0xf] %v3383
        %3844 = vst [vmem:[%s215 + $0x11c] sm:$0xf] %v3384
        %3845 = vst [vmem:[%s215 + $0x120] sm:$0xf] %v3385
        %3846 = vst [vmem:[%s215 + $0x124] sm:$0xf] %v3386
        %3847 = vst [vmem:[%s215 + $0x128] sm:$0xf] %v3387
        %3848 = vst [vmem:[%s215 + $0x12c] sm:$0xf] %v3388
        %3849 = vst [vmem:[%s215 + $0x130] sm:$0xf] %v3389
        %3850 = vst [vmem:[%s215 + $0x134] sm:$0xf] %v3390
        %3851 = vst [vmem:[%s215 + $0x138] sm:$0xf] %v3391
        %3852 = vst [vmem:[%s215 + $0x13c] sm:$0xf] %v3392
        %3853 = vst [vmem:[%s215 + $0x140] sm:$0xf] %v3393
        %3854 = vst [vmem:[%s215 + $0x144] sm:$0xf] %v3394
        %3855 = vst [vmem:[%s215 + $0x148] sm:$0xf] %v3395
        %3856 = vst [vmem:[%s215 + $0x14c] sm:$0xf] %v3396
        %3857 = vst [vmem:[%s215 + $0x150] sm:$0xf] %v3397
        %3858 = vst [vmem:[%s215 + $0x154] sm:$0xf] %v3398
        %3859 = vst [vmem:[%s215 + $0x158] sm:$0xf] %v3399
        %3860 = vst [vmem:[%s215 + $0x15c] sm:$0xf] %v3400
        %3861 = vst [vmem:[%s215 + $0x160] sm:$0xf] %v3401
        %3862 = vst [vmem:[%s215 + $0x164] sm:$0xf] %v3402
        %3863 = vst [vmem:[%s215 + $0x168] sm:$0xf] %v3403
        %3864 = vst [vmem:[%s215 + $0x16c] sm:$0xf] %v3404
        %3865 = vst [vmem:[%s215 + $0x170] sm:$0xf] %v3405
        %3866 = vst [vmem:[%s215 + $0x174] sm:$0xf] %v3406
        %3867 = vst [vmem:[%s215 + $0x178] sm:$0xf] %v3407
        %3868 = vst [vmem:[%s215 + $0x17c] sm:$0xf] %v3408
        %3869 = vst [vmem:[%s215 + $0x180] sm:$0xf] %v3409
        %3870 = vst [vmem:[%s215 + $0x184] sm:$0xf] %v3410
        %3871 = vst [vmem:[%s215 + $0x188] sm:$0xf] %v3411
        %3872 = vst [vmem:[%s215 + $0x18c] sm:$0xf] %v3412
        %3873 = vst [vmem:[%s215 + $0x190] sm:$0xf] %v3413
        %3874 = vst [vmem:[%s215 + $0x194] sm:$0xf] %v3414
        %3875 = vst [vmem:[%s215 + $0x198] sm:$0xf] %v3415
        %3876 = vst [vmem:[%s215 + $0x19c] sm:$0xf] %v3416
        %3877 = vst [vmem:[%s215 + $0x1a0] sm:$0xf] %v3417
        %3878 = vst [vmem:[%s215 + $0x1a4] sm:$0xf] %v3418
        %3879 = vst [vmem:[%s215 + $0x1a8] sm:$0xf] %v3419
        %3880 = vst [vmem:[%s215 + $0x1ac] sm:$0xf] %v3420
        %3881 = vst [vmem:[%s215 + $0x1b0] sm:$0xf] %v3421
        %3882 = vst [vmem:[%s215 + $0x1b4] sm:$0xf] %v3422
        %3883 = vst [vmem:[%s215 + $0x1b8] sm:$0xf] %v3423
        %3884 = vst [vmem:[%s215 + $0x1bc] sm:$0xf] %v3424
        %3885 = vst [vmem:[%s215 + $0x1c0] sm:$0xf] %v3425
        %3886 = vst [vmem:[%s215 + $0x1c4] sm:$0xf] %v3426
        %3887 = vst [vmem:[%s215 + $0x1c8] sm:$0xf] %v3427
        %3888 = vst [vmem:[%s215 + $0x1cc] sm:$0xf] %v3428
        %3889 = vst [vmem:[%s215 + $0x1d0] sm:$0xf] %v3429
        %3890 = vst [vmem:[%s215 + $0x1d4] sm:$0xf] %v3430
        %3891 = vst [vmem:[%s215 + $0x1d8] sm:$0xf] %v3431
        %3892 = vst [vmem:[%s215 + $0x1dc] sm:$0xf] %v3432
        %3893 = vst [vmem:[%s215 + $0x1e0] sm:$0xf] %v3433
        %3894 = vst [vmem:[%s215 + $0x1e4] sm:$0xf] %v3434
        %3895 = vst [vmem:[%s215 + $0x1e8] sm:$0xf] %v3435
        %3896 = vst [vmem:[%s215 + $0x1ec] sm:$0xf] %v3436
        %3897 = vst [vmem:[%s215 + $0x1f0] sm:$0xf] %v3437
        %3898 = vst [vmem:[%s215 + $0x1f4] sm:$0xf] %v3438
        %3899 = vst [vmem:[%s215 + $0x1f8] sm:$0xf] %v3439
        %3900 = vst [vmem:[%s215 + $0x1fc] sm:$0xf] %v3440
        %3901 = vst [vmem:[%s215 + $0x200] sm:$0xf] %v3441
        %3902 = vst [vmem:[%s215 + $0x204] sm:$0xf] %v3442
        %3903 = vst [vmem:[%s215 + $0x208] sm:$0xf] %v3443
        %3904 = vst [vmem:[%s215 + $0x20c] sm:$0xf] %v3444
        %3905 = vst [vmem:[%s215 + $0x210] sm:$0xf] %v3445
        %3906 = vst [vmem:[%s215 + $0x214] sm:$0xf] %v3446
        %3907 = vst [vmem:[%s215 + $0x218] sm:$0xf] %v3447
        %3908 = vst [vmem:[%s215 + $0x21c] sm:$0xf] %v3448
        %3909 = vst [vmem:[%s215 + $0x220] sm:$0xf] %v3449
        %3910 = vst [vmem:[%s215 + $0x224] sm:$0xf] %v3450
        %3911 = vst [vmem:[%s215 + $0x228] sm:$0xf] %v3451
        %3912 = vst [vmem:[%s215 + $0x22c] sm:$0xf] %v3452
        %3913 = vst [vmem:[%s215 + $0x230] sm:$0xf] %v3453
        %3914 = vst [vmem:[%s215 + $0x234] sm:$0xf] %v3454
        %3915 = vst [vmem:[%s215 + $0x238] sm:$0xf] %v3455
        %3916 = vst [vmem:[%s215 + $0x23c] sm:$0xf] %v3456
        %3917 = vst [vmem:[%s215 + $0x240] sm:$0xf] %v3457
        %3918 = vst [vmem:[%s215 + $0x244] sm:$0xf] %v3458
        %3919 = vst [vmem:[%s215 + $0x248] sm:$0xf] %v3459
        %3920 = vst [vmem:[%s215 + $0x24c] sm:$0xf] %v3460
        %3921 = vst [vmem:[%s215 + $0x250] sm:$0xf] %v3461
        %3922 = vst [vmem:[%s215 + $0x254] sm:$0xf] %v3462
        %3923 = vst [vmem:[%s215 + $0x258] sm:$0xf] %v3463
        %3924 = vst [vmem:[%s215 + $0x25c] sm:$0xf] %v3464
        %3925 = vst [vmem:[%s215 + $0x260] sm:$0xf] %v3465
        %3926 = vst [vmem:[%s215 + $0x264] sm:$0xf] %v3466
        %3927 = vst [vmem:[%s215 + $0x268] sm:$0xf] %v3467
        %3928 = vst [vmem:[%s215 + $0x26c] sm:$0xf] %v3468
        %3929 = vst [vmem:[%s215 + $0x270] sm:$0xf] %v3469
        %3930 = vst [vmem:[%s215 + $0x274] sm:$0xf] %v3470
        %3931 = vst [vmem:[%s215 + $0x278] sm:$0xf] %v3471
        %3932 = vst [vmem:[%s215 + $0x27c] sm:$0xf] %v3472
        %3933 = vst [vmem:[%s215 + $0x280] sm:$0xf] %v3473
        %3934 = vst [vmem:[%s215 + $0x284] sm:$0xf] %v3474
        %3935 = vst [vmem:[%s215 + $0x288] sm:$0xf] %v3475
        %3936 = vst [vmem:[%s215 + $0x28c] sm:$0xf] %v3476
        %3937 = vst [vmem:[%s215 + $0x290] sm:$0xf] %v3477
        %3938 = vst [vmem:[%s215 + $0x294] sm:$0xf] %v3478
        %3939 = vst [vmem:[%s215 + $0x298] sm:$0xf] %v3479
        %3940 = vst [vmem:[%s215 + $0x29c] sm:$0xf] %v3480
        %3941 = vst [vmem:[%s215 + $0x2a0] sm:$0xf] %v3481
        %3942 = vst [vmem:[%s215 + $0x2a4] sm:$0xf] %v3482
        %3943 = vst [vmem:[%s215 + $0x2a8] sm:$0xf] %v3483
        %3944 = vst [vmem:[%s215 + $0x2ac] sm:$0xf] %v3484
        %3945 = vst [vmem:[%s215 + $0x2b0] sm:$0xf] %v3485
        %3946 = vst [vmem:[%s215 + $0x2b4] sm:$0xf] %v3486
        %3947 = vst [vmem:[%s215 + $0x2b8] sm:$0xf] %v3487
        %3948 = vst [vmem:[%s215 + $0x2bc] sm:$0xf] %v3488
        %3949 = vst [vmem:[%s215 + $0x2c0] sm:$0xf] %v3489
        %3950 = vst [vmem:[%s215 + $0x2c4] sm:$0xf] %v3490
        %3951 = vst [vmem:[%s215 + $0x2c8] sm:$0xf] %v3491
        %3952 = vst [vmem:[%s215 + $0x2cc] sm:$0xf] %v3492
        %3953 = vst [vmem:[%s215 + $0x2d0] sm:$0xf] %v3493
        %3954 = vst [vmem:[%s215 + $0x2d4] sm:$0xf] %v3494
        %3955 = vst [vmem:[%s215 + $0x2d8] sm:$0xf] %v3495
        %3956 = vst [vmem:[%s215 + $0x2dc] sm:$0xf] %v3496
        %3957 = vst [vmem:[%s215 + $0x2e0] sm:$0xf] %v3497
        %3958 = vst [vmem:[%s215 + $0x2e4] sm:$0xf] %v3498
        %3959 = vst [vmem:[%s215 + $0x2e8] sm:$0xf] %v3499
        %3960 = vst [vmem:[%s215 + $0x2ec] sm:$0xf] %v3500
        %3961 = vst [vmem:[%s215 + $0x2f0] sm:$0xf] %v3501
        %3962 = vst [vmem:[%s215 + $0x2f4] sm:$0xf] %v3502
        %3963 = vst [vmem:[%s215 + $0x2f8] sm:$0xf] %v3503
        %3964 = vst [vmem:[%s215 + $0x2fc] sm:$0xf] %v3504
        %3965 = vst [vmem:[%s215 + $0x300] sm:$0xf] %v3505
        %3966 = vst [vmem:[%s215 + $0x304] sm:$0xf] %v3506
        %3967 = vst [vmem:[%s215 + $0x308] sm:$0xf] %v3507
        %3968 = vst [vmem:[%s215 + $0x30c] sm:$0xf] %v3508
        %3969 = vst [vmem:[%s215 + $0x310] sm:$0xf] %v3509
        %3970 = vst [vmem:[%s215 + $0x314] sm:$0xf] %v3510
        %3971 = vst [vmem:[%s215 + $0x318] sm:$0xf] %v3511
        %3972 = vst [vmem:[%s215 + $0x31c] sm:$0xf] %v3512
        %3973 = vst [vmem:[%s215 + $0x320] sm:$0xf] %v3513
        %3974 = vst [vmem:[%s215 + $0x324] sm:$0xf] %v3514
        %3975 = vst [vmem:[%s215 + $0x328] sm:$0xf] %v3515
        %3976 = vst [vmem:[%s215 + $0x32c] sm:$0xf] %v3516
        %3977 = vst [vmem:[%s215 + $0x330] sm:$0xf] %v3517
        %3978 = vst [vmem:[%s215 + $0x334] sm:$0xf] %v3518
        %3979 = vst [vmem:[%s215 + $0x338] sm:$0xf] %v3519
        %3980 = vst [vmem:[%s215 + $0x33c] sm:$0xf] %v3520
        %3981 = vst [vmem:[%s215 + $0x340] sm:$0xf] %v3521
        %3982 = vst [vmem:[%s215 + $0x344] sm:$0xf] %v3522
        %3983 = vst [vmem:[%s215 + $0x348] sm:$0xf] %v3523
        %3984 = vst [vmem:[%s215 + $0x34c] sm:$0xf] %v3524
        %3985 = vst [vmem:[%s215 + $0x350] sm:$0xf] %v3525
        %3986 = vst [vmem:[%s215 + $0x354] sm:$0xf] %v3526
        %3987 = vst [vmem:[%s215 + $0x358] sm:$0xf] %v3527
        %3988 = vst [vmem:[%s215 + $0x35c] sm:$0xf] %v3528
        %3989 = vst [vmem:[%s215 + $0x360] sm:$0xf] %v3529
        %3990 = vst [vmem:[%s215 + $0x364] sm:$0xf] %v3530
        %3991 = vst [vmem:[%s215 + $0x368] sm:$0xf] %v3531
        %3992 = vst [vmem:[%s215 + $0x36c] sm:$0xf] %v3532
        %3993 = vst [vmem:[%s215 + $0x370] sm:$0xf] %v3533
        %3994 = vst [vmem:[%s215 + $0x374] sm:$0xf] %v3534
        %3995 = vst [vmem:[%s215 + $0x378] sm:$0xf] %v3535
        %3996 = vst [vmem:[%s215 + $0x37c] sm:$0xf] %v3536
        %3997 = vst [vmem:[%s215 + $0x380] sm:$0xf] %v3537
        %3998 = vst [vmem:[%s215 + $0x384] sm:$0xf] %v3538
        %3999 = vst [vmem:[%s215 + $0x388] sm:$0xf] %v3539
        %4000 = vst [vmem:[%s215 + $0x38c] sm:$0xf] %v3540
        %4001 = vst [vmem:[%s215 + $0x390] sm:$0xf] %v3541
        %4002 = vst [vmem:[%s215 + $0x394] sm:$0xf] %v3542
        %s4003 = sand.u32 %s97, 1
        %s4004 = scalar_lea.sflag [#allocation4], %s4003
        %s4005 = sand.u32 %s97, 1
        %s4006 = smul.addr %s4005, 920
        %s4007 = scalar_lea.vmem [#allocation8], %s4006
        // Predicated region
        $region45: #{tpu_custom_call.1} parent=31 // pred_check
          %p4008 = pneg %p107
        $region46: #{tpu_custom_call.1} parent=31 // pred_check_branch
          %4010 = sbr.rel (%p4008) target = $region48
        $region47: #{tpu_custom_call.1} parent=31 // pred_region
          %s4011 = smul.u32 230, %s21
          %s4013 = ssub.s32 14720, 14720
          %4014 = vsyncadd %s4004, %s4013
          %s4015 = smul.addr %s4011, 64
          %s4016 = scalar_lea.hbm %s3, %s4015
          %s4017 = sshll.u32 %s4007, 4
          %s4018 = int_to_ptr.vmem [resolvable:$true] %s4017
          %4023 = dma.vmem_to_hbm [thread:$0]  %s4018, 14720, %s4016, %s4004, 64, 64, 4
        $region48: #{tpu_custom_call.1} parent=31 // pred_fallthru
          _
      $region32: #{tpu_custom_call.1} parent=5 // pred_fallthru
        _
      %p4024 = scmp.le.s32.totalorder 2, %s16
      // Predicated region
      $region49: #{tpu_custom_call.1} parent=5 // pred_check
        %p4025 = pneg %p4024
      $region50: #{tpu_custom_call.1} parent=5 // pred_check_branch
        %4027 = sbr.rel (%p4025) target = $region52
      $region51: #{tpu_custom_call.1} parent=5 // pred_region
        %s4028 = ssub.s32 %s16, 2
        // Predicated region
        $region53: #{tpu_custom_call.1} parent=51 // pred_check
          %p4029 = pneg %p113
        $region54: #{tpu_custom_call.1} parent=51 // pred_check_branch
          %4031 = sbr.rel (%p4029) target = $region56
        $region55: #{tpu_custom_call.1} parent=51 // pred_region
          %s4032 = sand.u32 %s98, 1
          %s4033 = scalar_lea.sflag [#allocation4], %s4032
          %s4034 = sand.u32 %s98, 1
          %s4035 = smul.addr %s4034, 920
          %s4036 = scalar_lea.vmem [#allocation8], %s4035
          %4037 = dma.done %s4033, 14720
        $region56: #{tpu_custom_call.1} parent=51 // pred_fallthru
          _
      $region52: #{tpu_custom_call.1} parent=5 // pred_fallthru
        _
    $region6: #{tpu_custom_call.1} parent=1 // loop_footer
      %s20 = sadd.s32 1, %s16
    $region7: #{tpu_custom_call.1} parent=1 // loop_footer_branch
      %15 = sbr.rel target = $region3
    $region8: #{tpu_custom_call.1} parent=1 // loop_exit
      _
    %4038 = vsyncpa [#allocation3], 1
    %s4039 = scalar_lea.sflag [#allocation3], 1
    %4040 = vsyncpa %s4039, 1
    %4041 = vsyncpa [#allocation6], 1
    %4042 = vsyncpa [#allocation4], 1
    %s4043 = scalar_lea.sflag [#allocation4], 1
    %4044 = vsyncpa %s4043, 1

</llo_original>
